<compile_context>
chip_gen: v6e
topology: v6e:2x2x1
jax: 0.10.0
libtpu: 0.0.40
codegen_flags: <defaults>
</compile_context>

<pallas_src>
import functools
import numpy as np
import jax
import jax.numpy as jnp
from jax.experimental import pallas as pl
from jax.experimental.pallas import tpu as pltpu


# --------------------------------------------------------------------------
# Fused forward kernel
# --------------------------------------------------------------------------

def _fused_mha_kernel(xp_ref, zp_ref, wq_ref, bq_ref, wkv_ref, bkv_ref,
                      wo_ref, bo_ref, bias_ref, mask_ref, o_ref,
                      *, n_head, d_k, n_windows, q_len, k_len):
    # xp_ref  : (1, NW*Q, d_embed)       query input, shift+window permuted
    # zp_ref  : (1, NW*K, key_d_embed)   encoder output, shift+window permuted
    # wq_ref  : (d_embed, d_embed)       1/sqrt(d_k) pre-folded
    # bq_ref  : (1, d_embed)             1/sqrt(d_k) pre-folded
    # wkv_ref : (key_d_embed, 2*d_embed) fused key/value projection
    # bkv_ref : (1, 2*d_embed)
    # wo_ref  : (d_embed, d_embed)
    # bo_ref  : (1, d_embed)
    # bias_ref: (n_head, Q, K) f32       relative-position bias (window-invariant)
    # mask_ref: (n_head, NW, Q, K) bf16  additive mask (0 / -1e9)
    # o_ref   : (1, NW*Q, d_embed)       output-projected context (permuted layout)
    x = xp_ref[0]
    z = zp_ref[0]
    d_embed = n_head * d_k

    # --- projections (MXU, full lane width).  k & v in ONE dot. ---
    q = jnp.dot(x, wq_ref[...], preferred_element_type=jnp.float32) + bq_ref[...]
    kv = jnp.dot(z, wkv_ref[...], preferred_element_type=jnp.float32) + bkv_ref[...]

    q3 = q.reshape(n_windows, q_len, d_embed)          # (NW, Q, d_embed)
    kv3 = kv.reshape(n_windows, k_len, 2 * d_embed)    # (NW, K, 2*d_embed)

    # --- per-head windowed attention, accumulated straight into the output
    # projection: no lane concat, only one head's intermediates live at a time.
    out = bo_ref[...]                                   # (1, d_embed), broadcasts
    for h in range(n_head):
        qh = q3[:, :, h * d_k:(h + 1) * d_k]                         # (NW, Q, d_k)
        kh = kv3[:, :, h * d_k:(h + 1) * d_k]                        # (NW, K, d_k)
        vh = kv3[:, :, d_embed + h * d_k:d_embed + (h + 1) * d_k]    # (NW, K, d_k)

        s = jnp.einsum("wqd,wkd->wqk", qh, kh,
                       preferred_element_type=jnp.float32)
        # rel-pos bias (window-invariant) + additive mask; add kept in f32.
        s = s + bias_ref[h][None, :, :] + mask_ref[h].astype(jnp.float32)

        s_max = jnp.max(s, axis=-1, keepdims=True)
        p = jnp.exp(s - s_max)
        denom = jnp.sum(p, axis=-1, keepdims=True)
        attn = p * pl.reciprocal(denom, approx=True)    # divide -> EUP slot

        ctx_h = jnp.einsum("wqk,wkd->wqd", attn, vh,
                           preferred_element_type=jnp.float32)
        # head's rows of wo (aligned sublane slice -> free)
        out = out + jnp.dot(ctx_h.reshape(n_windows * q_len, d_k),
                            wo_ref[h * d_k:(h + 1) * d_k, :],
                            preferred_element_type=jnp.float32)

    o_ref[0] = out.astype(o_ref.dtype)


# --------------------------------------------------------------------------
# Static shift+window permutation helpers (host / numpy, trace-time constants)
# --------------------------------------------------------------------------

def shift_window_perm(Hs, Ws, ws, shift):
    """Flat spatial permutation implementing cyclic shift + window partition."""
    idx = np.arange(Hs * Ws, dtype=np.int32).reshape(Hs, Ws)
    shifted = np.roll(idx, (-shift, -shift), axis=(0, 1))
    nh_, nw_ = Hs // ws, Ws // ws
    perm = shifted.reshape(nh_, ws, nw_, ws).transpose(0, 2, 1, 3).reshape(-1)
    return perm.astype(np.int32)


def relative_position_index(qws, kws):
    # TODO(synk): reconstructed Swin-style query/key relative-position index.
    ratio = qws // kws
    cq = np.stack(np.meshgrid(np.arange(qws), np.arange(qws),
                              indexing="ij"), axis=0).reshape(2, -1)           # (2, Q)
    ck = np.stack(np.meshgrid(np.arange(kws), np.arange(kws),
                              indexing="ij"), axis=0).reshape(2, -1) * ratio   # (2, K)
    rel = cq[:, :, None] - ck[:, None, :] + (qws - ratio)                      # (2, Q, K)
    idx = rel[0] * (2 * qws - ratio) + rel[1]
    return jnp.asarray(idx, dtype=jnp.int32)                                   # (Q, K)


# --------------------------------------------------------------------------
# Forward wrapper
# --------------------------------------------------------------------------

def mha_forward(params, x, z, mask, cfg):
    B, H, W, d_embed = x.shape
    _, _H, _W, key_d_embed = z.shape
    n_head = cfg["n_head"]
    d_k = d_embed // n_head
    qws, kws = cfg["qws"], cfg["kws"]
    nh, nw = H // qws, W // qws
    NW = nh * nw
    Qsq, Ksq = qws * qws, kws * kws
    NQ, NK = NW * Qsq, NW * Ksq
    scale = jnp.float32(1.0 / np.sqrt(d_k))

    # ---- single static gather = cyclic shift + window partition ----
    # TODO(synk): wraps around image borders -> not expressible as contiguous
    # BlockSpec windows; fuse into adjacent layers in a full model.
    xp = jnp.take(x.reshape(B, H * W, d_embed), cfg["perm_q"], axis=1)        # (B, NQ, C)
    zp = jnp.take(z.reshape(B, _H * _W, key_d_embed), cfg["perm_k"], axis=1)  # (B, NK, C)

    # ---- fold 1/sqrt(d_k) into the query projection (exact transform) ----
    wq = params["wq"] * scale
    bq = (params["bq"] * scale).reshape(1, d_embed)

    # ---- small f32 rel-pos bias + compact bf16 additive mask (no fused slab) ----
    rel_bias = params["rel_table"][cfg["rel_index"].reshape(-1)]              # (Q*K, nH)
    rel_bias = rel_bias.reshape(Qsq, Ksq, n_head).transpose(2, 0, 1)          # (nH, Q, K)
    mask_add = (mask[0].reshape(n_head, NW, Qsq, Ksq).astype(jnp.float32)
                * jnp.float32(-1e9)).astype(jnp.bfloat16)                     # (nH, NW, Q, K)

    kernel = functools.partial(
        _fused_mha_kernel, n_head=n_head, d_k=d_k, n_windows=NW,
        q_len=Qsq, k_len=Ksq)

    const2 = lambda b: (0, 0)
    out_p = pl.pallas_call(
        kernel,
        out_shape=jax.ShapeDtypeStruct((B, NQ, d_embed), x.dtype),
        grid=(B,),
        in_specs=[
            pl.BlockSpec((1, NQ, d_embed), lambda b: (b, 0, 0)),
            pl.BlockSpec((1, NK, key_d_embed), lambda b: (b, 0, 0)),
            pl.BlockSpec((d_embed, d_embed), const2),             # wq (scaled)
            pl.BlockSpec((1, d_embed), const2),                   # bq (scaled)
            pl.BlockSpec((key_d_embed, 2 * d_embed), const2),     # wkv (fused)
            pl.BlockSpec((1, 2 * d_embed), const2),               # bkv (fused)
            pl.BlockSpec((d_embed, d_embed), const2),             # wo
            pl.BlockSpec((1, d_embed), const2),                   # bo
            pl.BlockSpec((n_head, Qsq, Ksq), lambda b: (0, 0, 0)),           # rel bias
            pl.BlockSpec((n_head, NW, Qsq, Ksq), lambda b: (0, 0, 0, 0)),    # bf16 mask
        ],
        out_specs=pl.BlockSpec((1, NQ, d_embed), lambda b: (b, 0, 0)),
        compiler_params=pltpu.CompilerParams(
            dimension_semantics=("parallel",)),
    )(xp, zp, wq, bq,
      params["wkv"], params["bkv"].reshape(1, 2 * d_embed),
      params["wo"], params["bo"].reshape(1, d_embed),
      rel_bias, mask_add)

    # ---- inverse permutation = merge windows + reverse cyclic shift ----
    out = jnp.take(out_p, cfg["inv_perm_q"], axis=1)
    return out.reshape(B, H, W, d_embed)


# --------------------------------------------------------------------------
# Pure-JAX reference (roll / partition / where-mask, true to the torch module)
# --------------------------------------------------------------------------

def partition_window(t, ws):
    b, nhh, hh, ww, dk = t.shape
    t = t.reshape(b, nhh, hh // ws, ws, ww // ws, ws, dk)
    t = t.transpose(0, 1, 2, 4, 3, 5, 6)
    return t.reshape(b, nhh, (hh // ws) * (ww // ws), ws * ws, dk)


def merge_window(t, ws, H, W):
    b, nhh, nw_total, _, dk = t.shape
    nh, nw = H // ws, W // ws
    t = t.reshape(b, nhh, nh, nw, ws, ws, dk)
    t = t.transpose(0, 1, 2, 4, 3, 5, 6)
    return t.reshape(b, nhh, H, W, dk)


def mha_forward_ref(params, x, z, mask, cfg):
    B, H, W, d_embed = x.shape
    _, _H, _W, key_d_embed = z.shape
    n_head = cfg["n_head"]
    d_k = d_embed // n_head
    qws, kws = cfg["qws"], cfg["kws"]
    q_shift, k_shift = qws // 2, kws // 2
    nh, nw = H // qws, W // qws
    scale = 1.0 / np.sqrt(d_k)

    q = x.reshape(B * H * W, d_embed) @ params["wq"] + params["bq"]
    q = q.reshape(B, H, W, n_head, d_k).transpose(0, 3, 1, 2, 4)
    kv = z.reshape(B * _H * _W, key_d_embed) @ params["wkv"] + params["bkv"]
    kv = kv.reshape(B, _H, _W, 2, n_head, d_k).transpose(3, 0, 4, 1, 2, 5)
    k, v = kv[0], kv[1]

    q = jnp.roll(q, shift=(-q_shift, -q_shift), axis=(2, 3))
    k = jnp.roll(k, shift=(-k_shift, -k_shift), axis=(2, 3))
    v = jnp.roll(v, shift=(-k_shift, -k_shift), axis=(2, 3))
    qw = partition_window(q, qws)
    kw = partition_window(k, kws)
    vw = partition_window(v, kws)

    Qsq, Ksq = qws * qws, kws * kws
    bias = params["rel_table"][cfg["rel_index"].reshape(-1)]
    bias = bias.reshape(Qsq, Ksq, n_head).transpose(2, 0, 1)

    s = jnp.einsum("bhwqd,bhwkd->bhwqk", qw, kw) * scale
    s = s + bias[None, :, None, :, :]
    m = mask[0].reshape(n_head, nh * nw, Qsq, Ksq)[None]
    s = jnp.where(m, -1e9, s)
    s = jax.nn.softmax(s, axis=-1)
    out = jnp.einsum("bhwqk,bhwkd->bhwqd", s, vw)

    out = merge_window(out, qws, H, W)
    out = jnp.roll(out, shift=(q_shift, q_shift), axis=(2, 3))
    out = out.transpose(0, 2, 3, 1, 4).reshape(B, H, W, d_embed)
    out = out.reshape(B * H * W, d_embed) @ params["wo"] + params["bo"]
    return out.reshape(B, H, W, d_embed)


# --------------------------------------------------------------------------
# Main
# --------------------------------------------------------------------------

if __name__ == "__main__":
    B = 2
    d_embed = 32
    key_d_embed = 32
    n_head = 4
    d_k = d_embed // n_head
    H = W = 8
    _H = _W = 8
    qws = kws = 4
    nh, nw = H // qws, W // qws
    Qsq, Ksq = qws * qws, kws * kws

    perm_q = shift_window_perm(H, W, qws, qws // 2)
    perm_k = shift_window_perm(_H, _W, kws, kws // 2)
    inv_perm_q = np.argsort(perm_q).astype(np.int32)

    cfg = {
        "n_head": n_head,
        "qws": qws,
        "kws": kws,
        "rel_index": relative_position_index(qws, kws),
        "perm_q": jnp.asarray(perm_q),
        "perm_k": jnp.asarray(perm_k),
        "inv_perm_q": jnp.asarray(inv_perm_q),
    }

    key = jax.random.PRNGKey(0)
    keys = jax.random.split(key, 12)

    def uniform_init(k, shape, fan_in):
        bound = 1.0 / np.sqrt(fan_in)
        return jax.random.uniform(k, shape, jnp.float32, -bound, bound)

    params = {
        "wq": uniform_init(keys[0], (d_embed, d_embed), d_embed),
        "bq": uniform_init(keys[1], (d_embed,), d_embed),
        "wkv": uniform_init(keys[2], (key_d_embed, 2 * d_embed), key_d_embed),
        "bkv": uniform_init(keys[3], (2 * d_embed,), key_d_embed),
        "wo": uniform_init(keys[4], (d_embed, d_embed), d_embed),
        "bo": uniform_init(keys[5], (d_embed,), d_embed),
        # trunc_normal(std=0.02) approximated with normal * 0.02
        "rel_table": 0.02 * jax.random.normal(
            keys[6], ((2 * qws - qws // kws) ** 2, n_head), jnp.float32),
    }

    x = jax.random.normal(keys[7], (B, H, W, d_embed), jnp.float32)
    z = jax.random.normal(keys[8], (B, _H, _W, key_d_embed), jnp.float32)
    mask = jax.random.bernoulli(keys[9], 0.15, (1, n_head, nh, nw, Qsq, Ksq))

    fwd = jax.jit(functools.partial(mha_forward, cfg=cfg))
    out = jax.block_until_ready(fwd(params, x, z, mask))

    ref = jax.block_until_ready(mha_forward_ref(params, x, z, mask, cfg))
    assert out.shape == (B, H, W, d_embed)
    # tolerance accounts for pl.reciprocal(approx=True) in the softmax denom
    assert np.allclose(np.asarray(out), np.asarray(ref), atol=5e-3, rtol=5e-3)

    print("KERNEL_OK")
</pallas_src>

<mosaic_0001>
module attributes {stable_mosaic.version = 11 : i64} {
  func.func @_fused_mha_kernel(%arg0: i32, %arg1: memref<1x64x32xf32, #tpu.memory_space<vmem>>, %arg2: memref<1x64x32xf32, #tpu.memory_space<vmem>>, %arg3: memref<32x32xf32, #tpu.memory_space<vmem>>, %arg4: memref<1x32xf32, #tpu.memory_space<vmem>>, %arg5: memref<32x64xf32, #tpu.memory_space<vmem>>, %arg6: memref<1x64xf32, #tpu.memory_space<vmem>>, %arg7: memref<32x32xf32, #tpu.memory_space<vmem>>, %arg8: memref<1x32xf32, #tpu.memory_space<vmem>>, %arg9: memref<4x16x16xf32, #tpu.memory_space<vmem>>, %arg10: memref<4x4x16x16xbf16, #tpu.memory_space<vmem>>, %arg11: memref<1x64x32xf32, #tpu.memory_space<vmem>>) attributes {dimension_semantics = [#tpu.dimension_semantics<parallel>], iteration_bounds = array<i64: 2>, scalar_prefetch = 0 : i64, scratch_operands = 0 : i64, tpu.core_type = #tpu.core_type<tc>, window_params = [{transform_indices = @transform_0, window_bounds = array<i64: 1, 64, 32>}, {transform_indices = @transform_1, window_bounds = array<i64: 1, 64, 32>}, {pipeline_mode = #tpu.pipeline_mode<synchronous>, transform_indices = @transform_2, window_bounds = array<i64: 32, 32>}, {pipeline_mode = #tpu.pipeline_mode<synchronous>, transform_indices = @transform_3, window_bounds = array<i64: 1, 32>}, {pipeline_mode = #tpu.pipeline_mode<synchronous>, transform_indices = @transform_4, window_bounds = array<i64: 32, 64>}, {pipeline_mode = #tpu.pipeline_mode<synchronous>, transform_indices = @transform_5, window_bounds = array<i64: 1, 64>}, {pipeline_mode = #tpu.pipeline_mode<synchronous>, transform_indices = @transform_6, window_bounds = array<i64: 32, 32>}, {pipeline_mode = #tpu.pipeline_mode<synchronous>, transform_indices = @transform_7, window_bounds = array<i64: 1, 32>}, {pipeline_mode = #tpu.pipeline_mode<synchronous>, transform_indices = @transform_8, window_bounds = array<i64: 4, 16, 16>}, {pipeline_mode = #tpu.pipeline_mode<synchronous>, transform_indices = @transform_9, window_bounds = array<i64: 4, 4, 16, 16>}, {transform_indices = @transform_10, window_bounds = array<i64: 1, 64, 32>}]} {
    %c0 = arith.constant 0 : index
    %c0_0 = arith.constant 0 : index
    %c0_1 = arith.constant 0 : index
    %0 = vector.load %arg1[%c0, %c0_0, %c0_1] : memref<1x64x32xf32, #tpu.memory_space<vmem>>, vector<1x64x32xf32>
    %1 = vector.shape_cast %0 : vector<1x64x32xf32> to vector<64x32xf32>
    %c0_2 = arith.constant 0 : index
    %c0_3 = arith.constant 0 : index
    %c0_4 = arith.constant 0 : index
    %2 = vector.load %arg2[%c0_2, %c0_3, %c0_4] : memref<1x64x32xf32, #tpu.memory_space<vmem>>, vector<1x64x32xf32>
    %3 = vector.shape_cast %2 : vector<1x64x32xf32> to vector<64x32xf32>
    %c0_5 = arith.constant 0 : index
    %c0_6 = arith.constant 0 : index
    %4 = vector.load %arg3[%c0_5, %c0_6] : memref<32x32xf32, #tpu.memory_space<vmem>>, vector<32x32xf32>
    %cst = arith.constant dense<0.000000e+00> : vector<64x32xf32>
    %5 = tpu.matmul %1, %4, %cst {dimension_numbers = #tpu.dot_dimension_numbers<[1], [0], [0], [1], [0, 0, 1, 1], [], []>} : vector<64x32xf32>, vector<32x32xf32>, vector<64x32xf32> -> vector<64x32xf32>
    %c0_7 = arith.constant 0 : index
    %c0_8 = arith.constant 0 : index
    %6 = vector.load %arg4[%c0_7, %c0_8] : memref<1x32xf32, #tpu.memory_space<vmem>>, vector<1x32xf32>
    %7 = vector.broadcast %6 : vector<1x32xf32> to vector<64x32xf32>
    %8 = arith.addf %5, %7 : vector<64x32xf32>
    %c0_9 = arith.constant 0 : index
    %c0_10 = arith.constant 0 : index
    %9 = vector.load %arg5[%c0_9, %c0_10] : memref<32x64xf32, #tpu.memory_space<vmem>>, vector<32x64xf32>
    %cst_11 = arith.constant dense<0.000000e+00> : vector<64x64xf32>
    %10 = tpu.matmul %3, %9, %cst_11 {dimension_numbers = #tpu.dot_dimension_numbers<[1], [0], [0], [1], [0, 0, 1, 1], [], []>} : vector<64x32xf32>, vector<32x64xf32>, vector<64x64xf32> -> vector<64x64xf32>
    %c0_12 = arith.constant 0 : index
    %c0_13 = arith.constant 0 : index
    %11 = vector.load %arg6[%c0_12, %c0_13] : memref<1x64xf32, #tpu.memory_space<vmem>>, vector<1x64xf32>
    %12 = vector.broadcast %11 : vector<1x64xf32> to vector<64x64xf32>
    %13 = arith.addf %10, %12 : vector<64x64xf32>
    %14 = vector.shape_cast %8 : vector<64x32xf32> to vector<4x16x32xf32>
    %15 = vector.shape_cast %13 : vector<64x64xf32> to vector<4x16x64xf32>
    %c0_14 = arith.constant 0 : index
    %c0_15 = arith.constant 0 : index
    %16 = vector.load %arg8[%c0_14, %c0_15] : memref<1x32xf32, #tpu.memory_space<vmem>>, vector<1x32xf32>
    %17 = vector.extract_strided_slice %14 {offsets = [0, 0, 0], sizes = [4, 16, 8], strides = [1, 1, 1]} : vector<4x16x32xf32> to vector<4x16x8xf32>
    %18 = vector.extract_strided_slice %15 {offsets = [0, 0, 0], sizes = [4, 16, 8], strides = [1, 1, 1]} : vector<4x16x64xf32> to vector<4x16x8xf32>
    %19 = vector.extract_strided_slice %15 {offsets = [0, 0, 32], sizes = [4, 16, 8], strides = [1, 1, 1]} : vector<4x16x64xf32> to vector<4x16x8xf32>
    "tpu.trace_start"() <{level = 10 : i32, message = "wqd,wkd->wqk"}> : () -> ()
    %cst_16 = arith.constant dense<0.000000e+00> : vector<4x16x16xf32>
    %20 = tpu.matmul %17, %18, %cst_16 {dimension_numbers = #tpu.dot_dimension_numbers<[2], [2], [1], [1], [0, 0, 0, 1, 1, 1], [0], [0]>} : vector<4x16x8xf32>, vector<4x16x8xf32>, vector<4x16x16xf32> -> vector<4x16x16xf32>
    "tpu.trace_stop"() : () -> ()
    %c0_17 = arith.constant 0 : index
    %c0_18 = arith.constant 0 : index
    %c0_19 = arith.constant 0 : index
    %21 = vector.load %arg9[%c0_17, %c0_18, %c0_19] : memref<4x16x16xf32, #tpu.memory_space<vmem>>, vector<1x16x16xf32>
    %22 = vector.shape_cast %21 : vector<1x16x16xf32> to vector<16x16xf32>
    %23 = vector.shape_cast %22 : vector<16x16xf32> to vector<1x16x16xf32>
    %24 = vector.broadcast %23 : vector<1x16x16xf32> to vector<4x16x16xf32>
    %25 = arith.addf %20, %24 : vector<4x16x16xf32>
    %c0_20 = arith.constant 0 : index
    %c0_21 = arith.constant 0 : index
    %c0_22 = arith.constant 0 : index
    %c0_23 = arith.constant 0 : index
    %26 = vector.load %arg10[%c0_20, %c0_21, %c0_22, %c0_23] : memref<4x4x16x16xbf16, #tpu.memory_space<vmem>>, vector<1x4x16x16xbf16>
    %27 = vector.shape_cast %26 : vector<1x4x16x16xbf16> to vector<4x16x16xbf16>
    %28 = arith.extf %27 : vector<4x16x16xbf16> to vector<4x16x16xf32>
    %29 = arith.addf %25, %28 : vector<4x16x16xf32>
    %cst_24 = arith.constant dense<0xFF800000> : vector<4x16xf32>
    %30 = vector.multi_reduction <maximumf>, %29, %cst_24 [2] : vector<4x16x16xf32> to vector<4x16xf32>
    %31 = vector.shape_cast %30 : vector<4x16xf32> to vector<4x16x1xf32>
    %32 = vector.broadcast %31 : vector<4x16x1xf32> to vector<4x16x16xf32>
    %33 = arith.subf %29, %32 : vector<4x16x16xf32>
    %34 = math.exp %33 : vector<4x16x16xf32>
    %cst_25 = arith.constant dense<0.000000e+00> : vector<4x16xf32>
    %35 = vector.multi_reduction <add>, %34, %cst_25 [2] : vector<4x16x16xf32> to vector<4x16xf32>
    %36 = vector.shape_cast %35 : vector<4x16xf32> to vector<4x16x1xf32>
    %37 = tpu.reciprocal %36 {approx = true} : vector<4x16x1xf32> -> vector<4x16x1xf32>
    %38 = vector.broadcast %37 : vector<4x16x1xf32> to vector<4x16x16xf32>
    %39 = arith.mulf %34, %38 : vector<4x16x16xf32>
    "tpu.trace_start"() <{level = 10 : i32, message = "wqk,wkd->wqd"}> : () -> ()
    %cst_26 = arith.constant dense<0.000000e+00> : vector<4x16x8xf32>
    %40 = tpu.matmul %39, %19, %cst_26 {dimension_numbers = #tpu.dot_dimension_numbers<[2], [1], [1], [2], [0, 0, 0, 1, 1, 2], [0], [0]>} : vector<4x16x16xf32>, vector<4x16x8xf32>, vector<4x16x8xf32> -> vector<4x16x8xf32>
    "tpu.trace_stop"() : () -> ()
    %41 = vector.shape_cast %40 : vector<4x16x8xf32> to vector<64x8xf32>
    %c0_27 = arith.constant 0 : index
    %c0_28 = arith.constant 0 : index
    %42 = vector.load %arg7[%c0_27, %c0_28] : memref<32x32xf32, #tpu.memory_space<vmem>>, vector<8x32xf32>
    %cst_29 = arith.constant dense<0.000000e+00> : vector<64x32xf32>
    %43 = tpu.matmul %41, %42, %cst_29 {dimension_numbers = #tpu.dot_dimension_numbers<[1], [0], [0], [1], [0, 0, 1, 1], [], []>} : vector<64x8xf32>, vector<8x32xf32>, vector<64x32xf32> -> vector<64x32xf32>
    %44 = vector.broadcast %16 : vector<1x32xf32> to vector<64x32xf32>
    %45 = arith.addf %44, %43 : vector<64x32xf32>
    %46 = vector.extract_strided_slice %14 {offsets = [0, 0, 8], sizes = [4, 16, 8], strides = [1, 1, 1]} : vector<4x16x32xf32> to vector<4x16x8xf32>
    %47 = vector.extract_strided_slice %15 {offsets = [0, 0, 8], sizes = [4, 16, 8], strides = [1, 1, 1]} : vector<4x16x64xf32> to vector<4x16x8xf32>
    %48 = vector.extract_strided_slice %15 {offsets = [0, 0, 40], sizes = [4, 16, 8], strides = [1, 1, 1]} : vector<4x16x64xf32> to vector<4x16x8xf32>
    "tpu.trace_start"() <{level = 10 : i32, message = "wqd,wkd->wqk"}> : () -> ()
    %cst_30 = arith.constant dense<0.000000e+00> : vector<4x16x16xf32>
    %49 = tpu.matmul %46, %47, %cst_30 {dimension_numbers = #tpu.dot_dimension_numbers<[2], [2], [1], [1], [0, 0, 0, 1, 1, 1], [0], [0]>} : vector<4x16x8xf32>, vector<4x16x8xf32>, vector<4x16x16xf32> -> vector<4x16x16xf32>
    "tpu.trace_stop"() : () -> ()
    %c1 = arith.constant 1 : index
    %c0_31 = arith.constant 0 : index
    %c0_32 = arith.constant 0 : index
    %50 = vector.load %arg9[%c1, %c0_31, %c0_32] : memref<4x16x16xf32, #tpu.memory_space<vmem>>, vector<1x16x16xf32>
    %51 = vector.shape_cast %50 : vector<1x16x16xf32> to vector<16x16xf32>
    %52 = vector.shape_cast %51 : vector<16x16xf32> to vector<1x16x16xf32>
    %53 = vector.broadcast %52 : vector<1x16x16xf32> to vector<4x16x16xf32>
    %54 = arith.addf %49, %53 : vector<4x16x16xf32>
    %c1_33 = arith.constant 1 : index
    %c0_34 = arith.constant 0 : index
    %c0_35 = arith.constant 0 : index
    %c0_36 = arith.constant 0 : index
    %55 = vector.load %arg10[%c1_33, %c0_34, %c0_35, %c0_36] : memref<4x4x16x16xbf16, #tpu.memory_space<vmem>>, vector<1x4x16x16xbf16>
    %56 = vector.shape_cast %55 : vector<1x4x16x16xbf16> to vector<4x16x16xbf16>
    %57 = arith.extf %56 : vector<4x16x16xbf16> to vector<4x16x16xf32>
    %58 = arith.addf %54, %57 : vector<4x16x16xf32>
    %cst_37 = arith.constant dense<0xFF800000> : vector<4x16xf32>
    %59 = vector.multi_reduction <maximumf>, %58, %cst_37 [2] : vector<4x16x16xf32> to vector<4x16xf32>
    %60 = vector.shape_cast %59 : vector<4x16xf32> to vector<4x16x1xf32>
    %61 = vector.broadcast %60 : vector<4x16x1xf32> to vector<4x16x16xf32>
    %62 = arith.subf %58, %61 : vector<4x16x16xf32>
    %63 = math.exp %62 : vector<4x16x16xf32>
    %cst_38 = arith.constant dense<0.000000e+00> : vector<4x16xf32>
    %64 = vector.multi_reduction <add>, %63, %cst_38 [2] : vector<4x16x16xf32> to vector<4x16xf32>
    %65 = vector.shape_cast %64 : vector<4x16xf32> to vector<4x16x1xf32>
    %66 = tpu.reciprocal %65 {approx = true} : vector<4x16x1xf32> -> vector<4x16x1xf32>
    %67 = vector.broadcast %66 : vector<4x16x1xf32> to vector<4x16x16xf32>
    %68 = arith.mulf %63, %67 : vector<4x16x16xf32>
    "tpu.trace_start"() <{level = 10 : i32, message = "wqk,wkd->wqd"}> : () -> ()
    %cst_39 = arith.constant dense<0.000000e+00> : vector<4x16x8xf32>
    %69 = tpu.matmul %68, %48, %cst_39 {dimension_numbers = #tpu.dot_dimension_numbers<[2], [1], [1], [2], [0, 0, 0, 1, 1, 2], [0], [0]>} : vector<4x16x16xf32>, vector<4x16x8xf32>, vector<4x16x8xf32> -> vector<4x16x8xf32>
    "tpu.trace_stop"() : () -> ()
    %70 = vector.shape_cast %69 : vector<4x16x8xf32> to vector<64x8xf32>
    %c8 = arith.constant 8 : index
    %c0_40 = arith.constant 0 : index
    %71 = vector.load %arg7[%c8, %c0_40] : memref<32x32xf32, #tpu.memory_space<vmem>>, vector<8x32xf32>
    %cst_41 = arith.constant dense<0.000000e+00> : vector<64x32xf32>
    %72 = tpu.matmul %70, %71, %cst_41 {dimension_numbers = #tpu.dot_dimension_numbers<[1], [0], [0], [1], [0, 0, 1, 1], [], []>} : vector<64x8xf32>, vector<8x32xf32>, vector<64x32xf32> -> vector<64x32xf32>
    %73 = arith.addf %45, %72 : vector<64x32xf32>
    %74 = vector.extract_strided_slice %14 {offsets = [0, 0, 16], sizes = [4, 16, 8], strides = [1, 1, 1]} : vector<4x16x32xf32> to vector<4x16x8xf32>
    %75 = vector.extract_strided_slice %15 {offsets = [0, 0, 16], sizes = [4, 16, 8], strides = [1, 1, 1]} : vector<4x16x64xf32> to vector<4x16x8xf32>
    %76 = vector.extract_strided_slice %15 {offsets = [0, 0, 48], sizes = [4, 16, 8], strides = [1, 1, 1]} : vector<4x16x64xf32> to vector<4x16x8xf32>
    "tpu.trace_start"() <{level = 10 : i32, message = "wqd,wkd->wqk"}> : () -> ()
    %cst_42 = arith.constant dense<0.000000e+00> : vector<4x16x16xf32>
    %77 = tpu.matmul %74, %75, %cst_42 {dimension_numbers = #tpu.dot_dimension_numbers<[2], [2], [1], [1], [0, 0, 0, 1, 1, 1], [0], [0]>} : vector<4x16x8xf32>, vector<4x16x8xf32>, vector<4x16x16xf32> -> vector<4x16x16xf32>
    "tpu.trace_stop"() : () -> ()
    %c2 = arith.constant 2 : index
    %c0_43 = arith.constant 0 : index
    %c0_44 = arith.constant 0 : index
    %78 = vector.load %arg9[%c2, %c0_43, %c0_44] : memref<4x16x16xf32, #tpu.memory_space<vmem>>, vector<1x16x16xf32>
    %79 = vector.shape_cast %78 : vector<1x16x16xf32> to vector<16x16xf32>
    %80 = vector.shape_cast %79 : vector<16x16xf32> to vector<1x16x16xf32>
    %81 = vector.broadcast %80 : vector<1x16x16xf32> to vector<4x16x16xf32>
    %82 = arith.addf %77, %81 : vector<4x16x16xf32>
    %c2_45 = arith.constant 2 : index
    %c0_46 = arith.constant 0 : index
    %c0_47 = arith.constant 0 : index
    %c0_48 = arith.constant 0 : index
    %83 = vector.load %arg10[%c2_45, %c0_46, %c0_47, %c0_48] : memref<4x4x16x16xbf16, #tpu.memory_space<vmem>>, vector<1x4x16x16xbf16>
    %84 = vector.shape_cast %83 : vector<1x4x16x16xbf16> to vector<4x16x16xbf16>
    %85 = arith.extf %84 : vector<4x16x16xbf16> to vector<4x16x16xf32>
    %86 = arith.addf %82, %85 : vector<4x16x16xf32>
    %cst_49 = arith.constant dense<0xFF800000> : vector<4x16xf32>
    %87 = vector.multi_reduction <maximumf>, %86, %cst_49 [2] : vector<4x16x16xf32> to vector<4x16xf32>
    %88 = vector.shape_cast %87 : vector<4x16xf32> to vector<4x16x1xf32>
    %89 = vector.broadcast %88 : vector<4x16x1xf32> to vector<4x16x16xf32>
    %90 = arith.subf %86, %89 : vector<4x16x16xf32>
    %91 = math.exp %90 : vector<4x16x16xf32>
    %cst_50 = arith.constant dense<0.000000e+00> : vector<4x16xf32>
    %92 = vector.multi_reduction <add>, %91, %cst_50 [2] : vector<4x16x16xf32> to vector<4x16xf32>
    %93 = vector.shape_cast %92 : vector<4x16xf32> to vector<4x16x1xf32>
    %94 = tpu.reciprocal %93 {approx = true} : vector<4x16x1xf32> -> vector<4x16x1xf32>
    %95 = vector.broadcast %94 : vector<4x16x1xf32> to vector<4x16x16xf32>
    %96 = arith.mulf %91, %95 : vector<4x16x16xf32>
    "tpu.trace_start"() <{level = 10 : i32, message = "wqk,wkd->wqd"}> : () -> ()
    %cst_51 = arith.constant dense<0.000000e+00> : vector<4x16x8xf32>
    %97 = tpu.matmul %96, %76, %cst_51 {dimension_numbers = #tpu.dot_dimension_numbers<[2], [1], [1], [2], [0, 0, 0, 1, 1, 2], [0], [0]>} : vector<4x16x16xf32>, vector<4x16x8xf32>, vector<4x16x8xf32> -> vector<4x16x8xf32>
    "tpu.trace_stop"() : () -> ()
    %98 = vector.shape_cast %97 : vector<4x16x8xf32> to vector<64x8xf32>
    %c16 = arith.constant 16 : index
    %c0_52 = arith.constant 0 : index
    %99 = vector.load %arg7[%c16, %c0_52] : memref<32x32xf32, #tpu.memory_space<vmem>>, vector<8x32xf32>
    %cst_53 = arith.constant dense<0.000000e+00> : vector<64x32xf32>
    %100 = tpu.matmul %98, %99, %cst_53 {dimension_numbers = #tpu.dot_dimension_numbers<[1], [0], [0], [1], [0, 0, 1, 1], [], []>} : vector<64x8xf32>, vector<8x32xf32>, vector<64x32xf32> -> vector<64x32xf32>
    %101 = arith.addf %73, %100 : vector<64x32xf32>
    %102 = vector.extract_strided_slice %14 {offsets = [0, 0, 24], sizes = [4, 16, 8], strides = [1, 1, 1]} : vector<4x16x32xf32> to vector<4x16x8xf32>
    %103 = vector.extract_strided_slice %15 {offsets = [0, 0, 24], sizes = [4, 16, 8], strides = [1, 1, 1]} : vector<4x16x64xf32> to vector<4x16x8xf32>
    %104 = vector.extract_strided_slice %15 {offsets = [0, 0, 56], sizes = [4, 16, 8], strides = [1, 1, 1]} : vector<4x16x64xf32> to vector<4x16x8xf32>
    "tpu.trace_start"() <{level = 10 : i32, message = "wqd,wkd->wqk"}> : () -> ()
    %cst_54 = arith.constant dense<0.000000e+00> : vector<4x16x16xf32>
    %105 = tpu.matmul %102, %103, %cst_54 {dimension_numbers = #tpu.dot_dimension_numbers<[2], [2], [1], [1], [0, 0, 0, 1, 1, 1], [0], [0]>} : vector<4x16x8xf32>, vector<4x16x8xf32>, vector<4x16x16xf32> -> vector<4x16x16xf32>
    "tpu.trace_stop"() : () -> ()
    %c3 = arith.constant 3 : index
    %c0_55 = arith.constant 0 : index
    %c0_56 = arith.constant 0 : index
    %106 = vector.load %arg9[%c3, %c0_55, %c0_56] : memref<4x16x16xf32, #tpu.memory_space<vmem>>, vector<1x16x16xf32>
    %107 = vector.shape_cast %106 : vector<1x16x16xf32> to vector<16x16xf32>
    %108 = vector.shape_cast %107 : vector<16x16xf32> to vector<1x16x16xf32>
    %109 = vector.broadcast %108 : vector<1x16x16xf32> to vector<4x16x16xf32>
    %110 = arith.addf %105, %109 : vector<4x16x16xf32>
    %c3_57 = arith.constant 3 : index
    %c0_58 = arith.constant 0 : index
    %c0_59 = arith.constant 0 : index
    %c0_60 = arith.constant 0 : index
    %111 = vector.load %arg10[%c3_57, %c0_58, %c0_59, %c0_60] : memref<4x4x16x16xbf16, #tpu.memory_space<vmem>>, vector<1x4x16x16xbf16>
    %112 = vector.shape_cast %111 : vector<1x4x16x16xbf16> to vector<4x16x16xbf16>
    %113 = arith.extf %112 : vector<4x16x16xbf16> to vector<4x16x16xf32>
    %114 = arith.addf %110, %113 : vector<4x16x16xf32>
    %cst_61 = arith.constant dense<0xFF800000> : vector<4x16xf32>
    %115 = vector.multi_reduction <maximumf>, %114, %cst_61 [2] : vector<4x16x16xf32> to vector<4x16xf32>
    %116 = vector.shape_cast %115 : vector<4x16xf32> to vector<4x16x1xf32>
    %117 = vector.broadcast %116 : vector<4x16x1xf32> to vector<4x16x16xf32>
    %118 = arith.subf %114, %117 : vector<4x16x16xf32>
    %119 = math.exp %118 : vector<4x16x16xf32>
    %cst_62 = arith.constant dense<0.000000e+00> : vector<4x16xf32>
    %120 = vector.multi_reduction <add>, %119, %cst_62 [2] : vector<4x16x16xf32> to vector<4x16xf32>
    %121 = vector.shape_cast %120 : vector<4x16xf32> to vector<4x16x1xf32>
    %122 = tpu.reciprocal %121 {approx = true} : vector<4x16x1xf32> -> vector<4x16x1xf32>
    %123 = vector.broadcast %122 : vector<4x16x1xf32> to vector<4x16x16xf32>
    %124 = arith.mulf %119, %123 : vector<4x16x16xf32>
    "tpu.trace_start"() <{level = 10 : i32, message = "wqk,wkd->wqd"}> : () -> ()
    %cst_63 = arith.constant dense<0.000000e+00> : vector<4x16x8xf32>
    %125 = tpu.matmul %124, %104, %cst_63 {dimension_numbers = #tpu.dot_dimension_numbers<[2], [1], [1], [2], [0, 0, 0, 1, 1, 2], [0], [0]>} : vector<4x16x16xf32>, vector<4x16x8xf32>, vector<4x16x8xf32> -> vector<4x16x8xf32>
    "tpu.trace_stop"() : () -> ()
    %126 = vector.shape_cast %125 : vector<4x16x8xf32> to vector<64x8xf32>
    %c24 = arith.constant 24 : index
    %c0_64 = arith.constant 0 : index
    %127 = vector.load %arg7[%c24, %c0_64] : memref<32x32xf32, #tpu.memory_space<vmem>>, vector<8x32xf32>
    %cst_65 = arith.constant dense<0.000000e+00> : vector<64x32xf32>
    %128 = tpu.matmul %126, %127, %cst_65 {dimension_numbers = #tpu.dot_dimension_numbers<[1], [0], [0], [1], [0, 0, 1, 1], [], []>} : vector<64x8xf32>, vector<8x32xf32>, vector<64x32xf32> -> vector<64x32xf32>
    %129 = arith.addf %101, %128 : vector<64x32xf32>
    %c0_66 = arith.constant 0 : index
    %c0_67 = arith.constant 0 : index
    %c0_68 = arith.constant 0 : index
    %130 = vector.load %arg11[%c0_66, %c0_67, %c0_68] : memref<1x64x32xf32, #tpu.memory_space<vmem>>, vector<1x64x32xf32>
    %131 = vector.shape_cast %130 : vector<1x64x32xf32> to vector<64x32xf32>
    %132 = vector.shape_cast %129 : vector<64x32xf32> to vector<1x64x32xf32>
    tpu.vector_store %arg11[%c0_66, %c0_67, %c0_68], %132 {strides = array<i32>} : memref<1x64x32xf32, #tpu.memory_space<vmem>>, vector<1x64x32xf32>,
    return
  }
  func.func @transform_0(%arg0: i32) -> (i32, i32, i32) {
    %c0_i32 = arith.constant 0 : i32
    %c0_i32_0 = arith.constant 0 : i32
    %c0_i32_1 = arith.constant 0 : i32
    return %arg0, %c0_i32, %c0_i32_0 : i32, i32, i32
  }
  func.func @transform_1(%arg0: i32) -> (i32, i32, i32) {
    %c0_i32 = arith.constant 0 : i32
    %c0_i32_0 = arith.constant 0 : i32
    %c0_i32_1 = arith.constant 0 : i32
    return %arg0, %c0_i32, %c0_i32_0 : i32, i32, i32
  }
  func.func @transform_2(%arg0: i32) -> (i32, i32) {
    %c0_i32 = arith.constant 0 : i32
    %c0_i32_0 = arith.constant 0 : i32
    %c0_i32_1 = arith.constant 0 : i32
    return %c0_i32, %c0_i32_0 : i32, i32
  }
  func.func @transform_3(%arg0: i32) -> (i32, i32) {
    %c0_i32 = arith.constant 0 : i32
    %c0_i32_0 = arith.constant 0 : i32
    %c0_i32_1 = arith.constant 0 : i32
    return %c0_i32, %c0_i32_0 : i32, i32
  }
  func.func @transform_4(%arg0: i32) -> (i32, i32) {
    %c0_i32 = arith.constant 0 : i32
    %c0_i32_0 = arith.constant 0 : i32
    %c0_i32_1 = arith.constant 0 : i32
    return %c0_i32, %c0_i32_0 : i32, i32
  }
  func.func @transform_5(%arg0: i32) -> (i32, i32) {
    %c0_i32 = arith.constant 0 : i32
    %c0_i32_0 = arith.constant 0 : i32
    %c0_i32_1 = arith.constant 0 : i32
    return %c0_i32, %c0_i32_0 : i32, i32
  }
  func.func @transform_6(%arg0: i32) -> (i32, i32) {
    %c0_i32 = arith.constant 0 : i32
    %c0_i32_0 = arith.constant 0 : i32
    %c0_i32_1 = arith.constant 0 : i32
    return %c0_i32, %c0_i32_0 : i32, i32
  }
  func.func @transform_7(%arg0: i32) -> (i32, i32) {
    %c0_i32 = arith.constant 0 : i32
    %c0_i32_0 = arith.constant 0 : i32
    %c0_i32_1 = arith.constant 0 : i32
    return %c0_i32, %c0_i32_0 : i32, i32
  }
  func.func @transform_8(%arg0: i32) -> (i32, i32, i32) {
    %c0_i32 = arith.constant 0 : i32
    %c0_i32_0 = arith.constant 0 : i32
    %c0_i32_1 = arith.constant 0 : i32
    %c0_i32_2 = arith.constant 0 : i32
    return %c0_i32, %c0_i32_0, %c0_i32_1 : i32, i32, i32
  }
  func.func @transform_9(%arg0: i32) -> (i32, i32, i32, i32) {
    %c0_i32 = arith.constant 0 : i32
    %c0_i32_0 = arith.constant 0 : i32
    %c0_i32_1 = arith.constant 0 : i32
    %c0_i32_2 = arith.constant 0 : i32
    %c0_i32_3 = arith.constant 0 : i32
    return %c0_i32, %c0_i32_0, %c0_i32_1, %c0_i32_2 : i32, i32, i32, i32
  }
  func.func @transform_10(%arg0: i32) -> (i32, i32, i32) {
    %c0_i32 = arith.constant 0 : i32
    %c0_i32_0 = arith.constant 0 : i32
    %c0_i32_1 = arith.constant 0 : i32
    return %arg0, %c0_i32, %c0_i32_0 : i32, i32, i32
  }
}

</mosaic_0001>

<llo_original>
// kernel: mha_forward.1
$region0: #{mha_forward.1}
  #allocation0 [shape = 'u32[]', space=smem, size = 0x4, offset = 0x4, fixed_abs, tag = 'smem constant byte address 0x4 - core index']
  #allocation1 [shape = 'u32[144,128]{1,0:T(1,128)}', space=vmem, size = 0x12000, scoped, tag = 'internal scratch']
  %s0 = inlined_call_operand.vmem [shape: f32[2,64,32], index: 0, kind: input, shape index: {}]
  %s1 = inlined_call_operand.vmem [shape: f32[2,64,32], index: 1, kind: input, shape index: {}]
  %s2 = inlined_call_operand.vmem [shape: f32[32,32], index: 2, kind: input, shape index: {}]
  %s3 = inlined_call_operand.vmem [shape: f32[1,32], index: 3, kind: input, shape index: {}]
  %s4 = inlined_call_operand.vmem [shape: f32[32,64], index: 4, kind: input, shape index: {}]
  %s5 = inlined_call_operand.vmem [shape: f32[1,64], index: 5, kind: input, shape index: {}]
  %s6 = inlined_call_operand.vmem [shape: f32[32,32], index: 6, kind: input, shape index: {}]
  %s7 = inlined_call_operand.vmem [shape: f32[1,32], index: 7, kind: input, shape index: {}]
  %s8 = inlined_call_operand.vmem [shape: f32[4,16,16], index: 8, kind: input, shape index: {}]
  %s9 = inlined_call_operand.vmem [shape: bf16[4,4,16,16], index: 9, kind: input, shape index: {}]
  %s10 = inlined_call_operand.vmem [shape: f32[2,64,32], index: 10, kind: output, shape index: {}]
  %s11 = sld [smem:[#allocation0]]
  $region73: #{mha_forward.1} parent=0
    _
  %s13 = ssub.s32 1, %s11
  %s14 = scalar_select 0, %s13, %s11
  loop: start=0, step=1, limit=4
  $region2: #{mha_forward.1} parent=0 // loop_pre_header
    _
  $region3: #{mha_forward.1} parent=0 // loop_header
    %s16 = sphi 0, %s20
    %p17 = scmp.ge.s32.totalorder %s16, 4
    %s26 = sphi 0, %s28
    %s29 = sphi 0, %s26
    %s30 = sphi 0, %s29
    %s46 = sphi 0, %s30
    %s52 = sphi 0, %s54
    %s55 = sphi 0, %s52
    %s56 = sphi 0, %s55
    %s72 = sphi 0, %s56
    %s76 = sphi 0, %s76
    %s78 = sphi 0, %s76
    %s79 = sphi 0, %s78
    %s93 = sphi 0, %s79
    %s97 = sphi 0, %s97
    %s99 = sphi 0, %s97
    %s100 = sphi 0, %s99
    %s114 = sphi 0, %s100
    %s118 = sphi 0, %s118
    %s120 = sphi 0, %s118
    %s121 = sphi 0, %s120
    %s135 = sphi 0, %s121
    %s139 = sphi 0, %s139
    %s141 = sphi 0, %s139
    %s142 = sphi 0, %s141
    %s156 = sphi 0, %s142
    %s160 = sphi 0, %s160
    %s162 = sphi 0, %s160
    %s163 = sphi 0, %s162
    %s177 = sphi 0, %s163
    %s181 = sphi 0, %s181
    %s183 = sphi 0, %s181
    %s184 = sphi 0, %s183
    %s198 = sphi 0, %s184
    %s202 = sphi 0, %s202
    %s204 = sphi 0, %s202
    %s205 = sphi 0, %s204
    %s219 = sphi 0, %s205
    %s223 = sphi 0, %s223
    %s225 = sphi 0, %s223
    %s226 = sphi 0, %s225
    %s240 = sphi 0, %s226
    %s246 = sphi 0, %s248
    %s249 = sphi 0, %s246
    %s250 = sphi 0, %s249
    %s266 = sphi 0, %s250
  $region4: #{mha_forward.1} parent=0 // loop_header_branch
    %19 = sbr.rel (%p17) target = $region8
  $region5: #{mha_forward.1} parent=0 // loop_body
    %s21 = ssub.s32 %s16, 1
    %s22 = ssub.s32 %s16, 2
    %s23 = sadd.s32 %s16, 1
    %s24 = ssub.s32 %s16, %s23
    %p25 = scmp.eq.s32.totalorder %s24, 0
    %s27 = sadd.s32 %s26, 1
    %s28 = scalar_select %p25, %s26, %s27
    %p31 = pneg %p25
    %p32 = scmp.eq.s32.totalorder %s16, 1
    %p33 = por %p31, %p32
    %p34 = scmp.ne.s32.totalorder %s26, %s29
    %p35 = scmp.eq.s32.totalorder %s16, 0
    %p36 = por %p34, %p35
    %p37 = scmp.ne.s32.totalorder %s26, %s29
    %p38 = scmp.eq.s32.totalorder %s21, 1
    %p39 = por %p37, %p38
    %p40 = scmp.ne.s32.totalorder %s29, %s30
    %p41 = scmp.eq.s32.totalorder %s21, 0
    %p42 = por %p40, %p41
    %p43 = scmp.ne.s32.totalorder %s29, %s30
    %p44 = scmp.eq.s32.totalorder %s22, 1
    %p45 = por %p43, %p44
    %p47 = scmp.ne.s32.totalorder %s30, %s46
    %p48 = scmp.eq.s32.totalorder %s22, 0
    %p49 = por %p47, %p48
    %s50 = ssub.s32 %s16, %s23
    %p51 = scmp.eq.s32.totalorder %s50, 0
    %s53 = sadd.s32 %s52, 1
    %s54 = scalar_select %p51, %s52, %s53
    %p57 = pneg %p51
    %p58 = scmp.eq.s32.totalorder %s16, 1
    %p59 = por %p57, %p58
    %p60 = scmp.ne.s32.totalorder %s52, %s55
    %p61 = scmp.eq.s32.totalorder %s16, 0
    %p62 = por %p60, %p61
    %p63 = scmp.ne.s32.totalorder %s52, %s55
    %p64 = scmp.eq.s32.totalorder %s21, 1
    %p65 = por %p63, %p64
    %p66 = scmp.ne.s32.totalorder %s55, %s56
    %p67 = scmp.eq.s32.totalorder %s21, 0
    %p68 = por %p66, %p67
    %p69 = scmp.ne.s32.totalorder %s55, %s56
    %p70 = scmp.eq.s32.totalorder %s22, 1
    %p71 = por %p69, %p70
    %p73 = scmp.ne.s32.totalorder %s56, %s72
    %p74 = scmp.eq.s32.totalorder %s22, 0
    %p75 = por %p73, %p74
    %s77 = sadd.s32 %s76, 1
    %p80 = scmp.eq.s32.totalorder %s16, 1
    %p81 = scmp.ne.s32.totalorder %s76, %s78
    %p82 = scmp.eq.s32.totalorder %s16, 0
    %p83 = por %p81, %p82
    %p84 = scmp.ne.s32.totalorder %s76, %s78
    %p85 = scmp.eq.s32.totalorder %s21, 1
    %p86 = por %p84, %p85
    %p87 = scmp.ne.s32.totalorder %s78, %s79
    %p88 = scmp.eq.s32.totalorder %s21, 0
    %p89 = por %p87, %p88
    %p90 = scmp.ne.s32.totalorder %s78, %s79
    %p91 = scmp.eq.s32.totalorder %s22, 1
    %p92 = por %p90, %p91
    %p94 = scmp.ne.s32.totalorder %s79, %s93
    %p95 = scmp.eq.s32.totalorder %s22, 0
    %p96 = por %p94, %p95
    %s98 = sadd.s32 %s97, 1
    %p101 = scmp.eq.s32.totalorder %s16, 1
    %p102 = scmp.ne.s32.totalorder %s97, %s99
    %p103 = scmp.eq.s32.totalorder %s16, 0
    %p104 = por %p102, %p103
    %p105 = scmp.ne.s32.totalorder %s97, %s99
    %p106 = scmp.eq.s32.totalorder %s21, 1
    %p107 = por %p105, %p106
    %p108 = scmp.ne.s32.totalorder %s99, %s100
    %p109 = scmp.eq.s32.totalorder %s21, 0
    %p110 = por %p108, %p109
    %p111 = scmp.ne.s32.totalorder %s99, %s100
    %p112 = scmp.eq.s32.totalorder %s22, 1
    %p113 = por %p111, %p112
    %p115 = scmp.ne.s32.totalorder %s100, %s114
    %p116 = scmp.eq.s32.totalorder %s22, 0
    %p117 = por %p115, %p116
    %s119 = sadd.s32 %s118, 1
    %p122 = scmp.eq.s32.totalorder %s16, 1
    %p123 = scmp.ne.s32.totalorder %s118, %s120
    %p124 = scmp.eq.s32.totalorder %s16, 0
    %p125 = por %p123, %p124
    %p126 = scmp.ne.s32.totalorder %s118, %s120
    %p127 = scmp.eq.s32.totalorder %s21, 1
    %p128 = por %p126, %p127
    %p129 = scmp.ne.s32.totalorder %s120, %s121
    %p130 = scmp.eq.s32.totalorder %s21, 0
    %p131 = por %p129, %p130
    %p132 = scmp.ne.s32.totalorder %s120, %s121
    %p133 = scmp.eq.s32.totalorder %s22, 1
    %p134 = por %p132, %p133
    %p136 = scmp.ne.s32.totalorder %s121, %s135
    %p137 = scmp.eq.s32.totalorder %s22, 0
    %p138 = por %p136, %p137
    %s140 = sadd.s32 %s139, 1
    %p143 = scmp.eq.s32.totalorder %s16, 1
    %p144 = scmp.ne.s32.totalorder %s139, %s141
    %p145 = scmp.eq.s32.totalorder %s16, 0
    %p146 = por %p144, %p145
    %p147 = scmp.ne.s32.totalorder %s139, %s141
    %p148 = scmp.eq.s32.totalorder %s21, 1
    %p149 = por %p147, %p148
    %p150 = scmp.ne.s32.totalorder %s141, %s142
    %p151 = scmp.eq.s32.totalorder %s21, 0
    %p152 = por %p150, %p151
    %p153 = scmp.ne.s32.totalorder %s141, %s142
    %p154 = scmp.eq.s32.totalorder %s22, 1
    %p155 = por %p153, %p154
    %p157 = scmp.ne.s32.totalorder %s142, %s156
    %p158 = scmp.eq.s32.totalorder %s22, 0
    %p159 = por %p157, %p158
    %s161 = sadd.s32 %s160, 1
    %p164 = scmp.eq.s32.totalorder %s16, 1
    %p165 = scmp.ne.s32.totalorder %s160, %s162
    %p166 = scmp.eq.s32.totalorder %s16, 0
    %p167 = por %p165, %p166
    %p168 = scmp.ne.s32.totalorder %s160, %s162
    %p169 = scmp.eq.s32.totalorder %s21, 1
    %p170 = por %p168, %p169
    %p171 = scmp.ne.s32.totalorder %s162, %s163
    %p172 = scmp.eq.s32.totalorder %s21, 0
    %p173 = por %p171, %p172
    %p174 = scmp.ne.s32.totalorder %s162, %s163
    %p175 = scmp.eq.s32.totalorder %s22, 1
    %p176 = por %p174, %p175
    %p178 = scmp.ne.s32.totalorder %s163, %s177
    %p179 = scmp.eq.s32.totalorder %s22, 0
    %p180 = por %p178, %p179
    %s182 = sadd.s32 %s181, 1
    %p185 = scmp.eq.s32.totalorder %s16, 1
    %p186 = scmp.ne.s32.totalorder %s181, %s183
    %p187 = scmp.eq.s32.totalorder %s16, 0
    %p188 = por %p186, %p187
    %p189 = scmp.ne.s32.totalorder %s181, %s183
    %p190 = scmp.eq.s32.totalorder %s21, 1
    %p191 = por %p189, %p190
    %p192 = scmp.ne.s32.totalorder %s183, %s184
    %p193 = scmp.eq.s32.totalorder %s21, 0
    %p194 = por %p192, %p193
    %p195 = scmp.ne.s32.totalorder %s183, %s184
    %p196 = scmp.eq.s32.totalorder %s22, 1
    %p197 = por %p195, %p196
    %p199 = scmp.ne.s32.totalorder %s184, %s198
    %p200 = scmp.eq.s32.totalorder %s22, 0
    %p201 = por %p199, %p200
    %s203 = sadd.s32 %s202, 1
    %p206 = scmp.eq.s32.totalorder %s16, 1
    %p207 = scmp.ne.s32.totalorder %s202, %s204
    %p208 = scmp.eq.s32.totalorder %s16, 0
    %p209 = por %p207, %p208
    %p210 = scmp.ne.s32.totalorder %s202, %s204
    %p211 = scmp.eq.s32.totalorder %s21, 1
    %p212 = por %p210, %p211
    %p213 = scmp.ne.s32.totalorder %s204, %s205
    %p214 = scmp.eq.s32.totalorder %s21, 0
    %p215 = por %p213, %p214
    %p216 = scmp.ne.s32.totalorder %s204, %s205
    %p217 = scmp.eq.s32.totalorder %s22, 1
    %p218 = por %p216, %p217
    %p220 = scmp.ne.s32.totalorder %s205, %s219
    %p221 = scmp.eq.s32.totalorder %s22, 0
    %p222 = por %p220, %p221
    %s224 = sadd.s32 %s223, 1
    %p227 = scmp.eq.s32.totalorder %s16, 1
    %p228 = scmp.ne.s32.totalorder %s223, %s225
    %p229 = scmp.eq.s32.totalorder %s16, 0
    %p230 = por %p228, %p229
    %p231 = scmp.ne.s32.totalorder %s223, %s225
    %p232 = scmp.eq.s32.totalorder %s21, 1
    %p233 = por %p231, %p232
    %p234 = scmp.ne.s32.totalorder %s225, %s226
    %p235 = scmp.eq.s32.totalorder %s21, 0
    %p236 = por %p234, %p235
    %p237 = scmp.ne.s32.totalorder %s225, %s226
    %p238 = scmp.eq.s32.totalorder %s22, 1
    %p239 = por %p237, %p238
    %p241 = scmp.ne.s32.totalorder %s226, %s240
    %p242 = scmp.eq.s32.totalorder %s22, 0
    %p243 = por %p241, %p242
    %s244 = ssub.s32 %s16, %s23
    %p245 = scmp.eq.s32.totalorder %s244, 0
    %s247 = sadd.s32 %s246, 1
    %s248 = scalar_select %p245, %s246, %s247
    %p251 = pneg %p245
    %p252 = scmp.eq.s32.totalorder %s16, 1
    %p253 = por %p251, %p252
    %p254 = scmp.ne.s32.totalorder %s246, %s249
    %p255 = scmp.eq.s32.totalorder %s16, 0
    %p256 = por %p254, %p255
    %p257 = scmp.ne.s32.totalorder %s246, %s249
    %p258 = scmp.eq.s32.totalorder %s21, 1
    %p259 = por %p257, %p258
    %p260 = scmp.ne.s32.totalorder %s249, %s250
    %p261 = scmp.eq.s32.totalorder %s21, 0
    %p262 = por %p260, %p261
    %p263 = scmp.ne.s32.totalorder %s249, %s250
    %p264 = scmp.eq.s32.totalorder %s22, 1
    %p265 = por %p263, %p264
    %p267 = scmp.ne.s32.totalorder %s250, %s266
    %p268 = scmp.eq.s32.totalorder %s22, 0
    %p269 = por %p267, %p268
    %p270 = scmp.le.s32.totalorder 1, %s16
    %p271 = scmp.lt.s32.totalorder %s16, 3
    %p272 = pnand %p270, %p271
    %p273 = pneg %p272
    // Predicated region
    $region9: #{mha_forward.1} parent=5 // pred_check
      _
    $region10: #{mha_forward.1} parent=5 // pred_check_branch
      %275 = sbr.rel (%p272) target = $region12
    $region11: #{mha_forward.1} parent=5 // pred_region
      %s276 = ssub.s32 %s16, 1
      // Predicated region
      $region13: #{mha_forward.1} parent=11 // pred_check
        %p277 = pneg %p89
      $region14: #{mha_forward.1} parent=11 // pred_check_branch
        %279 = sbr.rel (%p277) target = $region16
      $region15: #{mha_forward.1} parent=11 // pred_region
        _
      $region16: #{mha_forward.1} parent=11 // pred_fallthru
        _
      // Predicated region
      $region17: #{mha_forward.1} parent=11 // pred_check
        %p280 = pneg %p110
      $region18: #{mha_forward.1} parent=11 // pred_check_branch
        %282 = sbr.rel (%p280) target = $region20
      $region19: #{mha_forward.1} parent=11 // pred_region
        _
      $region20: #{mha_forward.1} parent=11 // pred_fallthru
        _
      // Predicated region
      $region21: #{mha_forward.1} parent=11 // pred_check
        %p283 = pneg %p131
      $region22: #{mha_forward.1} parent=11 // pred_check_branch
        %285 = sbr.rel (%p283) target = $region24
      $region23: #{mha_forward.1} parent=11 // pred_region
        _
      $region24: #{mha_forward.1} parent=11 // pred_fallthru
        _
      // Predicated region
      $region25: #{mha_forward.1} parent=11 // pred_check
        %p286 = pneg %p152
      $region26: #{mha_forward.1} parent=11 // pred_check_branch
        %288 = sbr.rel (%p286) target = $region28
      $region27: #{mha_forward.1} parent=11 // pred_region
        _
      $region28: #{mha_forward.1} parent=11 // pred_fallthru
        _
      // Predicated region
      $region29: #{mha_forward.1} parent=11 // pred_check
        %p289 = pneg %p173
      $region30: #{mha_forward.1} parent=11 // pred_check_branch
        %291 = sbr.rel (%p289) target = $region32
      $region31: #{mha_forward.1} parent=11 // pred_region
        _
      $region32: #{mha_forward.1} parent=11 // pred_fallthru
        _
      // Predicated region
      $region33: #{mha_forward.1} parent=11 // pred_check
        %p292 = pneg %p194
      $region34: #{mha_forward.1} parent=11 // pred_check_branch
        %294 = sbr.rel (%p292) target = $region36
      $region35: #{mha_forward.1} parent=11 // pred_region
        _
      $region36: #{mha_forward.1} parent=11 // pred_fallthru
        _
      // Predicated region
      $region37: #{mha_forward.1} parent=11 // pred_check
        %p295 = pneg %p215
      $region38: #{mha_forward.1} parent=11 // pred_check_branch
        %297 = sbr.rel (%p295) target = $region40
      $region39: #{mha_forward.1} parent=11 // pred_region
        _
      $region40: #{mha_forward.1} parent=11 // pred_fallthru
        _
      // Predicated region
      $region41: #{mha_forward.1} parent=11 // pred_check
        %p298 = pneg %p236
      $region42: #{mha_forward.1} parent=11 // pred_check_branch
        %300 = sbr.rel (%p298) target = $region44
      $region43: #{mha_forward.1} parent=11 // pred_region
        _
      $region44: #{mha_forward.1} parent=11 // pred_fallthru
        _
    $region12: #{mha_forward.1} parent=5 // pred_fallthru
      _
    %p301 = scmp.lt.s32.totalorder %s16, 2
    // Predicated region
    $region45: #{mha_forward.1} parent=5 // pred_check
      %p302 = pneg %p301
    $region46: #{mha_forward.1} parent=5 // pred_check_branch
      %304 = sbr.rel (%p302) target = $region48
    $region47: #{mha_forward.1} parent=5 // pred_region
      // Predicated region
      $region49: #{mha_forward.1} parent=47 // pred_check
        %p305 = pneg %p36
      $region50: #{mha_forward.1} parent=47 // pred_check_branch
        %307 = sbr.rel (%p305) target = $region52
      $region51: #{mha_forward.1} parent=47 // pred_region
        %p308 = scmp.lt.s32.totalorder %s16, 1
        %s309 = scalar_select %p308, %s16, 1
        %s310 = smul.addr %s309, 8
        %s311 = smul.addr %s310, 8
        %s312 = scalar_lea.vmem %s0, %s311
      $region52: #{mha_forward.1} parent=47 // pred_fallthru
        _
      // Predicated region
      $region53: #{mha_forward.1} parent=47 // pred_check
        %p313 = pneg %p62
      $region54: #{mha_forward.1} parent=47 // pred_check_branch
        %315 = sbr.rel (%p313) target = $region56
      $region55: #{mha_forward.1} parent=47 // pred_region
        %p316 = scmp.lt.s32.totalorder %s16, 1
        %s317 = scalar_select %p316, %s16, 1
        %s318 = smul.addr %s317, 8
        %s319 = smul.addr %s318, 8
        %s320 = scalar_lea.vmem %s1, %s319
      $region56: #{mha_forward.1} parent=47 // pred_fallthru
        _
    $region48: #{mha_forward.1} parent=5 // pred_fallthru
      _
    %p321 = scmp.le.s32.totalorder 1, %s16
    %p322 = scmp.lt.s32.totalorder %s16, 3
    %p323 = pnand %p321, %p322
    %p324 = pneg %p323
    // Predicated region
    $region57: #{mha_forward.1} parent=5 // pred_check
      _
    $region58: #{mha_forward.1} parent=5 // pred_check_branch
      %326 = sbr.rel (%p323) target = $region60
    $region59: #{mha_forward.1} parent=5 // pred_region
      %s327 = ssub.s32 %s16, 1
      %p328 = scmp.lt.s32.totalorder %s21, 1
      %s329 = scalar_select %p328, %s21, 1
      %s330 = smul.addr %s329, 8
      %s331 = smul.addr %s330, 8
      %s332 = scalar_lea.vmem %s0, %s331
      %p333 = pneg %p42
      %p334 = pneg %p39
      %p335 = scmp.lt.s32.totalorder %s21, 1
      %s336 = scalar_select %p335, %s21, 1
      %s337 = smul.addr %s336, 8
      %s338 = smul.addr %s337, 8
      %s339 = scalar_lea.vmem %s1, %s338
      %p340 = pneg %p68
      %p341 = pneg %p65
      %p342 = pneg %p89
      %p343 = pneg %p86
      %p344 = pneg %p110
      %p345 = pneg %p107
      %p346 = pneg %p131
      %p347 = pneg %p128
      %p348 = pneg %p152
      %p349 = pneg %p149
      %p350 = pneg %p173
      %p351 = pneg %p170
      %p352 = pneg %p194
      %p353 = pneg %p191
      %p354 = pneg %p215
      %p355 = pneg %p212
      %p356 = pneg %p236
      %p357 = pneg %p233
      %p358 = pneg %p262
      %p359 = pneg %p259
      %p360 = scmp.lt.s32.totalorder %s21, 1
      %s361 = scalar_select %p360, %s21, 1
      %s362 = smul.addr %s361, 8
      %s363 = smul.addr %s362, 8
      %s364 = scalar_lea.vmem %s10, %s363
      %p365 = scmp.lt.s32.totalorder %s21, 1
      %s366 = scalar_select %p365, %s21, 1
      %s367 = smul.addr %s366, 8
      %s368 = smul.addr %s367, 8
      %s369 = scalar_lea.vmem %s0, %s368
      %p370 = scmp.lt.s32.totalorder %s21, 1
      %s371 = scalar_select %p370, %s21, 1
      %s372 = smul.addr %s371, 8
      %s373 = smul.addr %s372, 8
      %s374 = scalar_lea.vmem %s1, %s373
      %p375 = scmp.lt.s32.totalorder %s21, 1
      %s376 = scalar_select %p375, %s21, 1
      %s377 = smul.addr %s376, 8
      %s378 = smul.addr %s377, 8
      %s379 = scalar_lea.vmem %s10, %s378
      %v380 = vld [vmem:[%s369] sm:$0xff]
      %v381 = vld [vmem:[%s369 + $0x8] sm:$0xff]
      %v382 = vld [vmem:[%s369 + $0x10] sm:$0xff]
      %v383 = vld [vmem:[%s369 + $0x18] sm:$0xff]
      %v384 = vld [vmem:[%s369 + $0x20] sm:$0xff]
      %v385 = vld [vmem:[%s369 + $0x28] sm:$0xff]
      %v386 = vld [vmem:[%s369 + $0x30] sm:$0xff]
      %v387 = vld [vmem:[%s369 + $0x38] sm:$0xff]
      %v388 = vld [vmem:[%s374] sm:$0xff]
      %v389 = vld [vmem:[%s374 + $0x8] sm:$0xff]
      %v390 = vld [vmem:[%s374 + $0x10] sm:$0xff]
      %v391 = vld [vmem:[%s374 + $0x18] sm:$0xff]
      %v392 = vld [vmem:[%s374 + $0x20] sm:$0xff]
      %v393 = vld [vmem:[%s374 + $0x28] sm:$0xff]
      %v394 = vld [vmem:[%s374 + $0x30] sm:$0xff]
      %v395 = vld [vmem:[%s374 + $0x38] sm:$0xff]
      %v396 = vld [vmem:[%s2] sm:$0xff]
      %v397 = vld [vmem:[%s2 + $0x8] sm:$0xff]
      %v398 = vld [vmem:[%s2 + $0x10] sm:$0xff]
      %v399 = vld [vmem:[%s2 + $0x18] sm:$0xff]
      %v400 = vld [vmem:[%s3] sm:$0x1]
      %v402 = vlaneseq
      %v403 = vshrl.u32 %v402, 7
      %v404 = vsub.s32 0, %v403
      %v405 = vrot.slane %v400, %v404
      %vm407 = vcmask 261120
      %v409 = vsel %vm407, %v380, 0
      %v412 = vsel %vm407, %v381, 0
      %v415 = vsel %vm407, %v382, 0
      %v418 = vsel %vm407, %v383, 0
      %v421 = vsel %vm407, %v384, 0
      %v424 = vsel %vm407, %v385, 0
      %v427 = vsel %vm407, %v386, 0
      %v430 = vsel %vm407, %v387, 0
      %432 = vmatprep.subr.mxu0 0.0
      %433 = vmatpush1.msra.mxu0 0.0
      %434 = vmatprep.subr.mxu0 0.0
      %435 = vmatpush1.msra.mxu0 0.0
      %436 = vmatprep.subr.mxu0 0.0
      %437 = vmatpush1.msra.mxu0 0.0
      %438 = vmatprep.subr.mxu0 0.0
      %439 = vmatpush1.msra.mxu0 0.0
      %440 = vmatprep.subr.mxu0 0.0
      %441 = vmatpush1.msra.mxu0 0.0
      %442 = vmatprep.subr.mxu0 0.0
      %443 = vmatpush1.msra.mxu0 0.0
      %444 = vmatprep.subr.mxu0 0.0
      %445 = vmatpush1.msra.mxu0 0.0
      %446 = vmatprep.subr.mxu0 0.0
      %447 = vmatpush1.msra.mxu0 0.0
      %448 = vmatprep.subr.mxu0 0.0
      %449 = vmatpush1.msra.mxu0 0.0
      %450 = vmatprep.subr.mxu0 0.0
      %451 = vmatpush1.msra.mxu0 0.0
      %452 = vmatprep.subr.mxu0 0.0
      %453 = vmatpush1.msra.mxu0 0.0
      %454 = vmatprep.subr.mxu0 0.0
      %455 = vmatpush1.msra.mxu0 0.0
      %456 = vmatprep.subr.mxu0 0.0
      %457 = vmatpush1.msra.mxu0 %v399
      %458 = vmatprep.subr.mxu0 0.0
      %459 = vmatpush1.msra.mxu0 %v398
      %460 = vmatprep.subr.mxu0 0.0
      %461 = vmatpush1.msra.mxu0 %v397
      %462 = vmatprep.subr.mxu0 0.0
      %463 = vmatpush1.msra.mxu0 %v396
      %464 = vmatprep.subr.mxu0 0.0
      %465 = vmatpush2.msra.mxu0 0.0
      %466 = vmatprep.subr.mxu0 0.0
      %467 = vmatpush2.msra.mxu0 0.0
      %468 = vmatprep.subr.mxu0 0.0
      %469 = vmatpush2.msra.mxu0 0.0
      %470 = vmatprep.subr.mxu0 0.0
      %471 = vmatpush2.msra.mxu0 0.0
      %472 = vmatprep.subr.mxu0 0.0
      %473 = vmatpush2.msra.mxu0 0.0
      %474 = vmatprep.subr.mxu0 0.0
      %475 = vmatpush2.msra.mxu0 0.0
      %476 = vmatprep.subr.mxu0 0.0
      %477 = vmatpush2.msra.mxu0 0.0
      %478 = vmatprep.subr.mxu0 0.0
      %479 = vmatpush2.msra.mxu0 0.0
      %480 = vmatprep.subr.mxu0 0.0
      %481 = vmatpush2.msra.mxu0 0.0
      %482 = vmatprep.subr.mxu0 0.0
      %483 = vmatpush2.msra.mxu0 0.0
      %484 = vmatprep.subr.mxu0 0.0
      %485 = vmatpush2.msra.mxu0 0.0
      %486 = vmatprep.subr.mxu0 0.0
      %487 = vmatpush2.msra.mxu0 0.0
      %488 = vmatprep.subr.mxu0 0.0
      %489 = vmatpush2.msra.mxu0 0.0
      %490 = vmatprep.subr.mxu0 0.0
      %491 = vmatpush2.msra.mxu0 0.0
      %492 = vmatprep.subr.mxu0 0.0
      %493 = vmatpush2.msra.mxu0 0.0
      %494 = vmatprep.subr.mxu0 0.0
      %495 = vmatpush2.msra.mxu0 0.0
      %496 = vmatprep.mubr.f32.mxu0 0.0
      %497 = vmatmul.mubr.f32.gmra.mxu0 %v409
      %v498 = vpop.f32.mrf.mxu0
      %v499 = vadd.f32 %v405, %v498
      %v500 = vpop.f32.mrf.mxu0
      %501 = vmatprep.mubr.f32.mxu0 0.0
      %502 = vmatmul.mubr.f32.gmra.mxu0 %v412
      %v503 = vpop.f32.mrf.mxu0
      %v504 = vadd.f32 %v405, %v503
      %v505 = vpop.f32.mrf.mxu0
      %506 = vmatprep.mubr.f32.mxu0 0.0
      %507 = vmatmul.mubr.f32.gmra.mxu0 %v415
      %v508 = vpop.f32.mrf.mxu0
      %v509 = vadd.f32 %v405, %v508
      %v510 = vpop.f32.mrf.mxu0
      %511 = vmatprep.mubr.f32.mxu0 0.0
      %512 = vmatmul.mubr.f32.gmra.mxu0 %v418
      %v513 = vpop.f32.mrf.mxu0
      %v514 = vadd.f32 %v405, %v513
      %v515 = vpop.f32.mrf.mxu0
      %516 = vmatprep.mubr.f32.mxu0 0.0
      %517 = vmatmul.mubr.f32.gmra.mxu0 %v421
      %v518 = vpop.f32.mrf.mxu0
      %v519 = vadd.f32 %v405, %v518
      %v520 = vpop.f32.mrf.mxu0
      %521 = vmatprep.mubr.f32.mxu0 0.0
      %522 = vmatmul.mubr.f32.gmra.mxu0 %v424
      %v523 = vpop.f32.mrf.mxu0
      %v524 = vadd.f32 %v405, %v523
      %v525 = vpop.f32.mrf.mxu0
      %526 = vmatprep.mubr.f32.mxu0 0.0
      %527 = vmatmul.mubr.f32.gmra.mxu0 %v427
      %v528 = vpop.f32.mrf.mxu0
      %v529 = vadd.f32 %v405, %v528
      %v530 = vpop.f32.mrf.mxu0
      %531 = vmatprep.mubr.f32.mxu0 0.0
      %532 = vmatmul.mubr.f32.gmra.mxu0 %v430
      %v533 = vpop.f32.mrf.mxu0
      %v534 = vadd.f32 %v405, %v533
      %v535 = vpop.f32.mrf.mxu0
      %536 = vdwg.mxu0
      %v537 = vld [vmem:[%s4] sm:$0xff]
      %v538 = vld [vmem:[%s4 + $0x8] sm:$0xff]
      %v539 = vld [vmem:[%s4 + $0x10] sm:$0xff]
      %v540 = vld [vmem:[%s4 + $0x18] sm:$0xff]
      %v541 = vld [vmem:[%s5] sm:$0x1]
      %v543 = vlaneseq
      %v544 = vshrl.u32 %v543, 7
      %v545 = vsub.s32 0, %v544
      %v546 = vrot.slane %v541, %v545
      %v549 = vsel %vm407, %v388, 0
      %v552 = vsel %vm407, %v389, 0
      %v555 = vsel %vm407, %v390, 0
      %v558 = vsel %vm407, %v391, 0
      %v561 = vsel %vm407, %v392, 0
      %v564 = vsel %vm407, %v393, 0
      %v567 = vsel %vm407, %v394, 0
      %v570 = vsel %vm407, %v395, 0
      %572 = vmatprep.subr.mxu0 0.0
      %573 = vmatpush1.msra.mxu0 0.0
      %574 = vmatprep.subr.mxu0 0.0
      %575 = vmatpush1.msra.mxu0 0.0
      %576 = vmatprep.subr.mxu0 0.0
      %577 = vmatpush1.msra.mxu0 0.0
      %578 = vmatprep.subr.mxu0 0.0
      %579 = vmatpush1.msra.mxu0 0.0
      %580 = vmatprep.subr.mxu0 0.0
      %581 = vmatpush1.msra.mxu0 0.0
      %582 = vmatprep.subr.mxu0 0.0
      %583 = vmatpush1.msra.mxu0 0.0
      %584 = vmatprep.subr.mxu0 0.0
      %585 = vmatpush1.msra.mxu0 0.0
      %586 = vmatprep.subr.mxu0 0.0
      %587 = vmatpush1.msra.mxu0 0.0
      %588 = vmatprep.subr.mxu0 0.0
      %589 = vmatpush1.msra.mxu0 0.0
      %590 = vmatprep.subr.mxu0 0.0
      %591 = vmatpush1.msra.mxu0 0.0
      %592 = vmatprep.subr.mxu0 0.0
      %593 = vmatpush1.msra.mxu0 0.0
      %594 = vmatprep.subr.mxu0 0.0
      %595 = vmatpush1.msra.mxu0 0.0
      %596 = vmatprep.subr.mxu0 0.0
      %597 = vmatpush1.msra.mxu0 %v540
      %598 = vmatprep.subr.mxu0 0.0
      %599 = vmatpush1.msra.mxu0 %v539
      %600 = vmatprep.subr.mxu0 0.0
      %601 = vmatpush1.msra.mxu0 %v538
      %602 = vmatprep.subr.mxu0 0.0
      %603 = vmatpush1.msra.mxu0 %v537
      %604 = vmatprep.subr.mxu0 0.0
      %605 = vmatpush2.msra.mxu0 0.0
      %606 = vmatprep.subr.mxu0 0.0
      %607 = vmatpush2.msra.mxu0 0.0
      %608 = vmatprep.subr.mxu0 0.0
      %609 = vmatpush2.msra.mxu0 0.0
      %610 = vmatprep.subr.mxu0 0.0
      %611 = vmatpush2.msra.mxu0 0.0
      %612 = vmatprep.subr.mxu0 0.0
      %613 = vmatpush2.msra.mxu0 0.0
      %614 = vmatprep.subr.mxu0 0.0
      %615 = vmatpush2.msra.mxu0 0.0
      %616 = vmatprep.subr.mxu0 0.0
      %617 = vmatpush2.msra.mxu0 0.0
      %618 = vmatprep.subr.mxu0 0.0
      %619 = vmatpush2.msra.mxu0 0.0
      %620 = vmatprep.subr.mxu0 0.0
      %621 = vmatpush2.msra.mxu0 0.0
      %622 = vmatprep.subr.mxu0 0.0
      %623 = vmatpush2.msra.mxu0 0.0
      %624 = vmatprep.subr.mxu0 0.0
      %625 = vmatpush2.msra.mxu0 0.0
      %626 = vmatprep.subr.mxu0 0.0
      %627 = vmatpush2.msra.mxu0 0.0
      %628 = vmatprep.subr.mxu0 0.0
      %629 = vmatpush2.msra.mxu0 0.0
      %630 = vmatprep.subr.mxu0 0.0
      %631 = vmatpush2.msra.mxu0 0.0
      %632 = vmatprep.subr.mxu0 0.0
      %633 = vmatpush2.msra.mxu0 0.0
      %634 = vmatprep.subr.mxu0 0.0
      %635 = vmatpush2.msra.mxu0 0.0
      %636 = vmatprep.mubr.f32.mxu0 0.0
      %637 = vmatmul.mubr.f32.gmra.mxu0 %v549
      %v638 = vpop.f32.mrf.mxu0
      %v639 = vadd.f32 %v546, %v638
      %v640 = vpop.f32.mrf.mxu0
      %641 = vmatprep.mubr.f32.mxu0 0.0
      %642 = vmatmul.mubr.f32.gmra.mxu0 %v552
      %v643 = vpop.f32.mrf.mxu0
      %v644 = vadd.f32 %v546, %v643
      %v645 = vpop.f32.mrf.mxu0
      %646 = vmatprep.mubr.f32.mxu0 0.0
      %647 = vmatmul.mubr.f32.gmra.mxu0 %v555
      %v648 = vpop.f32.mrf.mxu0
      %v649 = vadd.f32 %v546, %v648
      %v650 = vpop.f32.mrf.mxu0
      %651 = vmatprep.mubr.f32.mxu0 0.0
      %652 = vmatmul.mubr.f32.gmra.mxu0 %v558
      %v653 = vpop.f32.mrf.mxu0
      %v654 = vadd.f32 %v546, %v653
      %v655 = vpop.f32.mrf.mxu0
      %656 = vmatprep.mubr.f32.mxu0 0.0
      %657 = vmatmul.mubr.f32.gmra.mxu0 %v561
      %v658 = vpop.f32.mrf.mxu0
      %v659 = vadd.f32 %v546, %v658
      %v660 = vpop.f32.mrf.mxu0
      %661 = vmatprep.mubr.f32.mxu0 0.0
      %662 = vmatmul.mubr.f32.gmra.mxu0 %v564
      %v663 = vpop.f32.mrf.mxu0
      %v664 = vadd.f32 %v546, %v663
      %v665 = vpop.f32.mrf.mxu0
      %666 = vmatprep.mubr.f32.mxu0 0.0
      %667 = vmatmul.mubr.f32.gmra.mxu0 %v567
      %v668 = vpop.f32.mrf.mxu0
      %v669 = vadd.f32 %v546, %v668
      %v670 = vpop.f32.mrf.mxu0
      %671 = vmatprep.mubr.f32.mxu0 0.0
      %672 = vmatmul.mubr.f32.gmra.mxu0 %v570
      %v673 = vpop.f32.mrf.mxu0
      %v674 = vadd.f32 %v546, %v673
      %v675 = vpop.f32.mrf.mxu0
      %676 = vdwg.mxu0
      %v677 = vld [vmem:[%s7] sm:$0x1]
      %v678 = vld [vmem:[%s8] sm:$0xff]
      %v679 = vld [vmem:[%s8 + $0x8] sm:$0xff]
      %vm680 = vcmask 64512
      %v682 = vsel %vm680, %v499, 0
      %v685 = vsel %vm680, %v504, 0
      %v688 = vsel %vm680, %v639, 0
      %v691 = vsel %vm680, %v644, 0
      %693 = vmatprep.subr.mxu0 0.0
      %694 = vmatpush1.xpose.msra.mxu0 0.0
      %695 = vmatprep.subr.mxu0 0.0
      %696 = vmatpush1.xpose.msra.mxu0 0.0
      %697 = vmatprep.subr.mxu0 0.0
      %698 = vmatpush1.xpose.msra.mxu0 0.0
      %699 = vmatprep.subr.mxu0 0.0
      %700 = vmatpush1.xpose.msra.mxu0 0.0
      %701 = vmatprep.subr.mxu0 0.0
      %702 = vmatpush1.xpose.msra.mxu0 0.0
      %703 = vmatprep.subr.mxu0 0.0
      %704 = vmatpush1.xpose.msra.mxu0 0.0
      %705 = vmatprep.subr.mxu0 0.0
      %706 = vmatpush1.xpose.msra.mxu0 0.0
      %707 = vmatprep.subr.mxu0 0.0
      %708 = vmatpush1.xpose.msra.mxu0 0.0
      %709 = vmatprep.subr.mxu0 0.0
      %710 = vmatpush1.xpose.msra.mxu0 0.0
      %711 = vmatprep.subr.mxu0 0.0
      %712 = vmatpush1.xpose.msra.mxu0 0.0
      %713 = vmatprep.subr.mxu0 0.0
      %714 = vmatpush1.xpose.msra.mxu0 0.0
      %715 = vmatprep.subr.mxu0 0.0
      %716 = vmatpush1.xpose.msra.mxu0 0.0
      %717 = vmatprep.subr.mxu0 0.0
      %718 = vmatpush1.xpose.msra.mxu0 0.0
      %719 = vmatprep.subr.mxu0 0.0
      %720 = vmatpush1.xpose.msra.mxu0 0.0
      %721 = vmatprep.subr.mxu0 0.0
      %722 = vmatpush1.xpose.msra.mxu0 %v691
      %723 = vmatprep.subr.mxu0 0.0
      %724 = vmatpush1.xpose.msra.mxu0 %v688
      %725 = vmatprep.subr.mxu0 0.0
      %726 = vmatpush2.xpose.msra.mxu0 0.0
      %727 = vmatprep.subr.mxu0 0.0
      %728 = vmatpush2.xpose.msra.mxu0 0.0
      %729 = vmatprep.subr.mxu0 0.0
      %730 = vmatpush2.xpose.msra.mxu0 0.0
      %731 = vmatprep.subr.mxu0 0.0
      %732 = vmatpush2.xpose.msra.mxu0 0.0
      %733 = vmatprep.subr.mxu0 0.0
      %734 = vmatpush2.xpose.msra.mxu0 0.0
      %735 = vmatprep.subr.mxu0 0.0
      %736 = vmatpush2.xpose.msra.mxu0 0.0
      %737 = vmatprep.subr.mxu0 0.0
      %738 = vmatpush2.xpose.msra.mxu0 0.0
      %739 = vmatprep.subr.mxu0 0.0
      %740 = vmatpush2.xpose.msra.mxu0 0.0
      %741 = vmatprep.subr.mxu0 0.0
      %742 = vmatpush2.xpose.msra.mxu0 0.0
      %743 = vmatprep.subr.mxu0 0.0
      %744 = vmatpush2.xpose.msra.mxu0 0.0
      %745 = vmatprep.subr.mxu0 0.0
      %746 = vmatpush2.xpose.msra.mxu0 0.0
      %747 = vmatprep.subr.mxu0 0.0
      %748 = vmatpush2.xpose.msra.mxu0 0.0
      %749 = vmatprep.subr.mxu0 0.0
      %750 = vmatpush2.xpose.msra.mxu0 0.0
      %751 = vmatprep.subr.mxu0 0.0
      %752 = vmatpush2.xpose.msra.mxu0 0.0
      %753 = vmatprep.subr.mxu0 0.0
      %754 = vmatpush2.xpose.msra.mxu0 0.0
      %755 = vmatprep.subr.mxu0 0.0
      %756 = vmatpush2.xpose.msra.mxu0 0.0
      %757 = vmatprep.mubr.f32.mxu0 0.0
      %758 = vmatmul.mubr.f32.gmra.mxu0 %v682
      %v759 = vpop.f32.mrf.mxu0
      %v760 = vadd.f32 %v678, %v759
      %v761 = vpop.f32.mrf.mxu0
      %762 = vmatprep.mubr.f32.mxu0 0.0
      %763 = vmatmul.mubr.f32.gmra.mxu0 %v685
      %v764 = vpop.f32.mrf.mxu0
      %v765 = vadd.f32 %v679, %v764
      %v766 = vpop.f32.mrf.mxu0
      %767 = vdwg.mxu0
      %v769 = vsel %vm680, %v509, 0
      %v772 = vsel %vm680, %v514, 0
      %v775 = vsel %vm680, %v649, 0
      %v778 = vsel %vm680, %v654, 0
      %780 = vmatprep.subr.mxu0 0.0
      %781 = vmatpush1.xpose.msra.mxu0 0.0
      %782 = vmatprep.subr.mxu0 0.0
      %783 = vmatpush1.xpose.msra.mxu0 0.0
      %784 = vmatprep.subr.mxu0 0.0
      %785 = vmatpush1.xpose.msra.mxu0 0.0
      %786 = vmatprep.subr.mxu0 0.0
      %787 = vmatpush1.xpose.msra.mxu0 0.0
      %788 = vmatprep.subr.mxu0 0.0
      %789 = vmatpush1.xpose.msra.mxu0 0.0
      %790 = vmatprep.subr.mxu0 0.0
      %791 = vmatpush1.xpose.msra.mxu0 0.0
      %792 = vmatprep.subr.mxu0 0.0
      %793 = vmatpush1.xpose.msra.mxu0 0.0
      %794 = vmatprep.subr.mxu0 0.0
      %795 = vmatpush1.xpose.msra.mxu0 0.0
      %796 = vmatprep.subr.mxu0 0.0
      %797 = vmatpush1.xpose.msra.mxu0 0.0
      %798 = vmatprep.subr.mxu0 0.0
      %799 = vmatpush1.xpose.msra.mxu0 0.0
      %800 = vmatprep.subr.mxu0 0.0
      %801 = vmatpush1.xpose.msra.mxu0 0.0
      %802 = vmatprep.subr.mxu0 0.0
      %803 = vmatpush1.xpose.msra.mxu0 0.0
      %804 = vmatprep.subr.mxu0 0.0
      %805 = vmatpush1.xpose.msra.mxu0 0.0
      %806 = vmatprep.subr.mxu0 0.0
      %807 = vmatpush1.xpose.msra.mxu0 0.0
      %808 = vmatprep.subr.mxu0 0.0
      %809 = vmatpush1.xpose.msra.mxu0 %v778
      %810 = vmatprep.subr.mxu0 0.0
      %811 = vmatpush1.xpose.msra.mxu0 %v775
      %812 = vmatprep.subr.mxu0 0.0
      %813 = vmatpush2.xpose.msra.mxu0 0.0
      %814 = vmatprep.subr.mxu0 0.0
      %815 = vmatpush2.xpose.msra.mxu0 0.0
      %816 = vmatprep.subr.mxu0 0.0
      %817 = vmatpush2.xpose.msra.mxu0 0.0
      %818 = vmatprep.subr.mxu0 0.0
      %819 = vmatpush2.xpose.msra.mxu0 0.0
      %820 = vmatprep.subr.mxu0 0.0
      %821 = vmatpush2.xpose.msra.mxu0 0.0
      %822 = vmatprep.subr.mxu0 0.0
      %823 = vmatpush2.xpose.msra.mxu0 0.0
      %824 = vmatprep.subr.mxu0 0.0
      %825 = vmatpush2.xpose.msra.mxu0 0.0
      %826 = vmatprep.subr.mxu0 0.0
      %827 = vmatpush2.xpose.msra.mxu0 0.0
      %828 = vmatprep.subr.mxu0 0.0
      %829 = vmatpush2.xpose.msra.mxu0 0.0
      %830 = vmatprep.subr.mxu0 0.0
      %831 = vmatpush2.xpose.msra.mxu0 0.0
      %832 = vmatprep.subr.mxu0 0.0
      %833 = vmatpush2.xpose.msra.mxu0 0.0
      %834 = vmatprep.subr.mxu0 0.0
      %835 = vmatpush2.xpose.msra.mxu0 0.0
      %836 = vmatprep.subr.mxu0 0.0
      %837 = vmatpush2.xpose.msra.mxu0 0.0
      %838 = vmatprep.subr.mxu0 0.0
      %839 = vmatpush2.xpose.msra.mxu0 0.0
      %840 = vmatprep.subr.mxu0 0.0
      %841 = vmatpush2.xpose.msra.mxu0 0.0
      %842 = vmatprep.subr.mxu0 0.0
      %843 = vmatpush2.xpose.msra.mxu0 0.0
      %844 = vmatprep.mubr.f32.mxu0 0.0
      %845 = vmatmul.mubr.f32.gmra.mxu0 %v769
      %v846 = vpop.f32.mrf.mxu0
      %v847 = vadd.f32 %v678, %v846
      %v848 = vpop.f32.mrf.mxu0
      %849 = vmatprep.mubr.f32.mxu0 0.0
      %850 = vmatmul.mubr.f32.gmra.mxu0 %v772
      %v851 = vpop.f32.mrf.mxu0
      %v852 = vadd.f32 %v679, %v851
      %v853 = vpop.f32.mrf.mxu0
      %854 = vdwg.mxu0
      %v856 = vsel %vm680, %v519, 0
      %v859 = vsel %vm680, %v524, 0
      %v862 = vsel %vm680, %v659, 0
      %v865 = vsel %vm680, %v664, 0
      %867 = vmatprep.subr.mxu0 0.0
      %868 = vmatpush1.xpose.msra.mxu0 0.0
      %869 = vmatprep.subr.mxu0 0.0
      %870 = vmatpush1.xpose.msra.mxu0 0.0
      %871 = vmatprep.subr.mxu0 0.0
      %872 = vmatpush1.xpose.msra.mxu0 0.0
      %873 = vmatprep.subr.mxu0 0.0
      %874 = vmatpush1.xpose.msra.mxu0 0.0
      %875 = vmatprep.subr.mxu0 0.0
      %876 = vmatpush1.xpose.msra.mxu0 0.0
      %877 = vmatprep.subr.mxu0 0.0
      %878 = vmatpush1.xpose.msra.mxu0 0.0
      %879 = vmatprep.subr.mxu0 0.0
      %880 = vmatpush1.xpose.msra.mxu0 0.0
      %881 = vmatprep.subr.mxu0 0.0
      %882 = vmatpush1.xpose.msra.mxu0 0.0
      %883 = vmatprep.subr.mxu0 0.0
      %884 = vmatpush1.xpose.msra.mxu0 0.0
      %885 = vmatprep.subr.mxu0 0.0
      %886 = vmatpush1.xpose.msra.mxu0 0.0
      %887 = vmatprep.subr.mxu0 0.0
      %888 = vmatpush1.xpose.msra.mxu0 0.0
      %889 = vmatprep.subr.mxu0 0.0
      %890 = vmatpush1.xpose.msra.mxu0 0.0
      %891 = vmatprep.subr.mxu0 0.0
      %892 = vmatpush1.xpose.msra.mxu0 0.0
      %893 = vmatprep.subr.mxu0 0.0
      %894 = vmatpush1.xpose.msra.mxu0 0.0
      %895 = vmatprep.subr.mxu0 0.0
      %896 = vmatpush1.xpose.msra.mxu0 %v865
      %897 = vmatprep.subr.mxu0 0.0
      %898 = vmatpush1.xpose.msra.mxu0 %v862
      %899 = vmatprep.subr.mxu0 0.0
      %900 = vmatpush2.xpose.msra.mxu0 0.0
      %901 = vmatprep.subr.mxu0 0.0
      %902 = vmatpush2.xpose.msra.mxu0 0.0
      %903 = vmatprep.subr.mxu0 0.0
      %904 = vmatpush2.xpose.msra.mxu0 0.0
      %905 = vmatprep.subr.mxu0 0.0
      %906 = vmatpush2.xpose.msra.mxu0 0.0
      %907 = vmatprep.subr.mxu0 0.0
      %908 = vmatpush2.xpose.msra.mxu0 0.0
      %909 = vmatprep.subr.mxu0 0.0
      %910 = vmatpush2.xpose.msra.mxu0 0.0
      %911 = vmatprep.subr.mxu0 0.0
      %912 = vmatpush2.xpose.msra.mxu0 0.0
      %913 = vmatprep.subr.mxu0 0.0
      %914 = vmatpush2.xpose.msra.mxu0 0.0
      %915 = vmatprep.subr.mxu0 0.0
      %916 = vmatpush2.xpose.msra.mxu0 0.0
      %917 = vmatprep.subr.mxu0 0.0
      %918 = vmatpush2.xpose.msra.mxu0 0.0
      %919 = vmatprep.subr.mxu0 0.0
      %920 = vmatpush2.xpose.msra.mxu0 0.0
      %921 = vmatprep.subr.mxu0 0.0
      %922 = vmatpush2.xpose.msra.mxu0 0.0
      %923 = vmatprep.subr.mxu0 0.0
      %924 = vmatpush2.xpose.msra.mxu0 0.0
      %925 = vmatprep.subr.mxu0 0.0
      %926 = vmatpush2.xpose.msra.mxu0 0.0
      %927 = vmatprep.subr.mxu0 0.0
      %928 = vmatpush2.xpose.msra.mxu0 0.0
      %929 = vmatprep.subr.mxu0 0.0
      %930 = vmatpush2.xpose.msra.mxu0 0.0
      %931 = vmatprep.mubr.f32.mxu0 0.0
      %932 = vmatmul.mubr.f32.gmra.mxu0 %v856
      %v933 = vpop.f32.mrf.mxu0
      %v934 = vadd.f32 %v678, %v933
      %v935 = vpop.f32.mrf.mxu0
      %936 = vmatprep.mubr.f32.mxu0 0.0
      %937 = vmatmul.mubr.f32.gmra.mxu0 %v859
      %v938 = vpop.f32.mrf.mxu0
      %v939 = vadd.f32 %v679, %v938
      %v940 = vpop.f32.mrf.mxu0
      %941 = vdwg.mxu0
      %v943 = vsel %vm680, %v529, 0
      %v946 = vsel %vm680, %v534, 0
      %v949 = vsel %vm680, %v669, 0
      %v952 = vsel %vm680, %v674, 0
      %954 = vmatprep.subr.mxu0 0.0
      %955 = vmatpush1.xpose.msra.mxu0 0.0
      %956 = vmatprep.subr.mxu0 0.0
      %957 = vmatpush1.xpose.msra.mxu0 0.0
      %958 = vmatprep.subr.mxu0 0.0
      %959 = vmatpush1.xpose.msra.mxu0 0.0
      %960 = vmatprep.subr.mxu0 0.0
      %961 = vmatpush1.xpose.msra.mxu0 0.0
      %962 = vmatprep.subr.mxu0 0.0
      %963 = vmatpush1.xpose.msra.mxu0 0.0
      %964 = vmatprep.subr.mxu0 0.0
      %965 = vmatpush1.xpose.msra.mxu0 0.0
      %966 = vmatprep.subr.mxu0 0.0
      %967 = vmatpush1.xpose.msra.mxu0 0.0
      %968 = vmatprep.subr.mxu0 0.0
      %969 = vmatpush1.xpose.msra.mxu0 0.0
      %970 = vmatprep.subr.mxu0 0.0
      %971 = vmatpush1.xpose.msra.mxu0 0.0
      %972 = vmatprep.subr.mxu0 0.0
      %973 = vmatpush1.xpose.msra.mxu0 0.0
      %974 = vmatprep.subr.mxu0 0.0
      %975 = vmatpush1.xpose.msra.mxu0 0.0
      %976 = vmatprep.subr.mxu0 0.0
      %977 = vmatpush1.xpose.msra.mxu0 0.0
      %978 = vmatprep.subr.mxu0 0.0
      %979 = vmatpush1.xpose.msra.mxu0 0.0
      %980 = vmatprep.subr.mxu0 0.0
      %981 = vmatpush1.xpose.msra.mxu0 0.0
      %982 = vmatprep.subr.mxu0 0.0
      %983 = vmatpush1.xpose.msra.mxu0 %v952
      %984 = vmatprep.subr.mxu0 0.0
      %985 = vmatpush1.xpose.msra.mxu0 %v949
      %986 = vmatprep.subr.mxu0 0.0
      %987 = vmatpush2.xpose.msra.mxu0 0.0
      %988 = vmatprep.subr.mxu0 0.0
      %989 = vmatpush2.xpose.msra.mxu0 0.0
      %990 = vmatprep.subr.mxu0 0.0
      %991 = vmatpush2.xpose.msra.mxu0 0.0
      %992 = vmatprep.subr.mxu0 0.0
      %993 = vmatpush2.xpose.msra.mxu0 0.0
      %994 = vmatprep.subr.mxu0 0.0
      %995 = vmatpush2.xpose.msra.mxu0 0.0
      %996 = vmatprep.subr.mxu0 0.0
      %997 = vmatpush2.xpose.msra.mxu0 0.0
      %998 = vmatprep.subr.mxu0 0.0
      %999 = vmatpush2.xpose.msra.mxu0 0.0
      %1000 = vmatprep.subr.mxu0 0.0
      %1001 = vmatpush2.xpose.msra.mxu0 0.0
      %1002 = vmatprep.subr.mxu0 0.0
      %1003 = vmatpush2.xpose.msra.mxu0 0.0
      %1004 = vmatprep.subr.mxu0 0.0
      %1005 = vmatpush2.xpose.msra.mxu0 0.0
      %1006 = vmatprep.subr.mxu0 0.0
      %1007 = vmatpush2.xpose.msra.mxu0 0.0
      %1008 = vmatprep.subr.mxu0 0.0
      %1009 = vmatpush2.xpose.msra.mxu0 0.0
      %1010 = vmatprep.subr.mxu0 0.0
      %1011 = vmatpush2.xpose.msra.mxu0 0.0
      %1012 = vmatprep.subr.mxu0 0.0
      %1013 = vmatpush2.xpose.msra.mxu0 0.0
      %1014 = vmatprep.subr.mxu0 0.0
      %1015 = vmatpush2.xpose.msra.mxu0 0.0
      %1016 = vmatprep.subr.mxu0 0.0
      %1017 = vmatpush2.xpose.msra.mxu0 0.0
      %1018 = vmatprep.mubr.f32.mxu0 0.0
      %1019 = vmatmul.mubr.f32.gmra.mxu0 %v943
      %v1020 = vpop.f32.mrf.mxu0
      %v1021 = vadd.f32 %v678, %v1020
      %v1022 = vpop.f32.mrf.mxu0
      %1023 = vmatprep.mubr.f32.mxu0 0.0
      %1024 = vmatmul.mubr.f32.gmra.mxu0 %v946
      %v1025 = vpop.f32.mrf.mxu0
      %v1026 = vadd.f32 %v679, %v1025
      %v1027 = vpop.f32.mrf.mxu0
      %1028 = vdwg.mxu0
      %v1029 = vld [vmem:[%s9] sm:$0xf]
      %v1030 = vld [vmem:[%s9 + $0x4] sm:$0xf]
      %v1031 = vld [vmem:[%s9 + $0x8] sm:$0xf]
      %v1032 = vld [vmem:[%s9 + $0xc] sm:$0xf]
      %v1033 = vld [vmem:[%s9 + $0x10] sm:$0xf]
      %v1034 = vld [vmem:[%s9 + $0x14] sm:$0xf]
      %v1035 = vld [vmem:[%s9 + $0x18] sm:$0xf]
      %v1036 = vld [vmem:[%s9 + $0x1c] sm:$0xf]
      %v1037 = vunpack.c.l.bf16 %v1029
      %v1038 = vunpack.c.l.bf16 %v1030
      %v1039 = vunpack.c.l.bf16 %v1031
      %v1040 = vunpack.c.l.bf16 %v1032
      %v1041 = vunpack.c.l.bf16 %v1033
      %v1042 = vunpack.c.l.bf16 %v1034
      %v1043 = vunpack.c.l.bf16 %v1035
      %v1044 = vunpack.c.l.bf16 %v1036
      %v1045 = vadd.f32 %v760, %v1037
      %v1046 = vadd.f32 %v765, %v1038
      %v1047 = vadd.f32 %v847, %v1039
      %v1048 = vadd.f32 %v852, %v1040
      %v1049 = vadd.f32 %v934, %v1041
      %v1050 = vadd.f32 %v939, %v1042
      %v1051 = vadd.f32 %v1021, %v1043
      %v1052 = vadd.f32 %v1026, %v1044
      %vm1053 = vcmask 130048
      %v1054 = vsel %vm1053, %v1045, -inf
      %1055 = vmax.xlane.f32.xlu0 %v1054
      %v1056 = vpop.xlane.xlu0 %1055
      %v1057 = vsel %vm1053, %v1046, -inf
      %1058 = vmax.xlane.f32.xlu0 %v1057
      %v1059 = vpop.xlane.xlu0 %1058
      %v1060 = vsel %vm1053, %v1047, -inf
      %1061 = vmax.xlane.f32.xlu0 %v1060
      %v1062 = vpop.xlane.xlu0 %1061
      %v1063 = vsel %vm1053, %v1048, -inf
      %1064 = vmax.xlane.f32.xlu0 %v1063
      %v1065 = vpop.xlane.xlu0 %1064
      %v1066 = vsel %vm1053, %v1049, -inf
      %1067 = vmax.xlane.f32.xlu0 %v1066
      %v1068 = vpop.xlane.xlu0 %1067
      %v1069 = vsel %vm1053, %v1050, -inf
      %1070 = vmax.xlane.f32.xlu0 %v1069
      %v1071 = vpop.xlane.xlu0 %1070
      %v1072 = vsel %vm1053, %v1051, -inf
      %1073 = vmax.xlane.f32.xlu0 %v1072
      %v1074 = vpop.xlane.xlu0 %1073
      %v1075 = vsel %vm1053, %v1052, -inf
      %1076 = vmax.xlane.f32.xlu0 %v1075
      %v1077 = vpop.xlane.xlu0 %1076
      %v1078 = vsub.f32 %v1045, %v1056
      %v1079 = vsub.f32 %v1046, %v1059
      %v1080 = vsub.f32 %v1047, %v1062
      %v1081 = vsub.f32 %v1048, %v1065
      %v1082 = vsub.f32 %v1049, %v1068
      %v1083 = vsub.f32 %v1050, %v1071
      %v1084 = vsub.f32 %v1051, %v1074
      %v1085 = vsub.f32 %v1052, %v1077
      %v1086 = vmul.f32 %v1078, 1.442695
      %v1087 = vpow.pop %v1086
      %v1088 = vmul.f32 %v1079, 1.442695
      %v1089 = vpow.pop %v1088
      %v1090 = vmul.f32 %v1080, 1.442695
      %v1091 = vpow.pop %v1090
      %v1092 = vmul.f32 %v1081, 1.442695
      %v1093 = vpow.pop %v1092
      %v1094 = vmul.f32 %v1082, 1.442695
      %v1095 = vpow.pop %v1094
      %v1096 = vmul.f32 %v1083, 1.442695
      %v1097 = vpow.pop %v1096
      %v1098 = vmul.f32 %v1084, 1.442695
      %v1099 = vpow.pop %v1098
      %v1100 = vmul.f32 %v1085, 1.442695
      %v1101 = vpow.pop %v1100
      %v1102 = vsel %vm1053, %v1087, 0.0
      %1103 = vadd.xlane.f32.xlu0 %v1102
      %v1104 = vpop.xlane.xlu0 %1103
      %v1105 = vsel %vm1053, %v1089, 0.0
      %1106 = vadd.xlane.f32.xlu0 %v1105
      %v1107 = vpop.xlane.xlu0 %1106
      %v1108 = vsel %vm1053, %v1091, 0.0
      %1109 = vadd.xlane.f32.xlu0 %v1108
      %v1110 = vpop.xlane.xlu0 %1109
      %v1111 = vsel %vm1053, %v1093, 0.0
      %1112 = vadd.xlane.f32.xlu0 %v1111
      %v1113 = vpop.xlane.xlu0 %1112
      %v1114 = vsel %vm1053, %v1095, 0.0
      %1115 = vadd.xlane.f32.xlu0 %v1114
      %v1116 = vpop.xlane.xlu0 %1115
      %v1117 = vsel %vm1053, %v1097, 0.0
      %1118 = vadd.xlane.f32.xlu0 %v1117
      %v1119 = vpop.xlane.xlu0 %1118
      %v1120 = vsel %vm1053, %v1099, 0.0
      %1121 = vadd.xlane.f32.xlu0 %v1120
      %v1122 = vpop.xlane.xlu0 %1121
      %v1123 = vsel %vm1053, %v1101, 0.0
      %1124 = vadd.xlane.f32.xlu0 %v1123
      %v1125 = vpop.xlane.xlu0 %1124
      %v1126 = vrcp.pop %v1104
      %v1127 = vrcp.pop %v1107
      %v1128 = vrcp.pop %v1110
      %v1129 = vrcp.pop %v1113
      %v1130 = vrcp.pop %v1116
      %v1131 = vrcp.pop %v1119
      %v1132 = vrcp.pop %v1122
      %v1133 = vrcp.pop %v1125
      %v1134 = vmul.f32 %v1087, %v1126
      %v1135 = vmul.f32 %v1089, %v1127
      %v1136 = vmul.f32 %v1091, %v1128
      %v1137 = vmul.f32 %v1093, %v1129
      %v1138 = vmul.f32 %v1095, %v1130
      %v1139 = vmul.f32 %v1097, %v1131
      %v1140 = vmul.f32 %v1099, %v1132
      %v1141 = vmul.f32 %v1101, %v1133
      %1142 = vrot.lane.b32.xlu0 %v639, 96
      %v1143 = vpop.permute.xlu0 %1142
      %1144 = vrot.lane.b32.xlu0 %v644, 96
      %v1145 = vpop.permute.xlu0 %1144
      %v1149 = vsel %vm1053, %v1134, 0
      %v1152 = vsel %vm1053, %v1135, 0
      %1154 = vmatprep.subr.mxu0 0.0
      %1155 = vmatpush1.msra.mxu0 0.0
      %1156 = vmatprep.subr.mxu0 0.0
      %1157 = vmatpush1.msra.mxu0 0.0
      %1158 = vmatprep.subr.mxu0 0.0
      %1159 = vmatpush1.msra.mxu0 0.0
      %1160 = vmatprep.subr.mxu0 0.0
      %1161 = vmatpush1.msra.mxu0 0.0
      %1162 = vmatprep.subr.mxu0 0.0
      %1163 = vmatpush1.msra.mxu0 0.0
      %1164 = vmatprep.subr.mxu0 0.0
      %1165 = vmatpush1.msra.mxu0 0.0
      %1166 = vmatprep.subr.mxu0 0.0
      %1167 = vmatpush1.msra.mxu0 0.0
      %1168 = vmatprep.subr.mxu0 0.0
      %1169 = vmatpush1.msra.mxu0 0.0
      %1170 = vmatprep.subr.mxu0 0.0
      %1171 = vmatpush1.msra.mxu0 0.0
      %1172 = vmatprep.subr.mxu0 0.0
      %1173 = vmatpush1.msra.mxu0 0.0
      %1174 = vmatprep.subr.mxu0 0.0
      %1175 = vmatpush1.msra.mxu0 0.0
      %1176 = vmatprep.subr.mxu0 0.0
      %1177 = vmatpush1.msra.mxu0 0.0
      %1178 = vmatprep.subr.mxu0 0.0
      %1179 = vmatpush1.msra.mxu0 0.0
      %1180 = vmatprep.subr.mxu0 0.0
      %1181 = vmatpush1.msra.mxu0 0.0
      %1182 = vmatprep.subr.mxu0 0.0
      %1183 = vmatpush1.msra.mxu0 %v1145
      %1184 = vmatprep.subr.mxu0 0.0
      %1185 = vmatpush1.msra.mxu0 %v1143
      %1186 = vmatprep.subr.mxu0 0.0
      %1187 = vmatpush2.msra.mxu0 0.0
      %1188 = vmatprep.subr.mxu0 0.0
      %1189 = vmatpush2.msra.mxu0 0.0
      %1190 = vmatprep.subr.mxu0 0.0
      %1191 = vmatpush2.msra.mxu0 0.0
      %1192 = vmatprep.subr.mxu0 0.0
      %1193 = vmatpush2.msra.mxu0 0.0
      %1194 = vmatprep.subr.mxu0 0.0
      %1195 = vmatpush2.msra.mxu0 0.0
      %1196 = vmatprep.subr.mxu0 0.0
      %1197 = vmatpush2.msra.mxu0 0.0
      %1198 = vmatprep.subr.mxu0 0.0
      %1199 = vmatpush2.msra.mxu0 0.0
      %1200 = vmatprep.subr.mxu0 0.0
      %1201 = vmatpush2.msra.mxu0 0.0
      %1202 = vmatprep.subr.mxu0 0.0
      %1203 = vmatpush2.msra.mxu0 0.0
      %1204 = vmatprep.subr.mxu0 0.0
      %1205 = vmatpush2.msra.mxu0 0.0
      %1206 = vmatprep.subr.mxu0 0.0
      %1207 = vmatpush2.msra.mxu0 0.0
      %1208 = vmatprep.subr.mxu0 0.0
      %1209 = vmatpush2.msra.mxu0 0.0
      %1210 = vmatprep.subr.mxu0 0.0
      %1211 = vmatpush2.msra.mxu0 0.0
      %1212 = vmatprep.subr.mxu0 0.0
      %1213 = vmatpush2.msra.mxu0 0.0
      %1214 = vmatprep.subr.mxu0 0.0
      %1215 = vmatpush2.msra.mxu0 0.0
      %1216 = vmatprep.subr.mxu0 0.0
      %1217 = vmatpush2.msra.mxu0 0.0
      %1218 = vmatprep.mubr.f32.mxu0 0.0
      %1219 = vmatmul.mubr.f32.gmra.mxu0 %v1149
      %v1220 = vpop.f32.mrf.mxu0
      %v1221 = vadd.f32 0.0, %v1220
      %v1222 = vpop.f32.mrf.mxu0
      %1223 = vmatprep.mubr.f32.mxu0 0.0
      %1224 = vmatmul.mubr.f32.gmra.mxu0 %v1152
      %v1225 = vpop.f32.mrf.mxu0
      %v1226 = vadd.f32 0.0, %v1225
      %v1227 = vpop.f32.mrf.mxu0
      %1228 = vdwg.mxu0
      %1229 = vrot.lane.b32.xlu0 %v649, 96
      %v1230 = vpop.permute.xlu0 %1229
      %1231 = vrot.lane.b32.xlu0 %v654, 96
      %v1232 = vpop.permute.xlu0 %1231
      %v1236 = vsel %vm1053, %v1136, 0
      %v1239 = vsel %vm1053, %v1137, 0
      %1241 = vmatprep.subr.mxu0 0.0
      %1242 = vmatpush1.msra.mxu0 0.0
      %1243 = vmatprep.subr.mxu0 0.0
      %1244 = vmatpush1.msra.mxu0 0.0
      %1245 = vmatprep.subr.mxu0 0.0
      %1246 = vmatpush1.msra.mxu0 0.0
      %1247 = vmatprep.subr.mxu0 0.0
      %1248 = vmatpush1.msra.mxu0 0.0
      %1249 = vmatprep.subr.mxu0 0.0
      %1250 = vmatpush1.msra.mxu0 0.0
      %1251 = vmatprep.subr.mxu0 0.0
      %1252 = vmatpush1.msra.mxu0 0.0
      %1253 = vmatprep.subr.mxu0 0.0
      %1254 = vmatpush1.msra.mxu0 0.0
      %1255 = vmatprep.subr.mxu0 0.0
      %1256 = vmatpush1.msra.mxu0 0.0
      %1257 = vmatprep.subr.mxu0 0.0
      %1258 = vmatpush1.msra.mxu0 0.0
      %1259 = vmatprep.subr.mxu0 0.0
      %1260 = vmatpush1.msra.mxu0 0.0
      %1261 = vmatprep.subr.mxu0 0.0
      %1262 = vmatpush1.msra.mxu0 0.0
      %1263 = vmatprep.subr.mxu0 0.0
      %1264 = vmatpush1.msra.mxu0 0.0
      %1265 = vmatprep.subr.mxu0 0.0
      %1266 = vmatpush1.msra.mxu0 0.0
      %1267 = vmatprep.subr.mxu0 0.0
      %1268 = vmatpush1.msra.mxu0 0.0
      %1269 = vmatprep.subr.mxu0 0.0
      %1270 = vmatpush1.msra.mxu0 %v1232
      %1271 = vmatprep.subr.mxu0 0.0
      %1272 = vmatpush1.msra.mxu0 %v1230
      %1273 = vmatprep.subr.mxu0 0.0
      %1274 = vmatpush2.msra.mxu0 0.0
      %1275 = vmatprep.subr.mxu0 0.0
      %1276 = vmatpush2.msra.mxu0 0.0
      %1277 = vmatprep.subr.mxu0 0.0
      %1278 = vmatpush2.msra.mxu0 0.0
      %1279 = vmatprep.subr.mxu0 0.0
      %1280 = vmatpush2.msra.mxu0 0.0
      %1281 = vmatprep.subr.mxu0 0.0
      %1282 = vmatpush2.msra.mxu0 0.0
      %1283 = vmatprep.subr.mxu0 0.0
      %1284 = vmatpush2.msra.mxu0 0.0
      %1285 = vmatprep.subr.mxu0 0.0
      %1286 = vmatpush2.msra.mxu0 0.0
      %1287 = vmatprep.subr.mxu0 0.0
      %1288 = vmatpush2.msra.mxu0 0.0
      %1289 = vmatprep.subr.mxu0 0.0
      %1290 = vmatpush2.msra.mxu0 0.0
      %1291 = vmatprep.subr.mxu0 0.0
      %1292 = vmatpush2.msra.mxu0 0.0
      %1293 = vmatprep.subr.mxu0 0.0
      %1294 = vmatpush2.msra.mxu0 0.0
      %1295 = vmatprep.subr.mxu0 0.0
      %1296 = vmatpush2.msra.mxu0 0.0
      %1297 = vmatprep.subr.mxu0 0.0
      %1298 = vmatpush2.msra.mxu0 0.0
      %1299 = vmatprep.subr.mxu0 0.0
      %1300 = vmatpush2.msra.mxu0 0.0
      %1301 = vmatprep.subr.mxu0 0.0
      %1302 = vmatpush2.msra.mxu0 0.0
      %1303 = vmatprep.subr.mxu0 0.0
      %1304 = vmatpush2.msra.mxu0 0.0
      %1305 = vmatprep.mubr.f32.mxu0 0.0
      %1306 = vmatmul.mubr.f32.gmra.mxu0 %v1236
      %v1307 = vpop.f32.mrf.mxu0
      %v1308 = vadd.f32 0.0, %v1307
      %v1309 = vpop.f32.mrf.mxu0
      %1310 = vmatprep.mubr.f32.mxu0 0.0
      %1311 = vmatmul.mubr.f32.gmra.mxu0 %v1239
      %v1312 = vpop.f32.mrf.mxu0
      %v1313 = vadd.f32 0.0, %v1312
      %v1314 = vpop.f32.mrf.mxu0
      %1315 = vdwg.mxu0
      %1316 = vrot.lane.b32.xlu0 %v659, 96
      %v1317 = vpop.permute.xlu0 %1316
      %1318 = vrot.lane.b32.xlu0 %v664, 96
      %v1319 = vpop.permute.xlu0 %1318
      %v1323 = vsel %vm1053, %v1138, 0
      %v1326 = vsel %vm1053, %v1139, 0
      %1328 = vmatprep.subr.mxu0 0.0
      %1329 = vmatpush1.msra.mxu0 0.0
      %1330 = vmatprep.subr.mxu0 0.0
      %1331 = vmatpush1.msra.mxu0 0.0
      %1332 = vmatprep.subr.mxu0 0.0
      %1333 = vmatpush1.msra.mxu0 0.0
      %1334 = vmatprep.subr.mxu0 0.0
      %1335 = vmatpush1.msra.mxu0 0.0
      %1336 = vmatprep.subr.mxu0 0.0
      %1337 = vmatpush1.msra.mxu0 0.0
      %1338 = vmatprep.subr.mxu0 0.0
      %1339 = vmatpush1.msra.mxu0 0.0
      %1340 = vmatprep.subr.mxu0 0.0
      %1341 = vmatpush1.msra.mxu0 0.0
      %1342 = vmatprep.subr.mxu0 0.0
      %1343 = vmatpush1.msra.mxu0 0.0
      %1344 = vmatprep.subr.mxu0 0.0
      %1345 = vmatpush1.msra.mxu0 0.0
      %1346 = vmatprep.subr.mxu0 0.0
      %1347 = vmatpush1.msra.mxu0 0.0
      %1348 = vmatprep.subr.mxu0 0.0
      %1349 = vmatpush1.msra.mxu0 0.0
      %1350 = vmatprep.subr.mxu0 0.0
      %1351 = vmatpush1.msra.mxu0 0.0
      %1352 = vmatprep.subr.mxu0 0.0
      %1353 = vmatpush1.msra.mxu0 0.0
      %1354 = vmatprep.subr.mxu0 0.0
      %1355 = vmatpush1.msra.mxu0 0.0
      %1356 = vmatprep.subr.mxu0 0.0
      %1357 = vmatpush1.msra.mxu0 %v1319
      %1358 = vmatprep.subr.mxu0 0.0
      %1359 = vmatpush1.msra.mxu0 %v1317
      %1360 = vmatprep.subr.mxu0 0.0
      %1361 = vmatpush2.msra.mxu0 0.0
      %1362 = vmatprep.subr.mxu0 0.0
      %1363 = vmatpush2.msra.mxu0 0.0
      %1364 = vmatprep.subr.mxu0 0.0
      %1365 = vmatpush2.msra.mxu0 0.0
      %1366 = vmatprep.subr.mxu0 0.0
      %1367 = vmatpush2.msra.mxu0 0.0
      %1368 = vmatprep.subr.mxu0 0.0
      %1369 = vmatpush2.msra.mxu0 0.0
      %1370 = vmatprep.subr.mxu0 0.0
      %1371 = vmatpush2.msra.mxu0 0.0
      %1372 = vmatprep.subr.mxu0 0.0
      %1373 = vmatpush2.msra.mxu0 0.0
      %1374 = vmatprep.subr.mxu0 0.0
      %1375 = vmatpush2.msra.mxu0 0.0
      %1376 = vmatprep.subr.mxu0 0.0
      %1377 = vmatpush2.msra.mxu0 0.0
      %1378 = vmatprep.subr.mxu0 0.0
      %1379 = vmatpush2.msra.mxu0 0.0
      %1380 = vmatprep.subr.mxu0 0.0
      %1381 = vmatpush2.msra.mxu0 0.0
      %1382 = vmatprep.subr.mxu0 0.0
      %1383 = vmatpush2.msra.mxu0 0.0
      %1384 = vmatprep.subr.mxu0 0.0
      %1385 = vmatpush2.msra.mxu0 0.0
      %1386 = vmatprep.subr.mxu0 0.0
      %1387 = vmatpush2.msra.mxu0 0.0
      %1388 = vmatprep.subr.mxu0 0.0
      %1389 = vmatpush2.msra.mxu0 0.0
      %1390 = vmatprep.subr.mxu0 0.0
      %1391 = vmatpush2.msra.mxu0 0.0
      %1392 = vmatprep.mubr.f32.mxu0 0.0
      %1393 = vmatmul.mubr.f32.gmra.mxu0 %v1323
      %v1394 = vpop.f32.mrf.mxu0
      %v1395 = vadd.f32 0.0, %v1394
      %v1396 = vpop.f32.mrf.mxu0
      %1397 = vmatprep.mubr.f32.mxu0 0.0
      %1398 = vmatmul.mubr.f32.gmra.mxu0 %v1326
      %v1399 = vpop.f32.mrf.mxu0
      %v1400 = vadd.f32 0.0, %v1399
      %v1401 = vpop.f32.mrf.mxu0
      %1402 = vdwg.mxu0
      %1403 = vrot.lane.b32.xlu0 %v669, 96
      %v1404 = vpop.permute.xlu0 %1403
      %1405 = vrot.lane.b32.xlu0 %v674, 96
      %v1406 = vpop.permute.xlu0 %1405
      %v1410 = vsel %vm1053, %v1140, 0
      %v1413 = vsel %vm1053, %v1141, 0
      %1415 = vmatprep.subr.mxu0 0.0
      %1416 = vmatpush1.msra.mxu0 0.0
      %1417 = vmatprep.subr.mxu0 0.0
      %1418 = vmatpush1.msra.mxu0 0.0
      %1419 = vmatprep.subr.mxu0 0.0
      %1420 = vmatpush1.msra.mxu0 0.0
      %1421 = vmatprep.subr.mxu0 0.0
      %1422 = vmatpush1.msra.mxu0 0.0
      %1423 = vmatprep.subr.mxu0 0.0
      %1424 = vmatpush1.msra.mxu0 0.0
      %1425 = vmatprep.subr.mxu0 0.0
      %1426 = vmatpush1.msra.mxu0 0.0
      %1427 = vmatprep.subr.mxu0 0.0
      %1428 = vmatpush1.msra.mxu0 0.0
      %1429 = vmatprep.subr.mxu0 0.0
      %1430 = vmatpush1.msra.mxu0 0.0
      %1431 = vmatprep.subr.mxu0 0.0
      %1432 = vmatpush1.msra.mxu0 0.0
      %1433 = vmatprep.subr.mxu0 0.0
      %1434 = vmatpush1.msra.mxu0 0.0
      %1435 = vmatprep.subr.mxu0 0.0
      %1436 = vmatpush1.msra.mxu0 0.0
      %1437 = vmatprep.subr.mxu0 0.0
      %1438 = vmatpush1.msra.mxu0 0.0
      %1439 = vmatprep.subr.mxu0 0.0
      %1440 = vmatpush1.msra.mxu0 0.0
      %1441 = vmatprep.subr.mxu0 0.0
      %1442 = vmatpush1.msra.mxu0 0.0
      %1443 = vmatprep.subr.mxu0 0.0
      %1444 = vmatpush1.msra.mxu0 %v1406
      %1445 = vmatprep.subr.mxu0 0.0
      %1446 = vmatpush1.msra.mxu0 %v1404
      %1447 = vmatprep.subr.mxu0 0.0
      %1448 = vmatpush2.msra.mxu0 0.0
      %1449 = vmatprep.subr.mxu0 0.0
      %1450 = vmatpush2.msra.mxu0 0.0
      %1451 = vmatprep.subr.mxu0 0.0
      %1452 = vmatpush2.msra.mxu0 0.0
      %1453 = vmatprep.subr.mxu0 0.0
      %1454 = vmatpush2.msra.mxu0 0.0
      %1455 = vmatprep.subr.mxu0 0.0
      %1456 = vmatpush2.msra.mxu0 0.0
      %1457 = vmatprep.subr.mxu0 0.0
      %1458 = vmatpush2.msra.mxu0 0.0
      %1459 = vmatprep.subr.mxu0 0.0
      %1460 = vmatpush2.msra.mxu0 0.0
      %1461 = vmatprep.subr.mxu0 0.0
      %1462 = vmatpush2.msra.mxu0 0.0
      %1463 = vmatprep.subr.mxu0 0.0
      %1464 = vmatpush2.msra.mxu0 0.0
      %1465 = vmatprep.subr.mxu0 0.0
      %1466 = vmatpush2.msra.mxu0 0.0
      %1467 = vmatprep.subr.mxu0 0.0
      %1468 = vmatpush2.msra.mxu0 0.0
      %1469 = vmatprep.subr.mxu0 0.0
      %1470 = vmatpush2.msra.mxu0 0.0
      %1471 = vmatprep.subr.mxu0 0.0
      %1472 = vmatpush2.msra.mxu0 0.0
      %1473 = vmatprep.subr.mxu0 0.0
      %1474 = vmatpush2.msra.mxu0 0.0
      %1475 = vmatprep.subr.mxu0 0.0
      %1476 = vmatpush2.msra.mxu0 0.0
      %1477 = vmatprep.subr.mxu0 0.0
      %1478 = vmatpush2.msra.mxu0 0.0
      %1479 = vmatprep.mubr.f32.mxu0 0.0
      %1480 = vmatmul.mubr.f32.gmra.mxu0 %v1410
      %v1481 = vpop.f32.mrf.mxu0
      %v1482 = vadd.f32 0.0, %v1481
      %v1483 = vpop.f32.mrf.mxu0
      %1484 = vmatprep.mubr.f32.mxu0 0.0
      %1485 = vmatmul.mubr.f32.gmra.mxu0 %v1413
      %v1486 = vpop.f32.mrf.mxu0
      %v1487 = vadd.f32 0.0, %v1486
      %v1488 = vpop.f32.mrf.mxu0
      %1489 = vdwg.mxu0
      %v1490 = vld [vmem:[%s6] sm:$0xff]
      %v1492 = vsel %vm680, %v1221, 0
      %v1495 = vsel %vm680, %v1226, 0
      %v1498 = vsel %vm680, %v1308, 0
      %v1501 = vsel %vm680, %v1313, 0
      %v1504 = vsel %vm680, %v1395, 0
      %v1507 = vsel %vm680, %v1400, 0
      %v1510 = vsel %vm680, %v1482, 0
      %v1513 = vsel %vm680, %v1487, 0
      %1515 = vmatprep.subr.mxu0 0.0
      %1516 = vmatpush1.msra.mxu0 0.0
      %1517 = vmatprep.subr.mxu0 0.0
      %1518 = vmatpush1.msra.mxu0 0.0
      %1519 = vmatprep.subr.mxu0 0.0
      %1520 = vmatpush1.msra.mxu0 0.0
      %1521 = vmatprep.subr.mxu0 0.0
      %1522 = vmatpush1.msra.mxu0 0.0
      %1523 = vmatprep.subr.mxu0 0.0
      %1524 = vmatpush1.msra.mxu0 0.0
      %1525 = vmatprep.subr.mxu0 0.0
      %1526 = vmatpush1.msra.mxu0 0.0
      %1527 = vmatprep.subr.mxu0 0.0
      %1528 = vmatpush1.msra.mxu0 0.0
      %1529 = vmatprep.subr.mxu0 0.0
      %1530 = vmatpush1.msra.mxu0 0.0
      %1531 = vmatprep.subr.mxu0 0.0
      %1532 = vmatpush1.msra.mxu0 0.0
      %1533 = vmatprep.subr.mxu0 0.0
      %1534 = vmatpush1.msra.mxu0 0.0
      %1535 = vmatprep.subr.mxu0 0.0
      %1536 = vmatpush1.msra.mxu0 0.0
      %1537 = vmatprep.subr.mxu0 0.0
      %1538 = vmatpush1.msra.mxu0 0.0
      %1539 = vmatprep.subr.mxu0 0.0
      %1540 = vmatpush1.msra.mxu0 0.0
      %1541 = vmatprep.subr.mxu0 0.0
      %1542 = vmatpush1.msra.mxu0 0.0
      %1543 = vmatprep.subr.mxu0 0.0
      %1544 = vmatpush1.msra.mxu0 0.0
      %1545 = vmatprep.subr.mxu0 0.0
      %1546 = vmatpush1.msra.mxu0 %v1490
      %1547 = vmatprep.subr.mxu0 0.0
      %1548 = vmatpush2.msra.mxu0 0.0
      %1549 = vmatprep.subr.mxu0 0.0
      %1550 = vmatpush2.msra.mxu0 0.0
      %1551 = vmatprep.subr.mxu0 0.0
      %1552 = vmatpush2.msra.mxu0 0.0
      %1553 = vmatprep.subr.mxu0 0.0
      %1554 = vmatpush2.msra.mxu0 0.0
      %1555 = vmatprep.subr.mxu0 0.0
      %1556 = vmatpush2.msra.mxu0 0.0
      %1557 = vmatprep.subr.mxu0 0.0
      %1558 = vmatpush2.msra.mxu0 0.0
      %1559 = vmatprep.subr.mxu0 0.0
      %1560 = vmatpush2.msra.mxu0 0.0
      %1561 = vmatprep.subr.mxu0 0.0
      %1562 = vmatpush2.msra.mxu0 0.0
      %1563 = vmatprep.subr.mxu0 0.0
      %1564 = vmatpush2.msra.mxu0 0.0
      %1565 = vmatprep.subr.mxu0 0.0
      %1566 = vmatpush2.msra.mxu0 0.0
      %1567 = vmatprep.subr.mxu0 0.0
      %1568 = vmatpush2.msra.mxu0 0.0
      %1569 = vmatprep.subr.mxu0 0.0
      %1570 = vmatpush2.msra.mxu0 0.0
      %1571 = vmatprep.subr.mxu0 0.0
      %1572 = vmatpush2.msra.mxu0 0.0
      %1573 = vmatprep.subr.mxu0 0.0
      %1574 = vmatpush2.msra.mxu0 0.0
      %1575 = vmatprep.subr.mxu0 0.0
      %1576 = vmatpush2.msra.mxu0 0.0
      %1577 = vmatprep.subr.mxu0 0.0
      %1578 = vmatpush2.msra.mxu0 0.0
      %1579 = vmatprep.mubr.f32.mxu0 0.0
      %1580 = vmatmul.mubr.f32.gmra.mxu0 %v1492
      %v1581 = vpop.f32.mrf.mxu0
      %v1582 = vadd.f32 0.0, %v1581
      %v1583 = vpop.f32.mrf.mxu0
      %1584 = vmatprep.mubr.f32.mxu0 0.0
      %1585 = vmatmul.mubr.f32.gmra.mxu0 %v1495
      %v1586 = vpop.f32.mrf.mxu0
      %v1587 = vadd.f32 0.0, %v1586
      %v1588 = vpop.f32.mrf.mxu0
      %1589 = vmatprep.mubr.f32.mxu0 0.0
      %1590 = vmatmul.mubr.f32.gmra.mxu0 %v1498
      %v1591 = vpop.f32.mrf.mxu0
      %v1592 = vadd.f32 0.0, %v1591
      %v1593 = vpop.f32.mrf.mxu0
      %1594 = vmatprep.mubr.f32.mxu0 0.0
      %1595 = vmatmul.mubr.f32.gmra.mxu0 %v1501
      %v1596 = vpop.f32.mrf.mxu0
      %v1597 = vadd.f32 0.0, %v1596
      %v1598 = vpop.f32.mrf.mxu0
      %1599 = vmatprep.mubr.f32.mxu0 0.0
      %1600 = vmatmul.mubr.f32.gmra.mxu0 %v1504
      %v1601 = vpop.f32.mrf.mxu0
      %v1602 = vadd.f32 0.0, %v1601
      %v1603 = vpop.f32.mrf.mxu0
      %1604 = vmatprep.mubr.f32.mxu0 0.0
      %1605 = vmatmul.mubr.f32.gmra.mxu0 %v1507
      %v1606 = vpop.f32.mrf.mxu0
      %v1607 = vadd.f32 0.0, %v1606
      %v1608 = vpop.f32.mrf.mxu0
      %1609 = vmatprep.mubr.f32.mxu0 0.0
      %1610 = vmatmul.mubr.f32.gmra.mxu0 %v1510
      %v1611 = vpop.f32.mrf.mxu0
      %v1612 = vadd.f32 0.0, %v1611
      %v1613 = vpop.f32.mrf.mxu0
      %1614 = vmatprep.mubr.f32.mxu0 0.0
      %1615 = vmatmul.mubr.f32.gmra.mxu0 %v1513
      %v1616 = vpop.f32.mrf.mxu0
      %v1617 = vadd.f32 0.0, %v1616
      %v1618 = vpop.f32.mrf.mxu0
      %1619 = vdwg.mxu0
      %v1621 = vlaneseq
      %v1622 = vshrl.u32 %v1621, 7
      %v1623 = vsub.s32 0, %v1622
      %v1624 = vrot.slane %v677, %v1623
      %v1626 = vadd.f32 %v1624, %v1582
      %v1627 = vadd.f32 %v1624, %v1587
      %v1628 = vadd.f32 %v1624, %v1592
      %v1629 = vadd.f32 %v1624, %v1597
      %v1630 = vadd.f32 %v1624, %v1602
      %v1631 = vadd.f32 %v1624, %v1607
      %v1632 = vadd.f32 %v1624, %v1612
      %v1633 = vadd.f32 %v1624, %v1617
      %s1634 = scalar_lea.vmem %s8, 16
      %v1635 = vld [vmem:[%s1634] sm:$0xff]
      %v1636 = vld [vmem:[%s1634 + $0x8] sm:$0xff]
      %1637 = vrot.lane.b32.xlu0 %v499, 120
      %v1638 = vpop.permute.xlu0 %1637
      %1639 = vrot.lane.b32.xlu0 %v504, 120
      %v1640 = vpop.permute.xlu0 %1639
      %1641 = vrot.lane.b32.xlu0 %v639, 120
      %v1642 = vpop.permute.xlu0 %1641
      %1643 = vrot.lane.b32.xlu0 %v644, 120
      %v1644 = vpop.permute.xlu0 %1643
      %v1645 = vsel %vm680, %v1638, 0
      %v1647 = vsel %vm680, %v1640, 0
      %v1649 = vsel %vm680, %v1642, 0
      %v1651 = vsel %vm680, %v1644, 0
      %1653 = vmatprep.subr.mxu0 0.0
      %1654 = vmatpush1.xpose.msra.mxu0 0.0
      %1655 = vmatprep.subr.mxu0 0.0
      %1656 = vmatpush1.xpose.msra.mxu0 0.0
      %1657 = vmatprep.subr.mxu0 0.0
      %1658 = vmatpush1.xpose.msra.mxu0 0.0
      %1659 = vmatprep.subr.mxu0 0.0
      %1660 = vmatpush1.xpose.msra.mxu0 0.0
      %1661 = vmatprep.subr.mxu0 0.0
      %1662 = vmatpush1.xpose.msra.mxu0 0.0
      %1663 = vmatprep.subr.mxu0 0.0
      %1664 = vmatpush1.xpose.msra.mxu0 0.0
      %1665 = vmatprep.subr.mxu0 0.0
      %1666 = vmatpush1.xpose.msra.mxu0 0.0
      %1667 = vmatprep.subr.mxu0 0.0
      %1668 = vmatpush1.xpose.msra.mxu0 0.0
      %1669 = vmatprep.subr.mxu0 0.0
      %1670 = vmatpush1.xpose.msra.mxu0 0.0
      %1671 = vmatprep.subr.mxu0 0.0
      %1672 = vmatpush1.xpose.msra.mxu0 0.0
      %1673 = vmatprep.subr.mxu0 0.0
      %1674 = vmatpush1.xpose.msra.mxu0 0.0
      %1675 = vmatprep.subr.mxu0 0.0
      %1676 = vmatpush1.xpose.msra.mxu0 0.0
      %1677 = vmatprep.subr.mxu0 0.0
      %1678 = vmatpush1.xpose.msra.mxu0 0.0
      %1679 = vmatprep.subr.mxu0 0.0
      %1680 = vmatpush1.xpose.msra.mxu0 0.0
      %1681 = vmatprep.subr.mxu0 0.0
      %1682 = vmatpush1.xpose.msra.mxu0 %v1651
      %1683 = vmatprep.subr.mxu0 0.0
      %1684 = vmatpush1.xpose.msra.mxu0 %v1649
      %1685 = vmatprep.subr.mxu0 0.0
      %1686 = vmatpush2.xpose.msra.mxu0 0.0
      %1687 = vmatprep.subr.mxu0 0.0
      %1688 = vmatpush2.xpose.msra.mxu0 0.0
      %1689 = vmatprep.subr.mxu0 0.0
      %1690 = vmatpush2.xpose.msra.mxu0 0.0
      %1691 = vmatprep.subr.mxu0 0.0
      %1692 = vmatpush2.xpose.msra.mxu0 0.0
      %1693 = vmatprep.subr.mxu0 0.0
      %1694 = vmatpush2.xpose.msra.mxu0 0.0
      %1695 = vmatprep.subr.mxu0 0.0
      %1696 = vmatpush2.xpose.msra.mxu0 0.0
      %1697 = vmatprep.subr.mxu0 0.0
      %1698 = vmatpush2.xpose.msra.mxu0 0.0
      %1699 = vmatprep.subr.mxu0 0.0
      %1700 = vmatpush2.xpose.msra.mxu0 0.0
      %1701 = vmatprep.subr.mxu0 0.0
      %1702 = vmatpush2.xpose.msra.mxu0 0.0
      %1703 = vmatprep.subr.mxu0 0.0
      %1704 = vmatpush2.xpose.msra.mxu0 0.0
      %1705 = vmatprep.subr.mxu0 0.0
      %1706 = vmatpush2.xpose.msra.mxu0 0.0
      %1707 = vmatprep.subr.mxu0 0.0
      %1708 = vmatpush2.xpose.msra.mxu0 0.0
      %1709 = vmatprep.subr.mxu0 0.0
      %1710 = vmatpush2.xpose.msra.mxu0 0.0
      %1711 = vmatprep.subr.mxu0 0.0
      %1712 = vmatpush2.xpose.msra.mxu0 0.0
      %1713 = vmatprep.subr.mxu0 0.0
      %1714 = vmatpush2.xpose.msra.mxu0 0.0
      %1715 = vmatprep.subr.mxu0 0.0
      %1716 = vmatpush2.xpose.msra.mxu0 0.0
      %1717 = vmatprep.mubr.f32.mxu0 0.0
      %1718 = vmatmul.mubr.f32.gmra.mxu0 %v1645
      %v1719 = vpop.f32.mrf.mxu0
      %v1720 = vadd.f32 %v1635, %v1719
      %v1721 = vpop.f32.mrf.mxu0
      %1722 = vmatprep.mubr.f32.mxu0 0.0
      %1723 = vmatmul.mubr.f32.gmra.mxu0 %v1647
      %v1724 = vpop.f32.mrf.mxu0
      %v1725 = vadd.f32 %v1636, %v1724
      %v1726 = vpop.f32.mrf.mxu0
      %1727 = vdwg.mxu0
      %1728 = vrot.lane.b32.xlu0 %v509, 120
      %v1729 = vpop.permute.xlu0 %1728
      %1730 = vrot.lane.b32.xlu0 %v514, 120
      %v1731 = vpop.permute.xlu0 %1730
      %1732 = vrot.lane.b32.xlu0 %v649, 120
      %v1733 = vpop.permute.xlu0 %1732
      %1734 = vrot.lane.b32.xlu0 %v654, 120
      %v1735 = vpop.permute.xlu0 %1734
      %v1736 = vsel %vm680, %v1729, 0
      %v1738 = vsel %vm680, %v1731, 0
      %v1740 = vsel %vm680, %v1733, 0
      %v1742 = vsel %vm680, %v1735, 0
      %1744 = vmatprep.subr.mxu0 0.0
      %1745 = vmatpush1.xpose.msra.mxu0 0.0
      %1746 = vmatprep.subr.mxu0 0.0
      %1747 = vmatpush1.xpose.msra.mxu0 0.0
      %1748 = vmatprep.subr.mxu0 0.0
      %1749 = vmatpush1.xpose.msra.mxu0 0.0
      %1750 = vmatprep.subr.mxu0 0.0
      %1751 = vmatpush1.xpose.msra.mxu0 0.0
      %1752 = vmatprep.subr.mxu0 0.0
      %1753 = vmatpush1.xpose.msra.mxu0 0.0
      %1754 = vmatprep.subr.mxu0 0.0
      %1755 = vmatpush1.xpose.msra.mxu0 0.0
      %1756 = vmatprep.subr.mxu0 0.0
      %1757 = vmatpush1.xpose.msra.mxu0 0.0
      %1758 = vmatprep.subr.mxu0 0.0
      %1759 = vmatpush1.xpose.msra.mxu0 0.0
      %1760 = vmatprep.subr.mxu0 0.0
      %1761 = vmatpush1.xpose.msra.mxu0 0.0
      %1762 = vmatprep.subr.mxu0 0.0
      %1763 = vmatpush1.xpose.msra.mxu0 0.0
      %1764 = vmatprep.subr.mxu0 0.0
      %1765 = vmatpush1.xpose.msra.mxu0 0.0
      %1766 = vmatprep.subr.mxu0 0.0
      %1767 = vmatpush1.xpose.msra.mxu0 0.0
      %1768 = vmatprep.subr.mxu0 0.0
      %1769 = vmatpush1.xpose.msra.mxu0 0.0
      %1770 = vmatprep.subr.mxu0 0.0
      %1771 = vmatpush1.xpose.msra.mxu0 0.0
      %1772 = vmatprep.subr.mxu0 0.0
      %1773 = vmatpush1.xpose.msra.mxu0 %v1742
      %1774 = vmatprep.subr.mxu0 0.0
      %1775 = vmatpush1.xpose.msra.mxu0 %v1740
      %1776 = vmatprep.subr.mxu0 0.0
      %1777 = vmatpush2.xpose.msra.mxu0 0.0
      %1778 = vmatprep.subr.mxu0 0.0
      %1779 = vmatpush2.xpose.msra.mxu0 0.0
      %1780 = vmatprep.subr.mxu0 0.0
      %1781 = vmatpush2.xpose.msra.mxu0 0.0
      %1782 = vmatprep.subr.mxu0 0.0
      %1783 = vmatpush2.xpose.msra.mxu0 0.0
      %1784 = vmatprep.subr.mxu0 0.0
      %1785 = vmatpush2.xpose.msra.mxu0 0.0
      %1786 = vmatprep.subr.mxu0 0.0
      %1787 = vmatpush2.xpose.msra.mxu0 0.0
      %1788 = vmatprep.subr.mxu0 0.0
      %1789 = vmatpush2.xpose.msra.mxu0 0.0
      %1790 = vmatprep.subr.mxu0 0.0
      %1791 = vmatpush2.xpose.msra.mxu0 0.0
      %1792 = vmatprep.subr.mxu0 0.0
      %1793 = vmatpush2.xpose.msra.mxu0 0.0
      %1794 = vmatprep.subr.mxu0 0.0
      %1795 = vmatpush2.xpose.msra.mxu0 0.0
      %1796 = vmatprep.subr.mxu0 0.0
      %1797 = vmatpush2.xpose.msra.mxu0 0.0
      %1798 = vmatprep.subr.mxu0 0.0
      %1799 = vmatpush2.xpose.msra.mxu0 0.0
      %1800 = vmatprep.subr.mxu0 0.0
      %1801 = vmatpush2.xpose.msra.mxu0 0.0
      %1802 = vmatprep.subr.mxu0 0.0
      %1803 = vmatpush2.xpose.msra.mxu0 0.0
      %1804 = vmatprep.subr.mxu0 0.0
      %1805 = vmatpush2.xpose.msra.mxu0 0.0
      %1806 = vmatprep.subr.mxu0 0.0
      %1807 = vmatpush2.xpose.msra.mxu0 0.0
      %1808 = vmatprep.mubr.f32.mxu0 0.0
      %1809 = vmatmul.mubr.f32.gmra.mxu0 %v1736
      %v1810 = vpop.f32.mrf.mxu0
      %v1811 = vadd.f32 %v1635, %v1810
      %v1812 = vpop.f32.mrf.mxu0
      %1813 = vmatprep.mubr.f32.mxu0 0.0
      %1814 = vmatmul.mubr.f32.gmra.mxu0 %v1738
      %v1815 = vpop.f32.mrf.mxu0
      %v1816 = vadd.f32 %v1636, %v1815
      %v1817 = vpop.f32.mrf.mxu0
      %1818 = vdwg.mxu0
      %1819 = vrot.lane.b32.xlu0 %v519, 120
      %v1820 = vpop.permute.xlu0 %1819
      %1821 = vrot.lane.b32.xlu0 %v524, 120
      %v1822 = vpop.permute.xlu0 %1821
      %1823 = vrot.lane.b32.xlu0 %v659, 120
      %v1824 = vpop.permute.xlu0 %1823
      %1825 = vrot.lane.b32.xlu0 %v664, 120
      %v1826 = vpop.permute.xlu0 %1825
      %v1827 = vsel %vm680, %v1820, 0
      %v1829 = vsel %vm680, %v1822, 0
      %v1831 = vsel %vm680, %v1824, 0
      %v1833 = vsel %vm680, %v1826, 0
      %1835 = vmatprep.subr.mxu0 0.0
      %1836 = vmatpush1.xpose.msra.mxu0 0.0
      %1837 = vmatprep.subr.mxu0 0.0
      %1838 = vmatpush1.xpose.msra.mxu0 0.0
      %1839 = vmatprep.subr.mxu0 0.0
      %1840 = vmatpush1.xpose.msra.mxu0 0.0
      %1841 = vmatprep.subr.mxu0 0.0
      %1842 = vmatpush1.xpose.msra.mxu0 0.0
      %1843 = vmatprep.subr.mxu0 0.0
      %1844 = vmatpush1.xpose.msra.mxu0 0.0
      %1845 = vmatprep.subr.mxu0 0.0
      %1846 = vmatpush1.xpose.msra.mxu0 0.0
      %1847 = vmatprep.subr.mxu0 0.0
      %1848 = vmatpush1.xpose.msra.mxu0 0.0
      %1849 = vmatprep.subr.mxu0 0.0
      %1850 = vmatpush1.xpose.msra.mxu0 0.0
      %1851 = vmatprep.subr.mxu0 0.0
      %1852 = vmatpush1.xpose.msra.mxu0 0.0
      %1853 = vmatprep.subr.mxu0 0.0
      %1854 = vmatpush1.xpose.msra.mxu0 0.0
      %1855 = vmatprep.subr.mxu0 0.0
      %1856 = vmatpush1.xpose.msra.mxu0 0.0
      %1857 = vmatprep.subr.mxu0 0.0
      %1858 = vmatpush1.xpose.msra.mxu0 0.0
      %1859 = vmatprep.subr.mxu0 0.0
      %1860 = vmatpush1.xpose.msra.mxu0 0.0
      %1861 = vmatprep.subr.mxu0 0.0
      %1862 = vmatpush1.xpose.msra.mxu0 0.0
      %1863 = vmatprep.subr.mxu0 0.0
      %1864 = vmatpush1.xpose.msra.mxu0 %v1833
      %1865 = vmatprep.subr.mxu0 0.0
      %1866 = vmatpush1.xpose.msra.mxu0 %v1831
      %1867 = vmatprep.subr.mxu0 0.0
      %1868 = vmatpush2.xpose.msra.mxu0 0.0
      %1869 = vmatprep.subr.mxu0 0.0
      %1870 = vmatpush2.xpose.msra.mxu0 0.0
      %1871 = vmatprep.subr.mxu0 0.0
      %1872 = vmatpush2.xpose.msra.mxu0 0.0
      %1873 = vmatprep.subr.mxu0 0.0
      %1874 = vmatpush2.xpose.msra.mxu0 0.0
      %1875 = vmatprep.subr.mxu0 0.0
      %1876 = vmatpush2.xpose.msra.mxu0 0.0
      %1877 = vmatprep.subr.mxu0 0.0
      %1878 = vmatpush2.xpose.msra.mxu0 0.0
      %1879 = vmatprep.subr.mxu0 0.0
      %1880 = vmatpush2.xpose.msra.mxu0 0.0
      %1881 = vmatprep.subr.mxu0 0.0
      %1882 = vmatpush2.xpose.msra.mxu0 0.0
      %1883 = vmatprep.subr.mxu0 0.0
      %1884 = vmatpush2.xpose.msra.mxu0 0.0
      %1885 = vmatprep.subr.mxu0 0.0
      %1886 = vmatpush2.xpose.msra.mxu0 0.0
      %1887 = vmatprep.subr.mxu0 0.0
      %1888 = vmatpush2.xpose.msra.mxu0 0.0
      %1889 = vmatprep.subr.mxu0 0.0
      %1890 = vmatpush2.xpose.msra.mxu0 0.0
      %1891 = vmatprep.subr.mxu0 0.0
      %1892 = vmatpush2.xpose.msra.mxu0 0.0
      %1893 = vmatprep.subr.mxu0 0.0
      %1894 = vmatpush2.xpose.msra.mxu0 0.0
      %1895 = vmatprep.subr.mxu0 0.0
      %1896 = vmatpush2.xpose.msra.mxu0 0.0
      %1897 = vmatprep.subr.mxu0 0.0
      %1898 = vmatpush2.xpose.msra.mxu0 0.0
      %1899 = vmatprep.mubr.f32.mxu0 0.0
      %1900 = vmatmul.mubr.f32.gmra.mxu0 %v1827
      %v1901 = vpop.f32.mrf.mxu0
      %v1902 = vadd.f32 %v1635, %v1901
      %v1903 = vpop.f32.mrf.mxu0
      %1904 = vmatprep.mubr.f32.mxu0 0.0
      %1905 = vmatmul.mubr.f32.gmra.mxu0 %v1829
      %v1906 = vpop.f32.mrf.mxu0
      %v1907 = vadd.f32 %v1636, %v1906
      %v1908 = vpop.f32.mrf.mxu0
      %1909 = vdwg.mxu0
      %1910 = vrot.lane.b32.xlu0 %v529, 120
      %v1911 = vpop.permute.xlu0 %1910
      %1912 = vrot.lane.b32.xlu0 %v534, 120
      %v1913 = vpop.permute.xlu0 %1912
      %1914 = vrot.lane.b32.xlu0 %v669, 120
      %v1915 = vpop.permute.xlu0 %1914
      %1916 = vrot.lane.b32.xlu0 %v674, 120
      %v1917 = vpop.permute.xlu0 %1916
      %v1918 = vsel %vm680, %v1911, 0
      %v1920 = vsel %vm680, %v1913, 0
      %v1922 = vsel %vm680, %v1915, 0
      %v1924 = vsel %vm680, %v1917, 0
      %1926 = vmatprep.subr.mxu0 0.0
      %1927 = vmatpush1.xpose.msra.mxu0 0.0
      %1928 = vmatprep.subr.mxu0 0.0
      %1929 = vmatpush1.xpose.msra.mxu0 0.0
      %1930 = vmatprep.subr.mxu0 0.0
      %1931 = vmatpush1.xpose.msra.mxu0 0.0
      %1932 = vmatprep.subr.mxu0 0.0
      %1933 = vmatpush1.xpose.msra.mxu0 0.0
      %1934 = vmatprep.subr.mxu0 0.0
      %1935 = vmatpush1.xpose.msra.mxu0 0.0
      %1936 = vmatprep.subr.mxu0 0.0
      %1937 = vmatpush1.xpose.msra.mxu0 0.0
      %1938 = vmatprep.subr.mxu0 0.0
      %1939 = vmatpush1.xpose.msra.mxu0 0.0
      %1940 = vmatprep.subr.mxu0 0.0
      %1941 = vmatpush1.xpose.msra.mxu0 0.0
      %1942 = vmatprep.subr.mxu0 0.0
      %1943 = vmatpush1.xpose.msra.mxu0 0.0
      %1944 = vmatprep.subr.mxu0 0.0
      %1945 = vmatpush1.xpose.msra.mxu0 0.0
      %1946 = vmatprep.subr.mxu0 0.0
      %1947 = vmatpush1.xpose.msra.mxu0 0.0
      %1948 = vmatprep.subr.mxu0 0.0
      %1949 = vmatpush1.xpose.msra.mxu0 0.0
      %1950 = vmatprep.subr.mxu0 0.0
      %1951 = vmatpush1.xpose.msra.mxu0 0.0
      %1952 = vmatprep.subr.mxu0 0.0
      %1953 = vmatpush1.xpose.msra.mxu0 0.0
      %1954 = vmatprep.subr.mxu0 0.0
      %1955 = vmatpush1.xpose.msra.mxu0 %v1924
      %1956 = vmatprep.subr.mxu0 0.0
      %1957 = vmatpush1.xpose.msra.mxu0 %v1922
      %1958 = vmatprep.subr.mxu0 0.0
      %1959 = vmatpush2.xpose.msra.mxu0 0.0
      %1960 = vmatprep.subr.mxu0 0.0
      %1961 = vmatpush2.xpose.msra.mxu0 0.0
      %1962 = vmatprep.subr.mxu0 0.0
      %1963 = vmatpush2.xpose.msra.mxu0 0.0
      %1964 = vmatprep.subr.mxu0 0.0
      %1965 = vmatpush2.xpose.msra.mxu0 0.0
      %1966 = vmatprep.subr.mxu0 0.0
      %1967 = vmatpush2.xpose.msra.mxu0 0.0
      %1968 = vmatprep.subr.mxu0 0.0
      %1969 = vmatpush2.xpose.msra.mxu0 0.0
      %1970 = vmatprep.subr.mxu0 0.0
      %1971 = vmatpush2.xpose.msra.mxu0 0.0
      %1972 = vmatprep.subr.mxu0 0.0
      %1973 = vmatpush2.xpose.msra.mxu0 0.0
      %1974 = vmatprep.subr.mxu0 0.0
      %1975 = vmatpush2.xpose.msra.mxu0 0.0
      %1976 = vmatprep.subr.mxu0 0.0
      %1977 = vmatpush2.xpose.msra.mxu0 0.0
      %1978 = vmatprep.subr.mxu0 0.0
      %1979 = vmatpush2.xpose.msra.mxu0 0.0
      %1980 = vmatprep.subr.mxu0 0.0
      %1981 = vmatpush2.xpose.msra.mxu0 0.0
      %1982 = vmatprep.subr.mxu0 0.0
      %1983 = vmatpush2.xpose.msra.mxu0 0.0
      %1984 = vmatprep.subr.mxu0 0.0
      %1985 = vmatpush2.xpose.msra.mxu0 0.0
      %1986 = vmatprep.subr.mxu0 0.0
      %1987 = vmatpush2.xpose.msra.mxu0 0.0
      %1988 = vmatprep.subr.mxu0 0.0
      %1989 = vmatpush2.xpose.msra.mxu0 0.0
      %1990 = vmatprep.mubr.f32.mxu0 0.0
      %1991 = vmatmul.mubr.f32.gmra.mxu0 %v1918
      %v1992 = vpop.f32.mrf.mxu0
      %v1993 = vadd.f32 %v1635, %v1992
      %v1994 = vpop.f32.mrf.mxu0
      %1995 = vmatprep.mubr.f32.mxu0 0.0
      %1996 = vmatmul.mubr.f32.gmra.mxu0 %v1920
      %v1997 = vpop.f32.mrf.mxu0
      %v1998 = vadd.f32 %v1636, %v1997
      %v1999 = vpop.f32.mrf.mxu0
      %2000 = vdwg.mxu0
      %s2001 = scalar_lea.vmem %s9, 32
      %v2002 = vld [vmem:[%s2001] sm:$0xf]
      %v2003 = vld [vmem:[%s2001 + $0x4] sm:$0xf]
      %v2004 = vld [vmem:[%s2001 + $0x8] sm:$0xf]
      %v2005 = vld [vmem:[%s2001 + $0xc] sm:$0xf]
      %v2006 = vld [vmem:[%s2001 + $0x10] sm:$0xf]
      %v2007 = vld [vmem:[%s2001 + $0x14] sm:$0xf]
      %v2008 = vld [vmem:[%s2001 + $0x18] sm:$0xf]
      %v2009 = vld [vmem:[%s2001 + $0x1c] sm:$0xf]
      %v2010 = vunpack.c.l.bf16 %v2002
      %v2011 = vunpack.c.l.bf16 %v2003
      %v2012 = vunpack.c.l.bf16 %v2004
      %v2013 = vunpack.c.l.bf16 %v2005
      %v2014 = vunpack.c.l.bf16 %v2006
      %v2015 = vunpack.c.l.bf16 %v2007
      %v2016 = vunpack.c.l.bf16 %v2008
      %v2017 = vunpack.c.l.bf16 %v2009
      %v2018 = vadd.f32 %v1720, %v2010
      %v2019 = vadd.f32 %v1725, %v2011
      %v2020 = vadd.f32 %v1811, %v2012
      %v2021 = vadd.f32 %v1816, %v2013
      %v2022 = vadd.f32 %v1902, %v2014
      %v2023 = vadd.f32 %v1907, %v2015
      %v2024 = vadd.f32 %v1993, %v2016
      %v2025 = vadd.f32 %v1998, %v2017
      %v2026 = vsel %vm1053, %v2018, -inf
      %2027 = vmax.xlane.f32.xlu0 %v2026
      %v2028 = vpop.xlane.xlu0 %2027
      %v2029 = vsel %vm1053, %v2019, -inf
      %2030 = vmax.xlane.f32.xlu0 %v2029
      %v2031 = vpop.xlane.xlu0 %2030
      %v2032 = vsel %vm1053, %v2020, -inf
      %2033 = vmax.xlane.f32.xlu0 %v2032
      %v2034 = vpop.xlane.xlu0 %2033
      %v2035 = vsel %vm1053, %v2021, -inf
      %2036 = vmax.xlane.f32.xlu0 %v2035
      %v2037 = vpop.xlane.xlu0 %2036
      %v2038 = vsel %vm1053, %v2022, -inf
      %2039 = vmax.xlane.f32.xlu0 %v2038
      %v2040 = vpop.xlane.xlu0 %2039
      %v2041 = vsel %vm1053, %v2023, -inf
      %2042 = vmax.xlane.f32.xlu0 %v2041
      %v2043 = vpop.xlane.xlu0 %2042
      %v2044 = vsel %vm1053, %v2024, -inf
      %2045 = vmax.xlane.f32.xlu0 %v2044
      %v2046 = vpop.xlane.xlu0 %2045
      %v2047 = vsel %vm1053, %v2025, -inf
      %2048 = vmax.xlane.f32.xlu0 %v2047
      %v2049 = vpop.xlane.xlu0 %2048
      %v2050 = vsub.f32 %v2018, %v2028
      %v2051 = vsub.f32 %v2019, %v2031
      %v2052 = vsub.f32 %v2020, %v2034
      %v2053 = vsub.f32 %v2021, %v2037
      %v2054 = vsub.f32 %v2022, %v2040
      %v2055 = vsub.f32 %v2023, %v2043
      %v2056 = vsub.f32 %v2024, %v2046
      %v2057 = vsub.f32 %v2025, %v2049
      %v2058 = vmul.f32 %v2050, 1.442695
      %v2059 = vpow.pop %v2058
      %v2060 = vmul.f32 %v2051, 1.442695
      %v2061 = vpow.pop %v2060
      %v2062 = vmul.f32 %v2052, 1.442695
      %v2063 = vpow.pop %v2062
      %v2064 = vmul.f32 %v2053, 1.442695
      %v2065 = vpow.pop %v2064
      %v2066 = vmul.f32 %v2054, 1.442695
      %v2067 = vpow.pop %v2066
      %v2068 = vmul.f32 %v2055, 1.442695
      %v2069 = vpow.pop %v2068
      %v2070 = vmul.f32 %v2056, 1.442695
      %v2071 = vpow.pop %v2070
      %v2072 = vmul.f32 %v2057, 1.442695
      %v2073 = vpow.pop %v2072
      %v2074 = vsel %vm1053, %v2059, 0.0
      %2075 = vadd.xlane.f32.xlu0 %v2074
      %v2076 = vpop.xlane.xlu0 %2075
      %v2077 = vsel %vm1053, %v2061, 0.0
      %2078 = vadd.xlane.f32.xlu0 %v2077
      %v2079 = vpop.xlane.xlu0 %2078
      %v2080 = vsel %vm1053, %v2063, 0.0
      %2081 = vadd.xlane.f32.xlu0 %v2080
      %v2082 = vpop.xlane.xlu0 %2081
      %v2083 = vsel %vm1053, %v2065, 0.0
      %2084 = vadd.xlane.f32.xlu0 %v2083
      %v2085 = vpop.xlane.xlu0 %2084
      %v2086 = vsel %vm1053, %v2067, 0.0
      %2087 = vadd.xlane.f32.xlu0 %v2086
      %v2088 = vpop.xlane.xlu0 %2087
      %v2089 = vsel %vm1053, %v2069, 0.0
      %2090 = vadd.xlane.f32.xlu0 %v2089
      %v2091 = vpop.xlane.xlu0 %2090
      %v2092 = vsel %vm1053, %v2071, 0.0
      %2093 = vadd.xlane.f32.xlu0 %v2092
      %v2094 = vpop.xlane.xlu0 %2093
      %v2095 = vsel %vm1053, %v2073, 0.0
      %2096 = vadd.xlane.f32.xlu0 %v2095
      %v2097 = vpop.xlane.xlu0 %2096
      %v2098 = vrcp.pop %v2076
      %v2099 = vrcp.pop %v2079
      %v2100 = vrcp.pop %v2082
      %v2101 = vrcp.pop %v2085
      %v2102 = vrcp.pop %v2088
      %v2103 = vrcp.pop %v2091
      %v2104 = vrcp.pop %v2094
      %v2105 = vrcp.pop %v2097
      %v2106 = vmul.f32 %v2059, %v2098
      %v2107 = vmul.f32 %v2061, %v2099
      %v2108 = vmul.f32 %v2063, %v2100
      %v2109 = vmul.f32 %v2065, %v2101
      %v2110 = vmul.f32 %v2067, %v2102
      %v2111 = vmul.f32 %v2069, %v2103
      %v2112 = vmul.f32 %v2071, %v2104
      %v2113 = vmul.f32 %v2073, %v2105
      %2114 = vrot.lane.b32.xlu0 %v639, 88
      %v2115 = vpop.permute.xlu0 %2114
      %2116 = vrot.lane.b32.xlu0 %v644, 88
      %v2117 = vpop.permute.xlu0 %2116
      %v2121 = vsel %vm1053, %v2106, 0
      %v2124 = vsel %vm1053, %v2107, 0
      %2126 = vmatprep.subr.mxu0 0.0
      %2127 = vmatpush1.msra.mxu0 0.0
      %2128 = vmatprep.subr.mxu0 0.0
      %2129 = vmatpush1.msra.mxu0 0.0
      %2130 = vmatprep.subr.mxu0 0.0
      %2131 = vmatpush1.msra.mxu0 0.0
      %2132 = vmatprep.subr.mxu0 0.0
      %2133 = vmatpush1.msra.mxu0 0.0
      %2134 = vmatprep.subr.mxu0 0.0
      %2135 = vmatpush1.msra.mxu0 0.0
      %2136 = vmatprep.subr.mxu0 0.0
      %2137 = vmatpush1.msra.mxu0 0.0
      %2138 = vmatprep.subr.mxu0 0.0
      %2139 = vmatpush1.msra.mxu0 0.0
      %2140 = vmatprep.subr.mxu0 0.0
      %2141 = vmatpush1.msra.mxu0 0.0
      %2142 = vmatprep.subr.mxu0 0.0
      %2143 = vmatpush1.msra.mxu0 0.0
      %2144 = vmatprep.subr.mxu0 0.0
      %2145 = vmatpush1.msra.mxu0 0.0
      %2146 = vmatprep.subr.mxu0 0.0
      %2147 = vmatpush1.msra.mxu0 0.0
      %2148 = vmatprep.subr.mxu0 0.0
      %2149 = vmatpush1.msra.mxu0 0.0
      %2150 = vmatprep.subr.mxu0 0.0
      %2151 = vmatpush1.msra.mxu0 0.0
      %2152 = vmatprep.subr.mxu0 0.0
      %2153 = vmatpush1.msra.mxu0 0.0
      %2154 = vmatprep.subr.mxu0 0.0
      %2155 = vmatpush1.msra.mxu0 %v2117
      %2156 = vmatprep.subr.mxu0 0.0
      %2157 = vmatpush1.msra.mxu0 %v2115
      %2158 = vmatprep.subr.mxu0 0.0
      %2159 = vmatpush2.msra.mxu0 0.0
      %2160 = vmatprep.subr.mxu0 0.0
      %2161 = vmatpush2.msra.mxu0 0.0
      %2162 = vmatprep.subr.mxu0 0.0
      %2163 = vmatpush2.msra.mxu0 0.0
      %2164 = vmatprep.subr.mxu0 0.0
      %2165 = vmatpush2.msra.mxu0 0.0
      %2166 = vmatprep.subr.mxu0 0.0
      %2167 = vmatpush2.msra.mxu0 0.0
      %2168 = vmatprep.subr.mxu0 0.0
      %2169 = vmatpush2.msra.mxu0 0.0
      %2170 = vmatprep.subr.mxu0 0.0
      %2171 = vmatpush2.msra.mxu0 0.0
      %2172 = vmatprep.subr.mxu0 0.0
      %2173 = vmatpush2.msra.mxu0 0.0
      %2174 = vmatprep.subr.mxu0 0.0
      %2175 = vmatpush2.msra.mxu0 0.0
      %2176 = vmatprep.subr.mxu0 0.0
      %2177 = vmatpush2.msra.mxu0 0.0
      %2178 = vmatprep.subr.mxu0 0.0
      %2179 = vmatpush2.msra.mxu0 0.0
      %2180 = vmatprep.subr.mxu0 0.0
      %2181 = vmatpush2.msra.mxu0 0.0
      %2182 = vmatprep.subr.mxu0 0.0
      %2183 = vmatpush2.msra.mxu0 0.0
      %2184 = vmatprep.subr.mxu0 0.0
      %2185 = vmatpush2.msra.mxu0 0.0
      %2186 = vmatprep.subr.mxu0 0.0
      %2187 = vmatpush2.msra.mxu0 0.0
      %2188 = vmatprep.subr.mxu0 0.0
      %2189 = vmatpush2.msra.mxu0 0.0
      %2190 = vmatprep.mubr.f32.mxu0 0.0
      %2191 = vmatmul.mubr.f32.gmra.mxu0 %v2121
      %v2192 = vpop.f32.mrf.mxu0
      %v2193 = vadd.f32 0.0, %v2192
      %v2194 = vpop.f32.mrf.mxu0
      %2195 = vmatprep.mubr.f32.mxu0 0.0
      %2196 = vmatmul.mubr.f32.gmra.mxu0 %v2124
      %v2197 = vpop.f32.mrf.mxu0
      %v2198 = vadd.f32 0.0, %v2197
      %v2199 = vpop.f32.mrf.mxu0
      %2200 = vdwg.mxu0
      %2201 = vrot.lane.b32.xlu0 %v649, 88
      %v2202 = vpop.permute.xlu0 %2201
      %2203 = vrot.lane.b32.xlu0 %v654, 88
      %v2204 = vpop.permute.xlu0 %2203
      %v2208 = vsel %vm1053, %v2108, 0
      %v2211 = vsel %vm1053, %v2109, 0
      %2213 = vmatprep.subr.mxu0 0.0
      %2214 = vmatpush1.msra.mxu0 0.0
      %2215 = vmatprep.subr.mxu0 0.0
      %2216 = vmatpush1.msra.mxu0 0.0
      %2217 = vmatprep.subr.mxu0 0.0
      %2218 = vmatpush1.msra.mxu0 0.0
      %2219 = vmatprep.subr.mxu0 0.0
      %2220 = vmatpush1.msra.mxu0 0.0
      %2221 = vmatprep.subr.mxu0 0.0
      %2222 = vmatpush1.msra.mxu0 0.0
      %2223 = vmatprep.subr.mxu0 0.0
      %2224 = vmatpush1.msra.mxu0 0.0
      %2225 = vmatprep.subr.mxu0 0.0
      %2226 = vmatpush1.msra.mxu0 0.0
      %2227 = vmatprep.subr.mxu0 0.0
      %2228 = vmatpush1.msra.mxu0 0.0
      %2229 = vmatprep.subr.mxu0 0.0
      %2230 = vmatpush1.msra.mxu0 0.0
      %2231 = vmatprep.subr.mxu0 0.0
      %2232 = vmatpush1.msra.mxu0 0.0
      %2233 = vmatprep.subr.mxu0 0.0
      %2234 = vmatpush1.msra.mxu0 0.0
      %2235 = vmatprep.subr.mxu0 0.0
      %2236 = vmatpush1.msra.mxu0 0.0
      %2237 = vmatprep.subr.mxu0 0.0
      %2238 = vmatpush1.msra.mxu0 0.0
      %2239 = vmatprep.subr.mxu0 0.0
      %2240 = vmatpush1.msra.mxu0 0.0
      %2241 = vmatprep.subr.mxu0 0.0
      %2242 = vmatpush1.msra.mxu0 %v2204
      %2243 = vmatprep.subr.mxu0 0.0
      %2244 = vmatpush1.msra.mxu0 %v2202
      %2245 = vmatprep.subr.mxu0 0.0
      %2246 = vmatpush2.msra.mxu0 0.0
      %2247 = vmatprep.subr.mxu0 0.0
      %2248 = vmatpush2.msra.mxu0 0.0
      %2249 = vmatprep.subr.mxu0 0.0
      %2250 = vmatpush2.msra.mxu0 0.0
      %2251 = vmatprep.subr.mxu0 0.0
      %2252 = vmatpush2.msra.mxu0 0.0
      %2253 = vmatprep.subr.mxu0 0.0
      %2254 = vmatpush2.msra.mxu0 0.0
      %2255 = vmatprep.subr.mxu0 0.0
      %2256 = vmatpush2.msra.mxu0 0.0
      %2257 = vmatprep.subr.mxu0 0.0
      %2258 = vmatpush2.msra.mxu0 0.0
      %2259 = vmatprep.subr.mxu0 0.0
      %2260 = vmatpush2.msra.mxu0 0.0
      %2261 = vmatprep.subr.mxu0 0.0
      %2262 = vmatpush2.msra.mxu0 0.0
      %2263 = vmatprep.subr.mxu0 0.0
      %2264 = vmatpush2.msra.mxu0 0.0
      %2265 = vmatprep.subr.mxu0 0.0
      %2266 = vmatpush2.msra.mxu0 0.0
      %2267 = vmatprep.subr.mxu0 0.0
      %2268 = vmatpush2.msra.mxu0 0.0
      %2269 = vmatprep.subr.mxu0 0.0
      %2270 = vmatpush2.msra.mxu0 0.0
      %2271 = vmatprep.subr.mxu0 0.0
      %2272 = vmatpush2.msra.mxu0 0.0
      %2273 = vmatprep.subr.mxu0 0.0
      %2274 = vmatpush2.msra.mxu0 0.0
      %2275 = vmatprep.subr.mxu0 0.0
      %2276 = vmatpush2.msra.mxu0 0.0
      %2277 = vmatprep.mubr.f32.mxu0 0.0
      %2278 = vmatmul.mubr.f32.gmra.mxu0 %v2208
      %v2279 = vpop.f32.mrf.mxu0
      %v2280 = vadd.f32 0.0, %v2279
      %v2281 = vpop.f32.mrf.mxu0
      %2282 = vmatprep.mubr.f32.mxu0 0.0
      %2283 = vmatmul.mubr.f32.gmra.mxu0 %v2211
      %v2284 = vpop.f32.mrf.mxu0
      %v2285 = vadd.f32 0.0, %v2284
      %v2286 = vpop.f32.mrf.mxu0
      %2287 = vdwg.mxu0
      %2288 = vrot.lane.b32.xlu0 %v659, 88
      %v2289 = vpop.permute.xlu0 %2288
      %2290 = vrot.lane.b32.xlu0 %v664, 88
      %v2291 = vpop.permute.xlu0 %2290
      %v2295 = vsel %vm1053, %v2110, 0
      %v2298 = vsel %vm1053, %v2111, 0
      %2300 = vmatprep.subr.mxu0 0.0
      %2301 = vmatpush1.msra.mxu0 0.0
      %2302 = vmatprep.subr.mxu0 0.0
      %2303 = vmatpush1.msra.mxu0 0.0
      %2304 = vmatprep.subr.mxu0 0.0
      %2305 = vmatpush1.msra.mxu0 0.0
      %2306 = vmatprep.subr.mxu0 0.0
      %2307 = vmatpush1.msra.mxu0 0.0
      %2308 = vmatprep.subr.mxu0 0.0
      %2309 = vmatpush1.msra.mxu0 0.0
      %2310 = vmatprep.subr.mxu0 0.0
      %2311 = vmatpush1.msra.mxu0 0.0
      %2312 = vmatprep.subr.mxu0 0.0
      %2313 = vmatpush1.msra.mxu0 0.0
      %2314 = vmatprep.subr.mxu0 0.0
      %2315 = vmatpush1.msra.mxu0 0.0
      %2316 = vmatprep.subr.mxu0 0.0
      %2317 = vmatpush1.msra.mxu0 0.0
      %2318 = vmatprep.subr.mxu0 0.0
      %2319 = vmatpush1.msra.mxu0 0.0
      %2320 = vmatprep.subr.mxu0 0.0
      %2321 = vmatpush1.msra.mxu0 0.0
      %2322 = vmatprep.subr.mxu0 0.0
      %2323 = vmatpush1.msra.mxu0 0.0
      %2324 = vmatprep.subr.mxu0 0.0
      %2325 = vmatpush1.msra.mxu0 0.0
      %2326 = vmatprep.subr.mxu0 0.0
      %2327 = vmatpush1.msra.mxu0 0.0
      %2328 = vmatprep.subr.mxu0 0.0
      %2329 = vmatpush1.msra.mxu0 %v2291
      %2330 = vmatprep.subr.mxu0 0.0
      %2331 = vmatpush1.msra.mxu0 %v2289
      %2332 = vmatprep.subr.mxu0 0.0
      %2333 = vmatpush2.msra.mxu0 0.0
      %2334 = vmatprep.subr.mxu0 0.0
      %2335 = vmatpush2.msra.mxu0 0.0
      %2336 = vmatprep.subr.mxu0 0.0
      %2337 = vmatpush2.msra.mxu0 0.0
      %2338 = vmatprep.subr.mxu0 0.0
      %2339 = vmatpush2.msra.mxu0 0.0
      %2340 = vmatprep.subr.mxu0 0.0
      %2341 = vmatpush2.msra.mxu0 0.0
      %2342 = vmatprep.subr.mxu0 0.0
      %2343 = vmatpush2.msra.mxu0 0.0
      %2344 = vmatprep.subr.mxu0 0.0
      %2345 = vmatpush2.msra.mxu0 0.0
      %2346 = vmatprep.subr.mxu0 0.0
      %2347 = vmatpush2.msra.mxu0 0.0
      %2348 = vmatprep.subr.mxu0 0.0
      %2349 = vmatpush2.msra.mxu0 0.0
      %2350 = vmatprep.subr.mxu0 0.0
      %2351 = vmatpush2.msra.mxu0 0.0
      %2352 = vmatprep.subr.mxu0 0.0
      %2353 = vmatpush2.msra.mxu0 0.0
      %2354 = vmatprep.subr.mxu0 0.0
      %2355 = vmatpush2.msra.mxu0 0.0
      %2356 = vmatprep.subr.mxu0 0.0
      %2357 = vmatpush2.msra.mxu0 0.0
      %2358 = vmatprep.subr.mxu0 0.0
      %2359 = vmatpush2.msra.mxu0 0.0
      %2360 = vmatprep.subr.mxu0 0.0
      %2361 = vmatpush2.msra.mxu0 0.0
      %2362 = vmatprep.subr.mxu0 0.0
      %2363 = vmatpush2.msra.mxu0 0.0
      %2364 = vmatprep.mubr.f32.mxu0 0.0
      %2365 = vmatmul.mubr.f32.gmra.mxu0 %v2295
      %v2366 = vpop.f32.mrf.mxu0
      %v2367 = vadd.f32 0.0, %v2366
      %v2368 = vpop.f32.mrf.mxu0
      %2369 = vmatprep.mubr.f32.mxu0 0.0
      %2370 = vmatmul.mubr.f32.gmra.mxu0 %v2298
      %v2371 = vpop.f32.mrf.mxu0
      %v2372 = vadd.f32 0.0, %v2371
      %v2373 = vpop.f32.mrf.mxu0
      %2374 = vdwg.mxu0
      %2375 = vrot.lane.b32.xlu0 %v669, 88
      %v2376 = vpop.permute.xlu0 %2375
      %2377 = vrot.lane.b32.xlu0 %v674, 88
      %v2378 = vpop.permute.xlu0 %2377
      %v2382 = vsel %vm1053, %v2112, 0
      %v2385 = vsel %vm1053, %v2113, 0
      %2387 = vmatprep.subr.mxu0 0.0
      %2388 = vmatpush1.msra.mxu0 0.0
      %2389 = vmatprep.subr.mxu0 0.0
      %2390 = vmatpush1.msra.mxu0 0.0
      %2391 = vmatprep.subr.mxu0 0.0
      %2392 = vmatpush1.msra.mxu0 0.0
      %2393 = vmatprep.subr.mxu0 0.0
      %2394 = vmatpush1.msra.mxu0 0.0
      %2395 = vmatprep.subr.mxu0 0.0
      %2396 = vmatpush1.msra.mxu0 0.0
      %2397 = vmatprep.subr.mxu0 0.0
      %2398 = vmatpush1.msra.mxu0 0.0
      %2399 = vmatprep.subr.mxu0 0.0
      %2400 = vmatpush1.msra.mxu0 0.0
      %2401 = vmatprep.subr.mxu0 0.0
      %2402 = vmatpush1.msra.mxu0 0.0
      %2403 = vmatprep.subr.mxu0 0.0
      %2404 = vmatpush1.msra.mxu0 0.0
      %2405 = vmatprep.subr.mxu0 0.0
      %2406 = vmatpush1.msra.mxu0 0.0
      %2407 = vmatprep.subr.mxu0 0.0
      %2408 = vmatpush1.msra.mxu0 0.0
      %2409 = vmatprep.subr.mxu0 0.0
      %2410 = vmatpush1.msra.mxu0 0.0
      %2411 = vmatprep.subr.mxu0 0.0
      %2412 = vmatpush1.msra.mxu0 0.0
      %2413 = vmatprep.subr.mxu0 0.0
      %2414 = vmatpush1.msra.mxu0 0.0
      %2415 = vmatprep.subr.mxu0 0.0
      %2416 = vmatpush1.msra.mxu0 %v2378
      %2417 = vmatprep.subr.mxu0 0.0
      %2418 = vmatpush1.msra.mxu0 %v2376
      %2419 = vmatprep.subr.mxu0 0.0
      %2420 = vmatpush2.msra.mxu0 0.0
      %2421 = vmatprep.subr.mxu0 0.0
      %2422 = vmatpush2.msra.mxu0 0.0
      %2423 = vmatprep.subr.mxu0 0.0
      %2424 = vmatpush2.msra.mxu0 0.0
      %2425 = vmatprep.subr.mxu0 0.0
      %2426 = vmatpush2.msra.mxu0 0.0
      %2427 = vmatprep.subr.mxu0 0.0
      %2428 = vmatpush2.msra.mxu0 0.0
      %2429 = vmatprep.subr.mxu0 0.0
      %2430 = vmatpush2.msra.mxu0 0.0
      %2431 = vmatprep.subr.mxu0 0.0
      %2432 = vmatpush2.msra.mxu0 0.0
      %2433 = vmatprep.subr.mxu0 0.0
      %2434 = vmatpush2.msra.mxu0 0.0
      %2435 = vmatprep.subr.mxu0 0.0
      %2436 = vmatpush2.msra.mxu0 0.0
      %2437 = vmatprep.subr.mxu0 0.0
      %2438 = vmatpush2.msra.mxu0 0.0
      %2439 = vmatprep.subr.mxu0 0.0
      %2440 = vmatpush2.msra.mxu0 0.0
      %2441 = vmatprep.subr.mxu0 0.0
      %2442 = vmatpush2.msra.mxu0 0.0
      %2443 = vmatprep.subr.mxu0 0.0
      %2444 = vmatpush2.msra.mxu0 0.0
      %2445 = vmatprep.subr.mxu0 0.0
      %2446 = vmatpush2.msra.mxu0 0.0
      %2447 = vmatprep.subr.mxu0 0.0
      %2448 = vmatpush2.msra.mxu0 0.0
      %2449 = vmatprep.subr.mxu0 0.0
      %2450 = vmatpush2.msra.mxu0 0.0
      %2451 = vmatprep.mubr.f32.mxu0 0.0
      %2452 = vmatmul.mubr.f32.gmra.mxu0 %v2382
      %v2453 = vpop.f32.mrf.mxu0
      %v2454 = vadd.f32 0.0, %v2453
      %v2455 = vpop.f32.mrf.mxu0
      %2456 = vmatprep.mubr.f32.mxu0 0.0
      %2457 = vmatmul.mubr.f32.gmra.mxu0 %v2385
      %v2458 = vpop.f32.mrf.mxu0
      %v2459 = vadd.f32 0.0, %v2458
      %v2460 = vpop.f32.mrf.mxu0
      %2461 = vdwg.mxu0
      %v2462 = vld [vmem:[%s6 + $0x8] sm:$0xff]
      %v2464 = vsel %vm680, %v2193, 0
      %v2467 = vsel %vm680, %v2198, 0
      %v2470 = vsel %vm680, %v2280, 0
      %v2473 = vsel %vm680, %v2285, 0
      %v2476 = vsel %vm680, %v2367, 0
      %v2479 = vsel %vm680, %v2372, 0
      %v2482 = vsel %vm680, %v2454, 0
      %v2485 = vsel %vm680, %v2459, 0
      %2487 = vmatprep.subr.mxu0 0.0
      %2488 = vmatpush1.msra.mxu0 0.0
      %2489 = vmatprep.subr.mxu0 0.0
      %2490 = vmatpush1.msra.mxu0 0.0
      %2491 = vmatprep.subr.mxu0 0.0
      %2492 = vmatpush1.msra.mxu0 0.0
      %2493 = vmatprep.subr.mxu0 0.0
      %2494 = vmatpush1.msra.mxu0 0.0
      %2495 = vmatprep.subr.mxu0 0.0
      %2496 = vmatpush1.msra.mxu0 0.0
      %2497 = vmatprep.subr.mxu0 0.0
      %2498 = vmatpush1.msra.mxu0 0.0
      %2499 = vmatprep.subr.mxu0 0.0
      %2500 = vmatpush1.msra.mxu0 0.0
      %2501 = vmatprep.subr.mxu0 0.0
      %2502 = vmatpush1.msra.mxu0 0.0
      %2503 = vmatprep.subr.mxu0 0.0
      %2504 = vmatpush1.msra.mxu0 0.0
      %2505 = vmatprep.subr.mxu0 0.0
      %2506 = vmatpush1.msra.mxu0 0.0
      %2507 = vmatprep.subr.mxu0 0.0
      %2508 = vmatpush1.msra.mxu0 0.0
      %2509 = vmatprep.subr.mxu0 0.0
      %2510 = vmatpush1.msra.mxu0 0.0
      %2511 = vmatprep.subr.mxu0 0.0
      %2512 = vmatpush1.msra.mxu0 0.0
      %2513 = vmatprep.subr.mxu0 0.0
      %2514 = vmatpush1.msra.mxu0 0.0
      %2515 = vmatprep.subr.mxu0 0.0
      %2516 = vmatpush1.msra.mxu0 0.0
      %2517 = vmatprep.subr.mxu0 0.0
      %2518 = vmatpush1.msra.mxu0 %v2462
      %2519 = vmatprep.subr.mxu0 0.0
      %2520 = vmatpush2.msra.mxu0 0.0
      %2521 = vmatprep.subr.mxu0 0.0
      %2522 = vmatpush2.msra.mxu0 0.0
      %2523 = vmatprep.subr.mxu0 0.0
      %2524 = vmatpush2.msra.mxu0 0.0
      %2525 = vmatprep.subr.mxu0 0.0
      %2526 = vmatpush2.msra.mxu0 0.0
      %2527 = vmatprep.subr.mxu0 0.0
      %2528 = vmatpush2.msra.mxu0 0.0
      %2529 = vmatprep.subr.mxu0 0.0
      %2530 = vmatpush2.msra.mxu0 0.0
      %2531 = vmatprep.subr.mxu0 0.0
      %2532 = vmatpush2.msra.mxu0 0.0
      %2533 = vmatprep.subr.mxu0 0.0
      %2534 = vmatpush2.msra.mxu0 0.0
      %2535 = vmatprep.subr.mxu0 0.0
      %2536 = vmatpush2.msra.mxu0 0.0
      %2537 = vmatprep.subr.mxu0 0.0
      %2538 = vmatpush2.msra.mxu0 0.0
      %2539 = vmatprep.subr.mxu0 0.0
      %2540 = vmatpush2.msra.mxu0 0.0
      %2541 = vmatprep.subr.mxu0 0.0
      %2542 = vmatpush2.msra.mxu0 0.0
      %2543 = vmatprep.subr.mxu0 0.0
      %2544 = vmatpush2.msra.mxu0 0.0
      %2545 = vmatprep.subr.mxu0 0.0
      %2546 = vmatpush2.msra.mxu0 0.0
      %2547 = vmatprep.subr.mxu0 0.0
      %2548 = vmatpush2.msra.mxu0 0.0
      %2549 = vmatprep.subr.mxu0 0.0
      %2550 = vmatpush2.msra.mxu0 0.0
      %2551 = vmatprep.mubr.f32.mxu0 0.0
      %2552 = vmatmul.mubr.f32.gmra.mxu0 %v2464
      %v2553 = vpop.f32.mrf.mxu0
      %v2554 = vadd.f32 0.0, %v2553
      %v2555 = vpop.f32.mrf.mxu0
      %2556 = vmatprep.mubr.f32.mxu0 0.0
      %2557 = vmatmul.mubr.f32.gmra.mxu0 %v2467
      %v2558 = vpop.f32.mrf.mxu0
      %v2559 = vadd.f32 0.0, %v2558
      %v2560 = vpop.f32.mrf.mxu0
      %2561 = vmatprep.mubr.f32.mxu0 0.0
      %2562 = vmatmul.mubr.f32.gmra.mxu0 %v2470
      %v2563 = vpop.f32.mrf.mxu0
      %v2564 = vadd.f32 0.0, %v2563
      %v2565 = vpop.f32.mrf.mxu0
      %2566 = vmatprep.mubr.f32.mxu0 0.0
      %2567 = vmatmul.mubr.f32.gmra.mxu0 %v2473
      %v2568 = vpop.f32.mrf.mxu0
      %v2569 = vadd.f32 0.0, %v2568
      %v2570 = vpop.f32.mrf.mxu0
      %2571 = vmatprep.mubr.f32.mxu0 0.0
      %2572 = vmatmul.mubr.f32.gmra.mxu0 %v2476
      %v2573 = vpop.f32.mrf.mxu0
      %v2574 = vadd.f32 0.0, %v2573
      %v2575 = vpop.f32.mrf.mxu0
      %2576 = vmatprep.mubr.f32.mxu0 0.0
      %2577 = vmatmul.mubr.f32.gmra.mxu0 %v2479
      %v2578 = vpop.f32.mrf.mxu0
      %v2579 = vadd.f32 0.0, %v2578
      %v2580 = vpop.f32.mrf.mxu0
      %2581 = vmatprep.mubr.f32.mxu0 0.0
      %2582 = vmatmul.mubr.f32.gmra.mxu0 %v2482
      %v2583 = vpop.f32.mrf.mxu0
      %v2584 = vadd.f32 0.0, %v2583
      %v2585 = vpop.f32.mrf.mxu0
      %2586 = vmatprep.mubr.f32.mxu0 0.0
      %2587 = vmatmul.mubr.f32.gmra.mxu0 %v2485
      %v2588 = vpop.f32.mrf.mxu0
      %v2589 = vadd.f32 0.0, %v2588
      %v2590 = vpop.f32.mrf.mxu0
      %2591 = vdwg.mxu0
      %v2592 = vadd.f32 %v1626, %v2554
      %v2593 = vadd.f32 %v1627, %v2559
      %v2594 = vadd.f32 %v1628, %v2564
      %v2595 = vadd.f32 %v1629, %v2569
      %v2596 = vadd.f32 %v1630, %v2574
      %v2597 = vadd.f32 %v1631, %v2579
      %v2598 = vadd.f32 %v1632, %v2584
      %v2599 = vadd.f32 %v1633, %v2589
      %s2600 = scalar_lea.vmem %s8, 32
      %v2601 = vld [vmem:[%s2600] sm:$0xff]
      %v2602 = vld [vmem:[%s2600 + $0x8] sm:$0xff]
      %2603 = vrot.lane.b32.xlu0 %v499, 112
      %v2604 = vpop.permute.xlu0 %2603
      %2605 = vrot.lane.b32.xlu0 %v504, 112
      %v2606 = vpop.permute.xlu0 %2605
      %2607 = vrot.lane.b32.xlu0 %v639, 112
      %v2608 = vpop.permute.xlu0 %2607
      %2609 = vrot.lane.b32.xlu0 %v644, 112
      %v2610 = vpop.permute.xlu0 %2609
      %v2611 = vsel %vm680, %v2604, 0
      %v2613 = vsel %vm680, %v2606, 0
      %v2615 = vsel %vm680, %v2608, 0
      %v2617 = vsel %vm680, %v2610, 0
      %2619 = vmatprep.subr.mxu0 0.0
      %2620 = vmatpush1.xpose.msra.mxu0 0.0
      %2621 = vmatprep.subr.mxu0 0.0
      %2622 = vmatpush1.xpose.msra.mxu0 0.0
      %2623 = vmatprep.subr.mxu0 0.0
      %2624 = vmatpush1.xpose.msra.mxu0 0.0
      %2625 = vmatprep.subr.mxu0 0.0
      %2626 = vmatpush1.xpose.msra.mxu0 0.0
      %2627 = vmatprep.subr.mxu0 0.0
      %2628 = vmatpush1.xpose.msra.mxu0 0.0
      %2629 = vmatprep.subr.mxu0 0.0
      %2630 = vmatpush1.xpose.msra.mxu0 0.0
      %2631 = vmatprep.subr.mxu0 0.0
      %2632 = vmatpush1.xpose.msra.mxu0 0.0
      %2633 = vmatprep.subr.mxu0 0.0
      %2634 = vmatpush1.xpose.msra.mxu0 0.0
      %2635 = vmatprep.subr.mxu0 0.0
      %2636 = vmatpush1.xpose.msra.mxu0 0.0
      %2637 = vmatprep.subr.mxu0 0.0
      %2638 = vmatpush1.xpose.msra.mxu0 0.0
      %2639 = vmatprep.subr.mxu0 0.0
      %2640 = vmatpush1.xpose.msra.mxu0 0.0
      %2641 = vmatprep.subr.mxu0 0.0
      %2642 = vmatpush1.xpose.msra.mxu0 0.0
      %2643 = vmatprep.subr.mxu0 0.0
      %2644 = vmatpush1.xpose.msra.mxu0 0.0
      %2645 = vmatprep.subr.mxu0 0.0
      %2646 = vmatpush1.xpose.msra.mxu0 0.0
      %2647 = vmatprep.subr.mxu0 0.0
      %2648 = vmatpush1.xpose.msra.mxu0 %v2617
      %2649 = vmatprep.subr.mxu0 0.0
      %2650 = vmatpush1.xpose.msra.mxu0 %v2615
      %2651 = vmatprep.subr.mxu0 0.0
      %2652 = vmatpush2.xpose.msra.mxu0 0.0
      %2653 = vmatprep.subr.mxu0 0.0
      %2654 = vmatpush2.xpose.msra.mxu0 0.0
      %2655 = vmatprep.subr.mxu0 0.0
      %2656 = vmatpush2.xpose.msra.mxu0 0.0
      %2657 = vmatprep.subr.mxu0 0.0
      %2658 = vmatpush2.xpose.msra.mxu0 0.0
      %2659 = vmatprep.subr.mxu0 0.0
      %2660 = vmatpush2.xpose.msra.mxu0 0.0
      %2661 = vmatprep.subr.mxu0 0.0
      %2662 = vmatpush2.xpose.msra.mxu0 0.0
      %2663 = vmatprep.subr.mxu0 0.0
      %2664 = vmatpush2.xpose.msra.mxu0 0.0
      %2665 = vmatprep.subr.mxu0 0.0
      %2666 = vmatpush2.xpose.msra.mxu0 0.0
      %2667 = vmatprep.subr.mxu0 0.0
      %2668 = vmatpush2.xpose.msra.mxu0 0.0
      %2669 = vmatprep.subr.mxu0 0.0
      %2670 = vmatpush2.xpose.msra.mxu0 0.0
      %2671 = vmatprep.subr.mxu0 0.0
      %2672 = vmatpush2.xpose.msra.mxu0 0.0
      %2673 = vmatprep.subr.mxu0 0.0
      %2674 = vmatpush2.xpose.msra.mxu0 0.0
      %2675 = vmatprep.subr.mxu0 0.0
      %2676 = vmatpush2.xpose.msra.mxu0 0.0
      %2677 = vmatprep.subr.mxu0 0.0
      %2678 = vmatpush2.xpose.msra.mxu0 0.0
      %2679 = vmatprep.subr.mxu0 0.0
      %2680 = vmatpush2.xpose.msra.mxu0 0.0
      %2681 = vmatprep.subr.mxu0 0.0
      %2682 = vmatpush2.xpose.msra.mxu0 0.0
      %2683 = vmatprep.mubr.f32.mxu0 0.0
      %2684 = vmatmul.mubr.f32.gmra.mxu0 %v2611
      %v2685 = vpop.f32.mrf.mxu0
      %v2686 = vadd.f32 %v2601, %v2685
      %v2687 = vpop.f32.mrf.mxu0
      %2688 = vmatprep.mubr.f32.mxu0 0.0
      %2689 = vmatmul.mubr.f32.gmra.mxu0 %v2613
      %v2690 = vpop.f32.mrf.mxu0
      %v2691 = vadd.f32 %v2602, %v2690
      %v2692 = vpop.f32.mrf.mxu0
      %2693 = vdwg.mxu0
      %2694 = vrot.lane.b32.xlu0 %v509, 112
      %v2695 = vpop.permute.xlu0 %2694
      %2696 = vrot.lane.b32.xlu0 %v514, 112
      %v2697 = vpop.permute.xlu0 %2696
      %2698 = vrot.lane.b32.xlu0 %v649, 112
      %v2699 = vpop.permute.xlu0 %2698
      %2700 = vrot.lane.b32.xlu0 %v654, 112
      %v2701 = vpop.permute.xlu0 %2700
      %v2702 = vsel %vm680, %v2695, 0
      %v2704 = vsel %vm680, %v2697, 0
      %v2706 = vsel %vm680, %v2699, 0
      %v2708 = vsel %vm680, %v2701, 0
      %2710 = vmatprep.subr.mxu0 0.0
      %2711 = vmatpush1.xpose.msra.mxu0 0.0
      %2712 = vmatprep.subr.mxu0 0.0
      %2713 = vmatpush1.xpose.msra.mxu0 0.0
      %2714 = vmatprep.subr.mxu0 0.0
      %2715 = vmatpush1.xpose.msra.mxu0 0.0
      %2716 = vmatprep.subr.mxu0 0.0
      %2717 = vmatpush1.xpose.msra.mxu0 0.0
      %2718 = vmatprep.subr.mxu0 0.0
      %2719 = vmatpush1.xpose.msra.mxu0 0.0
      %2720 = vmatprep.subr.mxu0 0.0
      %2721 = vmatpush1.xpose.msra.mxu0 0.0
      %2722 = vmatprep.subr.mxu0 0.0
      %2723 = vmatpush1.xpose.msra.mxu0 0.0
      %2724 = vmatprep.subr.mxu0 0.0
      %2725 = vmatpush1.xpose.msra.mxu0 0.0
      %2726 = vmatprep.subr.mxu0 0.0
      %2727 = vmatpush1.xpose.msra.mxu0 0.0
      %2728 = vmatprep.subr.mxu0 0.0
      %2729 = vmatpush1.xpose.msra.mxu0 0.0
      %2730 = vmatprep.subr.mxu0 0.0
      %2731 = vmatpush1.xpose.msra.mxu0 0.0
      %2732 = vmatprep.subr.mxu0 0.0
      %2733 = vmatpush1.xpose.msra.mxu0 0.0
      %2734 = vmatprep.subr.mxu0 0.0
      %2735 = vmatpush1.xpose.msra.mxu0 0.0
      %2736 = vmatprep.subr.mxu0 0.0
      %2737 = vmatpush1.xpose.msra.mxu0 0.0
      %2738 = vmatprep.subr.mxu0 0.0
      %2739 = vmatpush1.xpose.msra.mxu0 %v2708
      %2740 = vmatprep.subr.mxu0 0.0
      %2741 = vmatpush1.xpose.msra.mxu0 %v2706
      %2742 = vmatprep.subr.mxu0 0.0
      %2743 = vmatpush2.xpose.msra.mxu0 0.0
      %2744 = vmatprep.subr.mxu0 0.0
      %2745 = vmatpush2.xpose.msra.mxu0 0.0
      %2746 = vmatprep.subr.mxu0 0.0
      %2747 = vmatpush2.xpose.msra.mxu0 0.0
      %2748 = vmatprep.subr.mxu0 0.0
      %2749 = vmatpush2.xpose.msra.mxu0 0.0
      %2750 = vmatprep.subr.mxu0 0.0
      %2751 = vmatpush2.xpose.msra.mxu0 0.0
      %2752 = vmatprep.subr.mxu0 0.0
      %2753 = vmatpush2.xpose.msra.mxu0 0.0
      %2754 = vmatprep.subr.mxu0 0.0
      %2755 = vmatpush2.xpose.msra.mxu0 0.0
      %2756 = vmatprep.subr.mxu0 0.0
      %2757 = vmatpush2.xpose.msra.mxu0 0.0
      %2758 = vmatprep.subr.mxu0 0.0
      %2759 = vmatpush2.xpose.msra.mxu0 0.0
      %2760 = vmatprep.subr.mxu0 0.0
      %2761 = vmatpush2.xpose.msra.mxu0 0.0
      %2762 = vmatprep.subr.mxu0 0.0
      %2763 = vmatpush2.xpose.msra.mxu0 0.0
      %2764 = vmatprep.subr.mxu0 0.0
      %2765 = vmatpush2.xpose.msra.mxu0 0.0
      %2766 = vmatprep.subr.mxu0 0.0
      %2767 = vmatpush2.xpose.msra.mxu0 0.0
      %2768 = vmatprep.subr.mxu0 0.0
      %2769 = vmatpush2.xpose.msra.mxu0 0.0
      %2770 = vmatprep.subr.mxu0 0.0
      %2771 = vmatpush2.xpose.msra.mxu0 0.0
      %2772 = vmatprep.subr.mxu0 0.0
      %2773 = vmatpush2.xpose.msra.mxu0 0.0
      %2774 = vmatprep.mubr.f32.mxu0 0.0
      %2775 = vmatmul.mubr.f32.gmra.mxu0 %v2702
      %v2776 = vpop.f32.mrf.mxu0
      %v2777 = vadd.f32 %v2601, %v2776
      %v2778 = vpop.f32.mrf.mxu0
      %2779 = vmatprep.mubr.f32.mxu0 0.0
      %2780 = vmatmul.mubr.f32.gmra.mxu0 %v2704
      %v2781 = vpop.f32.mrf.mxu0
      %v2782 = vadd.f32 %v2602, %v2781
      %v2783 = vpop.f32.mrf.mxu0
      %2784 = vdwg.mxu0
      %2785 = vrot.lane.b32.xlu0 %v519, 112
      %v2786 = vpop.permute.xlu0 %2785
      %2787 = vrot.lane.b32.xlu0 %v524, 112
      %v2788 = vpop.permute.xlu0 %2787
      %2789 = vrot.lane.b32.xlu0 %v659, 112
      %v2790 = vpop.permute.xlu0 %2789
      %2791 = vrot.lane.b32.xlu0 %v664, 112
      %v2792 = vpop.permute.xlu0 %2791
      %v2793 = vsel %vm680, %v2786, 0
      %v2795 = vsel %vm680, %v2788, 0
      %v2797 = vsel %vm680, %v2790, 0
      %v2799 = vsel %vm680, %v2792, 0
      %2801 = vmatprep.subr.mxu0 0.0
      %2802 = vmatpush1.xpose.msra.mxu0 0.0
      %2803 = vmatprep.subr.mxu0 0.0
      %2804 = vmatpush1.xpose.msra.mxu0 0.0
      %2805 = vmatprep.subr.mxu0 0.0
      %2806 = vmatpush1.xpose.msra.mxu0 0.0
      %2807 = vmatprep.subr.mxu0 0.0
      %2808 = vmatpush1.xpose.msra.mxu0 0.0
      %2809 = vmatprep.subr.mxu0 0.0
      %2810 = vmatpush1.xpose.msra.mxu0 0.0
      %2811 = vmatprep.subr.mxu0 0.0
      %2812 = vmatpush1.xpose.msra.mxu0 0.0
      %2813 = vmatprep.subr.mxu0 0.0
      %2814 = vmatpush1.xpose.msra.mxu0 0.0
      %2815 = vmatprep.subr.mxu0 0.0
      %2816 = vmatpush1.xpose.msra.mxu0 0.0
      %2817 = vmatprep.subr.mxu0 0.0
      %2818 = vmatpush1.xpose.msra.mxu0 0.0
      %2819 = vmatprep.subr.mxu0 0.0
      %2820 = vmatpush1.xpose.msra.mxu0 0.0
      %2821 = vmatprep.subr.mxu0 0.0
      %2822 = vmatpush1.xpose.msra.mxu0 0.0
      %2823 = vmatprep.subr.mxu0 0.0
      %2824 = vmatpush1.xpose.msra.mxu0 0.0
      %2825 = vmatprep.subr.mxu0 0.0
      %2826 = vmatpush1.xpose.msra.mxu0 0.0
      %2827 = vmatprep.subr.mxu0 0.0
      %2828 = vmatpush1.xpose.msra.mxu0 0.0
      %2829 = vmatprep.subr.mxu0 0.0
      %2830 = vmatpush1.xpose.msra.mxu0 %v2799
      %2831 = vmatprep.subr.mxu0 0.0
      %2832 = vmatpush1.xpose.msra.mxu0 %v2797
      %2833 = vmatprep.subr.mxu0 0.0
      %2834 = vmatpush2.xpose.msra.mxu0 0.0
      %2835 = vmatprep.subr.mxu0 0.0
      %2836 = vmatpush2.xpose.msra.mxu0 0.0
      %2837 = vmatprep.subr.mxu0 0.0
      %2838 = vmatpush2.xpose.msra.mxu0 0.0
      %2839 = vmatprep.subr.mxu0 0.0
      %2840 = vmatpush2.xpose.msra.mxu0 0.0
      %2841 = vmatprep.subr.mxu0 0.0
      %2842 = vmatpush2.xpose.msra.mxu0 0.0
      %2843 = vmatprep.subr.mxu0 0.0
      %2844 = vmatpush2.xpose.msra.mxu0 0.0
      %2845 = vmatprep.subr.mxu0 0.0
      %2846 = vmatpush2.xpose.msra.mxu0 0.0
      %2847 = vmatprep.subr.mxu0 0.0
      %2848 = vmatpush2.xpose.msra.mxu0 0.0
      %2849 = vmatprep.subr.mxu0 0.0
      %2850 = vmatpush2.xpose.msra.mxu0 0.0
      %2851 = vmatprep.subr.mxu0 0.0
      %2852 = vmatpush2.xpose.msra.mxu0 0.0
      %2853 = vmatprep.subr.mxu0 0.0
      %2854 = vmatpush2.xpose.msra.mxu0 0.0
      %2855 = vmatprep.subr.mxu0 0.0
      %2856 = vmatpush2.xpose.msra.mxu0 0.0
      %2857 = vmatprep.subr.mxu0 0.0
      %2858 = vmatpush2.xpose.msra.mxu0 0.0
      %2859 = vmatprep.subr.mxu0 0.0
      %2860 = vmatpush2.xpose.msra.mxu0 0.0
      %2861 = vmatprep.subr.mxu0 0.0
      %2862 = vmatpush2.xpose.msra.mxu0 0.0
      %2863 = vmatprep.subr.mxu0 0.0
      %2864 = vmatpush2.xpose.msra.mxu0 0.0
      %2865 = vmatprep.mubr.f32.mxu0 0.0
      %2866 = vmatmul.mubr.f32.gmra.mxu0 %v2793
      %v2867 = vpop.f32.mrf.mxu0
      %v2868 = vadd.f32 %v2601, %v2867
      %v2869 = vpop.f32.mrf.mxu0
      %2870 = vmatprep.mubr.f32.mxu0 0.0
      %2871 = vmatmul.mubr.f32.gmra.mxu0 %v2795
      %v2872 = vpop.f32.mrf.mxu0
      %v2873 = vadd.f32 %v2602, %v2872
      %v2874 = vpop.f32.mrf.mxu0
      %2875 = vdwg.mxu0
      %2876 = vrot.lane.b32.xlu0 %v529, 112
      %v2877 = vpop.permute.xlu0 %2876
      %2878 = vrot.lane.b32.xlu0 %v534, 112
      %v2879 = vpop.permute.xlu0 %2878
      %2880 = vrot.lane.b32.xlu0 %v669, 112
      %v2881 = vpop.permute.xlu0 %2880
      %2882 = vrot.lane.b32.xlu0 %v674, 112
      %v2883 = vpop.permute.xlu0 %2882
      %v2884 = vsel %vm680, %v2877, 0
      %v2886 = vsel %vm680, %v2879, 0
      %v2888 = vsel %vm680, %v2881, 0
      %v2890 = vsel %vm680, %v2883, 0
      %2892 = vmatprep.subr.mxu0 0.0
      %2893 = vmatpush1.xpose.msra.mxu0 0.0
      %2894 = vmatprep.subr.mxu0 0.0
      %2895 = vmatpush1.xpose.msra.mxu0 0.0
      %2896 = vmatprep.subr.mxu0 0.0
      %2897 = vmatpush1.xpose.msra.mxu0 0.0
      %2898 = vmatprep.subr.mxu0 0.0
      %2899 = vmatpush1.xpose.msra.mxu0 0.0
      %2900 = vmatprep.subr.mxu0 0.0
      %2901 = vmatpush1.xpose.msra.mxu0 0.0
      %2902 = vmatprep.subr.mxu0 0.0
      %2903 = vmatpush1.xpose.msra.mxu0 0.0
      %2904 = vmatprep.subr.mxu0 0.0
      %2905 = vmatpush1.xpose.msra.mxu0 0.0
      %2906 = vmatprep.subr.mxu0 0.0
      %2907 = vmatpush1.xpose.msra.mxu0 0.0
      %2908 = vmatprep.subr.mxu0 0.0
      %2909 = vmatpush1.xpose.msra.mxu0 0.0
      %2910 = vmatprep.subr.mxu0 0.0
      %2911 = vmatpush1.xpose.msra.mxu0 0.0
      %2912 = vmatprep.subr.mxu0 0.0
      %2913 = vmatpush1.xpose.msra.mxu0 0.0
      %2914 = vmatprep.subr.mxu0 0.0
      %2915 = vmatpush1.xpose.msra.mxu0 0.0
      %2916 = vmatprep.subr.mxu0 0.0
      %2917 = vmatpush1.xpose.msra.mxu0 0.0
      %2918 = vmatprep.subr.mxu0 0.0
      %2919 = vmatpush1.xpose.msra.mxu0 0.0
      %2920 = vmatprep.subr.mxu0 0.0
      %2921 = vmatpush1.xpose.msra.mxu0 %v2890
      %2922 = vmatprep.subr.mxu0 0.0
      %2923 = vmatpush1.xpose.msra.mxu0 %v2888
      %2924 = vmatprep.subr.mxu0 0.0
      %2925 = vmatpush2.xpose.msra.mxu0 0.0
      %2926 = vmatprep.subr.mxu0 0.0
      %2927 = vmatpush2.xpose.msra.mxu0 0.0
      %2928 = vmatprep.subr.mxu0 0.0
      %2929 = vmatpush2.xpose.msra.mxu0 0.0
      %2930 = vmatprep.subr.mxu0 0.0
      %2931 = vmatpush2.xpose.msra.mxu0 0.0
      %2932 = vmatprep.subr.mxu0 0.0
      %2933 = vmatpush2.xpose.msra.mxu0 0.0
      %2934 = vmatprep.subr.mxu0 0.0
      %2935 = vmatpush2.xpose.msra.mxu0 0.0
      %2936 = vmatprep.subr.mxu0 0.0
      %2937 = vmatpush2.xpose.msra.mxu0 0.0
      %2938 = vmatprep.subr.mxu0 0.0
      %2939 = vmatpush2.xpose.msra.mxu0 0.0
      %2940 = vmatprep.subr.mxu0 0.0
      %2941 = vmatpush2.xpose.msra.mxu0 0.0
      %2942 = vmatprep.subr.mxu0 0.0
      %2943 = vmatpush2.xpose.msra.mxu0 0.0
      %2944 = vmatprep.subr.mxu0 0.0
      %2945 = vmatpush2.xpose.msra.mxu0 0.0
      %2946 = vmatprep.subr.mxu0 0.0
      %2947 = vmatpush2.xpose.msra.mxu0 0.0
      %2948 = vmatprep.subr.mxu0 0.0
      %2949 = vmatpush2.xpose.msra.mxu0 0.0
      %2950 = vmatprep.subr.mxu0 0.0
      %2951 = vmatpush2.xpose.msra.mxu0 0.0
      %2952 = vmatprep.subr.mxu0 0.0
      %2953 = vmatpush2.xpose.msra.mxu0 0.0
      %2954 = vmatprep.subr.mxu0 0.0
      %2955 = vmatpush2.xpose.msra.mxu0 0.0
      %2956 = vmatprep.mubr.f32.mxu0 0.0
      %2957 = vmatmul.mubr.f32.gmra.mxu0 %v2884
      %v2958 = vpop.f32.mrf.mxu0
      %v2959 = vadd.f32 %v2601, %v2958
      %v2960 = vpop.f32.mrf.mxu0
      %2961 = vmatprep.mubr.f32.mxu0 0.0
      %2962 = vmatmul.mubr.f32.gmra.mxu0 %v2886
      %v2963 = vpop.f32.mrf.mxu0
      %v2964 = vadd.f32 %v2602, %v2963
      %v2965 = vpop.f32.mrf.mxu0
      %2966 = vdwg.mxu0
      %s2967 = scalar_lea.vmem %s9, 64
      %v2968 = vld [vmem:[%s2967] sm:$0xf]
      %v2969 = vld [vmem:[%s2967 + $0x4] sm:$0xf]
      %v2970 = vld [vmem:[%s2967 + $0x8] sm:$0xf]
      %v2971 = vld [vmem:[%s2967 + $0xc] sm:$0xf]
      %v2972 = vld [vmem:[%s2967 + $0x10] sm:$0xf]
      %v2973 = vld [vmem:[%s2967 + $0x14] sm:$0xf]
      %v2974 = vld [vmem:[%s2967 + $0x18] sm:$0xf]
      %v2975 = vld [vmem:[%s2967 + $0x1c] sm:$0xf]
      %v2976 = vunpack.c.l.bf16 %v2968
      %v2977 = vunpack.c.l.bf16 %v2969
      %v2978 = vunpack.c.l.bf16 %v2970
      %v2979 = vunpack.c.l.bf16 %v2971
      %v2980 = vunpack.c.l.bf16 %v2972
      %v2981 = vunpack.c.l.bf16 %v2973
      %v2982 = vunpack.c.l.bf16 %v2974
      %v2983 = vunpack.c.l.bf16 %v2975
      %v2984 = vadd.f32 %v2686, %v2976
      %v2985 = vadd.f32 %v2691, %v2977
      %v2986 = vadd.f32 %v2777, %v2978
      %v2987 = vadd.f32 %v2782, %v2979
      %v2988 = vadd.f32 %v2868, %v2980
      %v2989 = vadd.f32 %v2873, %v2981
      %v2990 = vadd.f32 %v2959, %v2982
      %v2991 = vadd.f32 %v2964, %v2983
      %v2992 = vsel %vm1053, %v2984, -inf
      %2993 = vmax.xlane.f32.xlu0 %v2992
      %v2994 = vpop.xlane.xlu0 %2993
      %v2995 = vsel %vm1053, %v2985, -inf
      %2996 = vmax.xlane.f32.xlu0 %v2995
      %v2997 = vpop.xlane.xlu0 %2996
      %v2998 = vsel %vm1053, %v2986, -inf
      %2999 = vmax.xlane.f32.xlu0 %v2998
      %v3000 = vpop.xlane.xlu0 %2999
      %v3001 = vsel %vm1053, %v2987, -inf
      %3002 = vmax.xlane.f32.xlu0 %v3001
      %v3003 = vpop.xlane.xlu0 %3002
      %v3004 = vsel %vm1053, %v2988, -inf
      %3005 = vmax.xlane.f32.xlu0 %v3004
      %v3006 = vpop.xlane.xlu0 %3005
      %v3007 = vsel %vm1053, %v2989, -inf
      %3008 = vmax.xlane.f32.xlu0 %v3007
      %v3009 = vpop.xlane.xlu0 %3008
      %v3010 = vsel %vm1053, %v2990, -inf
      %3011 = vmax.xlane.f32.xlu0 %v3010
      %v3012 = vpop.xlane.xlu0 %3011
      %v3013 = vsel %vm1053, %v2991, -inf
      %3014 = vmax.xlane.f32.xlu0 %v3013
      %v3015 = vpop.xlane.xlu0 %3014
      %v3016 = vsub.f32 %v2984, %v2994
      %v3017 = vsub.f32 %v2985, %v2997
      %v3018 = vsub.f32 %v2986, %v3000
      %v3019 = vsub.f32 %v2987, %v3003
      %v3020 = vsub.f32 %v2988, %v3006
      %v3021 = vsub.f32 %v2989, %v3009
      %v3022 = vsub.f32 %v2990, %v3012
      %v3023 = vsub.f32 %v2991, %v3015
      %v3024 = vmul.f32 %v3016, 1.442695
      %v3025 = vpow.pop %v3024
      %v3026 = vmul.f32 %v3017, 1.442695
      %v3027 = vpow.pop %v3026
      %v3028 = vmul.f32 %v3018, 1.442695
      %v3029 = vpow.pop %v3028
      %v3030 = vmul.f32 %v3019, 1.442695
      %v3031 = vpow.pop %v3030
      %v3032 = vmul.f32 %v3020, 1.442695
      %v3033 = vpow.pop %v3032
      %v3034 = vmul.f32 %v3021, 1.442695
      %v3035 = vpow.pop %v3034
      %v3036 = vmul.f32 %v3022, 1.442695
      %v3037 = vpow.pop %v3036
      %v3038 = vmul.f32 %v3023, 1.442695
      %v3039 = vpow.pop %v3038
      %v3040 = vsel %vm1053, %v3025, 0.0
      %3041 = vadd.xlane.f32.xlu0 %v3040
      %v3042 = vpop.xlane.xlu0 %3041
      %v3043 = vsel %vm1053, %v3027, 0.0
      %3044 = vadd.xlane.f32.xlu0 %v3043
      %v3045 = vpop.xlane.xlu0 %3044
      %v3046 = vsel %vm1053, %v3029, 0.0
      %3047 = vadd.xlane.f32.xlu0 %v3046
      %v3048 = vpop.xlane.xlu0 %3047
      %v3049 = vsel %vm1053, %v3031, 0.0
      %3050 = vadd.xlane.f32.xlu0 %v3049
      %v3051 = vpop.xlane.xlu0 %3050
      %v3052 = vsel %vm1053, %v3033, 0.0
      %3053 = vadd.xlane.f32.xlu0 %v3052
      %v3054 = vpop.xlane.xlu0 %3053
      %v3055 = vsel %vm1053, %v3035, 0.0
      %3056 = vadd.xlane.f32.xlu0 %v3055
      %v3057 = vpop.xlane.xlu0 %3056
      %v3058 = vsel %vm1053, %v3037, 0.0
      %3059 = vadd.xlane.f32.xlu0 %v3058
      %v3060 = vpop.xlane.xlu0 %3059
      %v3061 = vsel %vm1053, %v3039, 0.0
      %3062 = vadd.xlane.f32.xlu0 %v3061
      %v3063 = vpop.xlane.xlu0 %3062
      %v3064 = vrcp.pop %v3042
      %v3065 = vrcp.pop %v3045
      %v3066 = vrcp.pop %v3048
      %v3067 = vrcp.pop %v3051
      %v3068 = vrcp.pop %v3054
      %v3069 = vrcp.pop %v3057
      %v3070 = vrcp.pop %v3060
      %v3071 = vrcp.pop %v3063
      %v3072 = vmul.f32 %v3025, %v3064
      %v3073 = vmul.f32 %v3027, %v3065
      %v3074 = vmul.f32 %v3029, %v3066
      %v3075 = vmul.f32 %v3031, %v3067
      %v3076 = vmul.f32 %v3033, %v3068
      %v3077 = vmul.f32 %v3035, %v3069
      %v3078 = vmul.f32 %v3037, %v3070
      %v3079 = vmul.f32 %v3039, %v3071
      %3080 = vrot.lane.b32.xlu0 %v639, 80
      %v3081 = vpop.permute.xlu0 %3080
      %3082 = vrot.lane.b32.xlu0 %v644, 80
      %v3083 = vpop.permute.xlu0 %3082
      %v3087 = vsel %vm1053, %v3072, 0
      %v3090 = vsel %vm1053, %v3073, 0
      %3092 = vmatprep.subr.mxu0 0.0
      %3093 = vmatpush1.msra.mxu0 0.0
      %3094 = vmatprep.subr.mxu0 0.0
      %3095 = vmatpush1.msra.mxu0 0.0
      %3096 = vmatprep.subr.mxu0 0.0
      %3097 = vmatpush1.msra.mxu0 0.0
      %3098 = vmatprep.subr.mxu0 0.0
      %3099 = vmatpush1.msra.mxu0 0.0
      %3100 = vmatprep.subr.mxu0 0.0
      %3101 = vmatpush1.msra.mxu0 0.0
      %3102 = vmatprep.subr.mxu0 0.0
      %3103 = vmatpush1.msra.mxu0 0.0
      %3104 = vmatprep.subr.mxu0 0.0
      %3105 = vmatpush1.msra.mxu0 0.0
      %3106 = vmatprep.subr.mxu0 0.0
      %3107 = vmatpush1.msra.mxu0 0.0
      %3108 = vmatprep.subr.mxu0 0.0
      %3109 = vmatpush1.msra.mxu0 0.0
      %3110 = vmatprep.subr.mxu0 0.0
      %3111 = vmatpush1.msra.mxu0 0.0
      %3112 = vmatprep.subr.mxu0 0.0
      %3113 = vmatpush1.msra.mxu0 0.0
      %3114 = vmatprep.subr.mxu0 0.0
      %3115 = vmatpush1.msra.mxu0 0.0
      %3116 = vmatprep.subr.mxu0 0.0
      %3117 = vmatpush1.msra.mxu0 0.0
      %3118 = vmatprep.subr.mxu0 0.0
      %3119 = vmatpush1.msra.mxu0 0.0
      %3120 = vmatprep.subr.mxu0 0.0
      %3121 = vmatpush1.msra.mxu0 %v3083
      %3122 = vmatprep.subr.mxu0 0.0
      %3123 = vmatpush1.msra.mxu0 %v3081
      %3124 = vmatprep.subr.mxu0 0.0
      %3125 = vmatpush2.msra.mxu0 0.0
      %3126 = vmatprep.subr.mxu0 0.0
      %3127 = vmatpush2.msra.mxu0 0.0
      %3128 = vmatprep.subr.mxu0 0.0
      %3129 = vmatpush2.msra.mxu0 0.0
      %3130 = vmatprep.subr.mxu0 0.0
      %3131 = vmatpush2.msra.mxu0 0.0
      %3132 = vmatprep.subr.mxu0 0.0
      %3133 = vmatpush2.msra.mxu0 0.0
      %3134 = vmatprep.subr.mxu0 0.0
      %3135 = vmatpush2.msra.mxu0 0.0
      %3136 = vmatprep.subr.mxu0 0.0
      %3137 = vmatpush2.msra.mxu0 0.0
      %3138 = vmatprep.subr.mxu0 0.0
      %3139 = vmatpush2.msra.mxu0 0.0
      %3140 = vmatprep.subr.mxu0 0.0
      %3141 = vmatpush2.msra.mxu0 0.0
      %3142 = vmatprep.subr.mxu0 0.0
      %3143 = vmatpush2.msra.mxu0 0.0
      %3144 = vmatprep.subr.mxu0 0.0
      %3145 = vmatpush2.msra.mxu0 0.0
      %3146 = vmatprep.subr.mxu0 0.0
      %3147 = vmatpush2.msra.mxu0 0.0
      %3148 = vmatprep.subr.mxu0 0.0
      %3149 = vmatpush2.msra.mxu0 0.0
      %3150 = vmatprep.subr.mxu0 0.0
      %3151 = vmatpush2.msra.mxu0 0.0
      %3152 = vmatprep.subr.mxu0 0.0
      %3153 = vmatpush2.msra.mxu0 0.0
      %3154 = vmatprep.subr.mxu0 0.0
      %3155 = vmatpush2.msra.mxu0 0.0
      %3156 = vmatprep.mubr.f32.mxu0 0.0
      %3157 = vmatmul.mubr.f32.gmra.mxu0 %v3087
      %v3158 = vpop.f32.mrf.mxu0
      %v3159 = vadd.f32 0.0, %v3158
      %v3160 = vpop.f32.mrf.mxu0
      %3161 = vmatprep.mubr.f32.mxu0 0.0
      %3162 = vmatmul.mubr.f32.gmra.mxu0 %v3090
      %v3163 = vpop.f32.mrf.mxu0
      %v3164 = vadd.f32 0.0, %v3163
      %v3165 = vpop.f32.mrf.mxu0
      %3166 = vdwg.mxu0
      %3167 = vrot.lane.b32.xlu0 %v649, 80
      %v3168 = vpop.permute.xlu0 %3167
      %3169 = vrot.lane.b32.xlu0 %v654, 80
      %v3170 = vpop.permute.xlu0 %3169
      %v3174 = vsel %vm1053, %v3074, 0
      %v3177 = vsel %vm1053, %v3075, 0
      %3179 = vmatprep.subr.mxu0 0.0
      %3180 = vmatpush1.msra.mxu0 0.0
      %3181 = vmatprep.subr.mxu0 0.0
      %3182 = vmatpush1.msra.mxu0 0.0
      %3183 = vmatprep.subr.mxu0 0.0
      %3184 = vmatpush1.msra.mxu0 0.0
      %3185 = vmatprep.subr.mxu0 0.0
      %3186 = vmatpush1.msra.mxu0 0.0
      %3187 = vmatprep.subr.mxu0 0.0
      %3188 = vmatpush1.msra.mxu0 0.0
      %3189 = vmatprep.subr.mxu0 0.0
      %3190 = vmatpush1.msra.mxu0 0.0
      %3191 = vmatprep.subr.mxu0 0.0
      %3192 = vmatpush1.msra.mxu0 0.0
      %3193 = vmatprep.subr.mxu0 0.0
      %3194 = vmatpush1.msra.mxu0 0.0
      %3195 = vmatprep.subr.mxu0 0.0
      %3196 = vmatpush1.msra.mxu0 0.0
      %3197 = vmatprep.subr.mxu0 0.0
      %3198 = vmatpush1.msra.mxu0 0.0
      %3199 = vmatprep.subr.mxu0 0.0
      %3200 = vmatpush1.msra.mxu0 0.0
      %3201 = vmatprep.subr.mxu0 0.0
      %3202 = vmatpush1.msra.mxu0 0.0
      %3203 = vmatprep.subr.mxu0 0.0
      %3204 = vmatpush1.msra.mxu0 0.0
      %3205 = vmatprep.subr.mxu0 0.0
      %3206 = vmatpush1.msra.mxu0 0.0
      %3207 = vmatprep.subr.mxu0 0.0
      %3208 = vmatpush1.msra.mxu0 %v3170
      %3209 = vmatprep.subr.mxu0 0.0
      %3210 = vmatpush1.msra.mxu0 %v3168
      %3211 = vmatprep.subr.mxu0 0.0
      %3212 = vmatpush2.msra.mxu0 0.0
      %3213 = vmatprep.subr.mxu0 0.0
      %3214 = vmatpush2.msra.mxu0 0.0
      %3215 = vmatprep.subr.mxu0 0.0
      %3216 = vmatpush2.msra.mxu0 0.0
      %3217 = vmatprep.subr.mxu0 0.0
      %3218 = vmatpush2.msra.mxu0 0.0
      %3219 = vmatprep.subr.mxu0 0.0
      %3220 = vmatpush2.msra.mxu0 0.0
      %3221 = vmatprep.subr.mxu0 0.0
      %3222 = vmatpush2.msra.mxu0 0.0
      %3223 = vmatprep.subr.mxu0 0.0
      %3224 = vmatpush2.msra.mxu0 0.0
      %3225 = vmatprep.subr.mxu0 0.0
      %3226 = vmatpush2.msra.mxu0 0.0
      %3227 = vmatprep.subr.mxu0 0.0
      %3228 = vmatpush2.msra.mxu0 0.0
      %3229 = vmatprep.subr.mxu0 0.0
      %3230 = vmatpush2.msra.mxu0 0.0
      %3231 = vmatprep.subr.mxu0 0.0
      %3232 = vmatpush2.msra.mxu0 0.0
      %3233 = vmatprep.subr.mxu0 0.0
      %3234 = vmatpush2.msra.mxu0 0.0
      %3235 = vmatprep.subr.mxu0 0.0
      %3236 = vmatpush2.msra.mxu0 0.0
      %3237 = vmatprep.subr.mxu0 0.0
      %3238 = vmatpush2.msra.mxu0 0.0
      %3239 = vmatprep.subr.mxu0 0.0
      %3240 = vmatpush2.msra.mxu0 0.0
      %3241 = vmatprep.subr.mxu0 0.0
      %3242 = vmatpush2.msra.mxu0 0.0
      %3243 = vmatprep.mubr.f32.mxu0 0.0
      %3244 = vmatmul.mubr.f32.gmra.mxu0 %v3174
      %v3245 = vpop.f32.mrf.mxu0
      %v3246 = vadd.f32 0.0, %v3245
      %v3247 = vpop.f32.mrf.mxu0
      %3248 = vmatprep.mubr.f32.mxu0 0.0
      %3249 = vmatmul.mubr.f32.gmra.mxu0 %v3177
      %v3250 = vpop.f32.mrf.mxu0
      %v3251 = vadd.f32 0.0, %v3250
      %v3252 = vpop.f32.mrf.mxu0
      %3253 = vdwg.mxu0
      %3254 = vrot.lane.b32.xlu0 %v659, 80
      %v3255 = vpop.permute.xlu0 %3254
      %3256 = vrot.lane.b32.xlu0 %v664, 80
      %v3257 = vpop.permute.xlu0 %3256
      %v3261 = vsel %vm1053, %v3076, 0
      %v3264 = vsel %vm1053, %v3077, 0
      %3266 = vmatprep.subr.mxu0 0.0
      %3267 = vmatpush1.msra.mxu0 0.0
      %3268 = vmatprep.subr.mxu0 0.0
      %3269 = vmatpush1.msra.mxu0 0.0
      %3270 = vmatprep.subr.mxu0 0.0
      %3271 = vmatpush1.msra.mxu0 0.0
      %3272 = vmatprep.subr.mxu0 0.0
      %3273 = vmatpush1.msra.mxu0 0.0
      %3274 = vmatprep.subr.mxu0 0.0
      %3275 = vmatpush1.msra.mxu0 0.0
      %3276 = vmatprep.subr.mxu0 0.0
      %3277 = vmatpush1.msra.mxu0 0.0
      %3278 = vmatprep.subr.mxu0 0.0
      %3279 = vmatpush1.msra.mxu0 0.0
      %3280 = vmatprep.subr.mxu0 0.0
      %3281 = vmatpush1.msra.mxu0 0.0
      %3282 = vmatprep.subr.mxu0 0.0
      %3283 = vmatpush1.msra.mxu0 0.0
      %3284 = vmatprep.subr.mxu0 0.0
      %3285 = vmatpush1.msra.mxu0 0.0
      %3286 = vmatprep.subr.mxu0 0.0
      %3287 = vmatpush1.msra.mxu0 0.0
      %3288 = vmatprep.subr.mxu0 0.0
      %3289 = vmatpush1.msra.mxu0 0.0
      %3290 = vmatprep.subr.mxu0 0.0
      %3291 = vmatpush1.msra.mxu0 0.0
      %3292 = vmatprep.subr.mxu0 0.0
      %3293 = vmatpush1.msra.mxu0 0.0
      %3294 = vmatprep.subr.mxu0 0.0
      %3295 = vmatpush1.msra.mxu0 %v3257
      %3296 = vmatprep.subr.mxu0 0.0
      %3297 = vmatpush1.msra.mxu0 %v3255
      %3298 = vmatprep.subr.mxu0 0.0
      %3299 = vmatpush2.msra.mxu0 0.0
      %3300 = vmatprep.subr.mxu0 0.0
      %3301 = vmatpush2.msra.mxu0 0.0
      %3302 = vmatprep.subr.mxu0 0.0
      %3303 = vmatpush2.msra.mxu0 0.0
      %3304 = vmatprep.subr.mxu0 0.0
      %3305 = vmatpush2.msra.mxu0 0.0
      %3306 = vmatprep.subr.mxu0 0.0
      %3307 = vmatpush2.msra.mxu0 0.0
      %3308 = vmatprep.subr.mxu0 0.0
      %3309 = vmatpush2.msra.mxu0 0.0
      %3310 = vmatprep.subr.mxu0 0.0
      %3311 = vmatpush2.msra.mxu0 0.0
      %3312 = vmatprep.subr.mxu0 0.0
      %3313 = vmatpush2.msra.mxu0 0.0
      %3314 = vmatprep.subr.mxu0 0.0
      %3315 = vmatpush2.msra.mxu0 0.0
      %3316 = vmatprep.subr.mxu0 0.0
      %3317 = vmatpush2.msra.mxu0 0.0
      %3318 = vmatprep.subr.mxu0 0.0
      %3319 = vmatpush2.msra.mxu0 0.0
      %3320 = vmatprep.subr.mxu0 0.0
      %3321 = vmatpush2.msra.mxu0 0.0
      %3322 = vmatprep.subr.mxu0 0.0
      %3323 = vmatpush2.msra.mxu0 0.0
      %3324 = vmatprep.subr.mxu0 0.0
      %3325 = vmatpush2.msra.mxu0 0.0
      %3326 = vmatprep.subr.mxu0 0.0
      %3327 = vmatpush2.msra.mxu0 0.0
      %3328 = vmatprep.subr.mxu0 0.0
      %3329 = vmatpush2.msra.mxu0 0.0
      %3330 = vmatprep.mubr.f32.mxu0 0.0
      %3331 = vmatmul.mubr.f32.gmra.mxu0 %v3261
      %v3332 = vpop.f32.mrf.mxu0
      %v3333 = vadd.f32 0.0, %v3332
      %v3334 = vpop.f32.mrf.mxu0
      %3335 = vmatprep.mubr.f32.mxu0 0.0
      %3336 = vmatmul.mubr.f32.gmra.mxu0 %v3264
      %v3337 = vpop.f32.mrf.mxu0
      %v3338 = vadd.f32 0.0, %v3337
      %v3339 = vpop.f32.mrf.mxu0
      %3340 = vdwg.mxu0
      %3341 = vrot.lane.b32.xlu0 %v669, 80
      %v3342 = vpop.permute.xlu0 %3341
      %3343 = vrot.lane.b32.xlu0 %v674, 80
      %v3344 = vpop.permute.xlu0 %3343
      %v3348 = vsel %vm1053, %v3078, 0
      %v3351 = vsel %vm1053, %v3079, 0
      %3353 = vmatprep.subr.mxu0 0.0
      %3354 = vmatpush1.msra.mxu0 0.0
      %3355 = vmatprep.subr.mxu0 0.0
      %3356 = vmatpush1.msra.mxu0 0.0
      %3357 = vmatprep.subr.mxu0 0.0
      %3358 = vmatpush1.msra.mxu0 0.0
      %3359 = vmatprep.subr.mxu0 0.0
      %3360 = vmatpush1.msra.mxu0 0.0
      %3361 = vmatprep.subr.mxu0 0.0
      %3362 = vmatpush1.msra.mxu0 0.0
      %3363 = vmatprep.subr.mxu0 0.0
      %3364 = vmatpush1.msra.mxu0 0.0
      %3365 = vmatprep.subr.mxu0 0.0
      %3366 = vmatpush1.msra.mxu0 0.0
      %3367 = vmatprep.subr.mxu0 0.0
      %3368 = vmatpush1.msra.mxu0 0.0
      %3369 = vmatprep.subr.mxu0 0.0
      %3370 = vmatpush1.msra.mxu0 0.0
      %3371 = vmatprep.subr.mxu0 0.0
      %3372 = vmatpush1.msra.mxu0 0.0
      %3373 = vmatprep.subr.mxu0 0.0
      %3374 = vmatpush1.msra.mxu0 0.0
      %3375 = vmatprep.subr.mxu0 0.0
      %3376 = vmatpush1.msra.mxu0 0.0
      %3377 = vmatprep.subr.mxu0 0.0
      %3378 = vmatpush1.msra.mxu0 0.0
      %3379 = vmatprep.subr.mxu0 0.0
      %3380 = vmatpush1.msra.mxu0 0.0
      %3381 = vmatprep.subr.mxu0 0.0
      %3382 = vmatpush1.msra.mxu0 %v3344
      %3383 = vmatprep.subr.mxu0 0.0
      %3384 = vmatpush1.msra.mxu0 %v3342
      %3385 = vmatprep.subr.mxu0 0.0
      %3386 = vmatpush2.msra.mxu0 0.0
      %3387 = vmatprep.subr.mxu0 0.0
      %3388 = vmatpush2.msra.mxu0 0.0
      %3389 = vmatprep.subr.mxu0 0.0
      %3390 = vmatpush2.msra.mxu0 0.0
      %3391 = vmatprep.subr.mxu0 0.0
      %3392 = vmatpush2.msra.mxu0 0.0
      %3393 = vmatprep.subr.mxu0 0.0
      %3394 = vmatpush2.msra.mxu0 0.0
      %3395 = vmatprep.subr.mxu0 0.0
      %3396 = vmatpush2.msra.mxu0 0.0
      %3397 = vmatprep.subr.mxu0 0.0
      %3398 = vmatpush2.msra.mxu0 0.0
      %3399 = vmatprep.subr.mxu0 0.0
      %3400 = vmatpush2.msra.mxu0 0.0
      %3401 = vmatprep.subr.mxu0 0.0
      %3402 = vmatpush2.msra.mxu0 0.0
      %3403 = vmatprep.subr.mxu0 0.0
      %3404 = vmatpush2.msra.mxu0 0.0
      %3405 = vmatprep.subr.mxu0 0.0
      %3406 = vmatpush2.msra.mxu0 0.0
      %3407 = vmatprep.subr.mxu0 0.0
      %3408 = vmatpush2.msra.mxu0 0.0
      %3409 = vmatprep.subr.mxu0 0.0
      %3410 = vmatpush2.msra.mxu0 0.0
      %3411 = vmatprep.subr.mxu0 0.0
      %3412 = vmatpush2.msra.mxu0 0.0
      %3413 = vmatprep.subr.mxu0 0.0
      %3414 = vmatpush2.msra.mxu0 0.0
      %3415 = vmatprep.subr.mxu0 0.0
      %3416 = vmatpush2.msra.mxu0 0.0
      %3417 = vmatprep.mubr.f32.mxu0 0.0
      %3418 = vmatmul.mubr.f32.gmra.mxu0 %v3348
      %v3419 = vpop.f32.mrf.mxu0
      %v3420 = vadd.f32 0.0, %v3419
      %v3421 = vpop.f32.mrf.mxu0
      %3422 = vmatprep.mubr.f32.mxu0 0.0
      %3423 = vmatmul.mubr.f32.gmra.mxu0 %v3351
      %v3424 = vpop.f32.mrf.mxu0
      %v3425 = vadd.f32 0.0, %v3424
      %v3426 = vpop.f32.mrf.mxu0
      %3427 = vdwg.mxu0
      %v3428 = vld [vmem:[%s6 + $0x10] sm:$0xff]
      %v3430 = vsel %vm680, %v3159, 0
      %v3433 = vsel %vm680, %v3164, 0
      %v3436 = vsel %vm680, %v3246, 0
      %v3439 = vsel %vm680, %v3251, 0
      %v3442 = vsel %vm680, %v3333, 0
      %v3445 = vsel %vm680, %v3338, 0
      %v3448 = vsel %vm680, %v3420, 0
      %v3451 = vsel %vm680, %v3425, 0
      %3453 = vmatprep.subr.mxu0 0.0
      %3454 = vmatpush1.msra.mxu0 0.0
      %3455 = vmatprep.subr.mxu0 0.0
      %3456 = vmatpush1.msra.mxu0 0.0
      %3457 = vmatprep.subr.mxu0 0.0
      %3458 = vmatpush1.msra.mxu0 0.0
      %3459 = vmatprep.subr.mxu0 0.0
      %3460 = vmatpush1.msra.mxu0 0.0
      %3461 = vmatprep.subr.mxu0 0.0
      %3462 = vmatpush1.msra.mxu0 0.0
      %3463 = vmatprep.subr.mxu0 0.0
      %3464 = vmatpush1.msra.mxu0 0.0
      %3465 = vmatprep.subr.mxu0 0.0
      %3466 = vmatpush1.msra.mxu0 0.0
      %3467 = vmatprep.subr.mxu0 0.0
      %3468 = vmatpush1.msra.mxu0 0.0
      %3469 = vmatprep.subr.mxu0 0.0
      %3470 = vmatpush1.msra.mxu0 0.0
      %3471 = vmatprep.subr.mxu0 0.0
      %3472 = vmatpush1.msra.mxu0 0.0
      %3473 = vmatprep.subr.mxu0 0.0
      %3474 = vmatpush1.msra.mxu0 0.0
      %3475 = vmatprep.subr.mxu0 0.0
      %3476 = vmatpush1.msra.mxu0 0.0
      %3477 = vmatprep.subr.mxu0 0.0
      %3478 = vmatpush1.msra.mxu0 0.0
      %3479 = vmatprep.subr.mxu0 0.0
      %3480 = vmatpush1.msra.mxu0 0.0
      %3481 = vmatprep.subr.mxu0 0.0
      %3482 = vmatpush1.msra.mxu0 0.0
      %3483 = vmatprep.subr.mxu0 0.0
      %3484 = vmatpush1.msra.mxu0 %v3428
      %3485 = vmatprep.subr.mxu0 0.0
      %3486 = vmatpush2.msra.mxu0 0.0
      %3487 = vmatprep.subr.mxu0 0.0
      %3488 = vmatpush2.msra.mxu0 0.0
      %3489 = vmatprep.subr.mxu0 0.0
      %3490 = vmatpush2.msra.mxu0 0.0
      %3491 = vmatprep.subr.mxu0 0.0
      %3492 = vmatpush2.msra.mxu0 0.0
      %3493 = vmatprep.subr.mxu0 0.0
      %3494 = vmatpush2.msra.mxu0 0.0
      %3495 = vmatprep.subr.mxu0 0.0
      %3496 = vmatpush2.msra.mxu0 0.0
      %3497 = vmatprep.subr.mxu0 0.0
      %3498 = vmatpush2.msra.mxu0 0.0
      %3499 = vmatprep.subr.mxu0 0.0
      %3500 = vmatpush2.msra.mxu0 0.0
      %3501 = vmatprep.subr.mxu0 0.0
      %3502 = vmatpush2.msra.mxu0 0.0
      %3503 = vmatprep.subr.mxu0 0.0
      %3504 = vmatpush2.msra.mxu0 0.0
      %3505 = vmatprep.subr.mxu0 0.0
      %3506 = vmatpush2.msra.mxu0 0.0
      %3507 = vmatprep.subr.mxu0 0.0
      %3508 = vmatpush2.msra.mxu0 0.0
      %3509 = vmatprep.subr.mxu0 0.0
      %3510 = vmatpush2.msra.mxu0 0.0
      %3511 = vmatprep.subr.mxu0 0.0
      %3512 = vmatpush2.msra.mxu0 0.0
      %3513 = vmatprep.subr.mxu0 0.0
      %3514 = vmatpush2.msra.mxu0 0.0
      %3515 = vmatprep.subr.mxu0 0.0
      %3516 = vmatpush2.msra.mxu0 0.0
      %3517 = vmatprep.mubr.f32.mxu0 0.0
      %3518 = vmatmul.mubr.f32.gmra.mxu0 %v3430
      %v3519 = vpop.f32.mrf.mxu0
      %v3520 = vadd.f32 0.0, %v3519
      %v3521 = vpop.f32.mrf.mxu0
      %3522 = vmatprep.mubr.f32.mxu0 0.0
      %3523 = vmatmul.mubr.f32.gmra.mxu0 %v3433
      %v3524 = vpop.f32.mrf.mxu0
      %v3525 = vadd.f32 0.0, %v3524
      %v3526 = vpop.f32.mrf.mxu0
      %3527 = vmatprep.mubr.f32.mxu0 0.0
      %3528 = vmatmul.mubr.f32.gmra.mxu0 %v3436
      %v3529 = vpop.f32.mrf.mxu0
      %v3530 = vadd.f32 0.0, %v3529
      %v3531 = vpop.f32.mrf.mxu0
      %3532 = vmatprep.mubr.f32.mxu0 0.0
      %3533 = vmatmul.mubr.f32.gmra.mxu0 %v3439
      %v3534 = vpop.f32.mrf.mxu0
      %v3535 = vadd.f32 0.0, %v3534
      %v3536 = vpop.f32.mrf.mxu0
      %3537 = vmatprep.mubr.f32.mxu0 0.0
      %3538 = vmatmul.mubr.f32.gmra.mxu0 %v3442
      %v3539 = vpop.f32.mrf.mxu0
      %v3540 = vadd.f32 0.0, %v3539
      %v3541 = vpop.f32.mrf.mxu0
      %3542 = vmatprep.mubr.f32.mxu0 0.0
      %3543 = vmatmul.mubr.f32.gmra.mxu0 %v3445
      %v3544 = vpop.f32.mrf.mxu0
      %v3545 = vadd.f32 0.0, %v3544
      %v3546 = vpop.f32.mrf.mxu0
      %3547 = vmatprep.mubr.f32.mxu0 0.0
      %3548 = vmatmul.mubr.f32.gmra.mxu0 %v3448
      %v3549 = vpop.f32.mrf.mxu0
      %v3550 = vadd.f32 0.0, %v3549
      %v3551 = vpop.f32.mrf.mxu0
      %3552 = vmatprep.mubr.f32.mxu0 0.0
      %3553 = vmatmul.mubr.f32.gmra.mxu0 %v3451
      %v3554 = vpop.f32.mrf.mxu0
      %v3555 = vadd.f32 0.0, %v3554
      %v3556 = vpop.f32.mrf.mxu0
      %3557 = vdwg.mxu0
      %v3558 = vadd.f32 %v2592, %v3520
      %v3559 = vadd.f32 %v2593, %v3525
      %v3560 = vadd.f32 %v2594, %v3530
      %v3561 = vadd.f32 %v2595, %v3535
      %v3562 = vadd.f32 %v2596, %v3540
      %v3563 = vadd.f32 %v2597, %v3545
      %v3564 = vadd.f32 %v2598, %v3550
      %v3565 = vadd.f32 %v2599, %v3555
      %s3566 = scalar_lea.vmem %s8, 48
      %v3567 = vld [vmem:[%s3566] sm:$0xff]
      %v3568 = vld [vmem:[%s3566 + $0x8] sm:$0xff]
      %3569 = vrot.lane.b32.xlu0 %v499, 104
      %v3570 = vpop.permute.xlu0 %3569
      %3571 = vrot.lane.b32.xlu0 %v504, 104
      %v3572 = vpop.permute.xlu0 %3571
      %3573 = vrot.lane.b32.xlu0 %v639, 104
      %v3574 = vpop.permute.xlu0 %3573
      %3575 = vrot.lane.b32.xlu0 %v644, 104
      %v3576 = vpop.permute.xlu0 %3575
      %v3577 = vsel %vm680, %v3570, 0
      %v3579 = vsel %vm680, %v3572, 0
      %v3581 = vsel %vm680, %v3574, 0
      %v3583 = vsel %vm680, %v3576, 0
      %3585 = vmatprep.subr.mxu0 0.0
      %3586 = vmatpush1.xpose.msra.mxu0 0.0
      %3587 = vmatprep.subr.mxu0 0.0
      %3588 = vmatpush1.xpose.msra.mxu0 0.0
      %3589 = vmatprep.subr.mxu0 0.0
      %3590 = vmatpush1.xpose.msra.mxu0 0.0
      %3591 = vmatprep.subr.mxu0 0.0
      %3592 = vmatpush1.xpose.msra.mxu0 0.0
      %3593 = vmatprep.subr.mxu0 0.0
      %3594 = vmatpush1.xpose.msra.mxu0 0.0
      %3595 = vmatprep.subr.mxu0 0.0
      %3596 = vmatpush1.xpose.msra.mxu0 0.0
      %3597 = vmatprep.subr.mxu0 0.0
      %3598 = vmatpush1.xpose.msra.mxu0 0.0
      %3599 = vmatprep.subr.mxu0 0.0
      %3600 = vmatpush1.xpose.msra.mxu0 0.0
      %3601 = vmatprep.subr.mxu0 0.0
      %3602 = vmatpush1.xpose.msra.mxu0 0.0
      %3603 = vmatprep.subr.mxu0 0.0
      %3604 = vmatpush1.xpose.msra.mxu0 0.0
      %3605 = vmatprep.subr.mxu0 0.0
      %3606 = vmatpush1.xpose.msra.mxu0 0.0
      %3607 = vmatprep.subr.mxu0 0.0
      %3608 = vmatpush1.xpose.msra.mxu0 0.0
      %3609 = vmatprep.subr.mxu0 0.0
      %3610 = vmatpush1.xpose.msra.mxu0 0.0
      %3611 = vmatprep.subr.mxu0 0.0
      %3612 = vmatpush1.xpose.msra.mxu0 0.0
      %3613 = vmatprep.subr.mxu0 0.0
      %3614 = vmatpush1.xpose.msra.mxu0 %v3583
      %3615 = vmatprep.subr.mxu0 0.0
      %3616 = vmatpush1.xpose.msra.mxu0 %v3581
      %3617 = vmatprep.subr.mxu0 0.0
      %3618 = vmatpush2.xpose.msra.mxu0 0.0
      %3619 = vmatprep.subr.mxu0 0.0
      %3620 = vmatpush2.xpose.msra.mxu0 0.0
      %3621 = vmatprep.subr.mxu0 0.0
      %3622 = vmatpush2.xpose.msra.mxu0 0.0
      %3623 = vmatprep.subr.mxu0 0.0
      %3624 = vmatpush2.xpose.msra.mxu0 0.0
      %3625 = vmatprep.subr.mxu0 0.0
      %3626 = vmatpush2.xpose.msra.mxu0 0.0
      %3627 = vmatprep.subr.mxu0 0.0
      %3628 = vmatpush2.xpose.msra.mxu0 0.0
      %3629 = vmatprep.subr.mxu0 0.0
      %3630 = vmatpush2.xpose.msra.mxu0 0.0
      %3631 = vmatprep.subr.mxu0 0.0
      %3632 = vmatpush2.xpose.msra.mxu0 0.0
      %3633 = vmatprep.subr.mxu0 0.0
      %3634 = vmatpush2.xpose.msra.mxu0 0.0
      %3635 = vmatprep.subr.mxu0 0.0
      %3636 = vmatpush2.xpose.msra.mxu0 0.0
      %3637 = vmatprep.subr.mxu0 0.0
      %3638 = vmatpush2.xpose.msra.mxu0 0.0
      %3639 = vmatprep.subr.mxu0 0.0
      %3640 = vmatpush2.xpose.msra.mxu0 0.0
      %3641 = vmatprep.subr.mxu0 0.0
      %3642 = vmatpush2.xpose.msra.mxu0 0.0
      %3643 = vmatprep.subr.mxu0 0.0
      %3644 = vmatpush2.xpose.msra.mxu0 0.0
      %3645 = vmatprep.subr.mxu0 0.0
      %3646 = vmatpush2.xpose.msra.mxu0 0.0
      %3647 = vmatprep.subr.mxu0 0.0
      %3648 = vmatpush2.xpose.msra.mxu0 0.0
      %3649 = vmatprep.mubr.f32.mxu0 0.0
      %3650 = vmatmul.mubr.f32.gmra.mxu0 %v3577
      %v3651 = vpop.f32.mrf.mxu0
      %v3652 = vadd.f32 %v3567, %v3651
      %v3653 = vpop.f32.mrf.mxu0
      %3654 = vmatprep.mubr.f32.mxu0 0.0
      %3655 = vmatmul.mubr.f32.gmra.mxu0 %v3579
      %v3656 = vpop.f32.mrf.mxu0
      %v3657 = vadd.f32 %v3568, %v3656
      %v3658 = vpop.f32.mrf.mxu0
      %3659 = vdwg.mxu0
      %3660 = vrot.lane.b32.xlu0 %v509, 104
      %v3661 = vpop.permute.xlu0 %3660
      %3662 = vrot.lane.b32.xlu0 %v514, 104
      %v3663 = vpop.permute.xlu0 %3662
      %3664 = vrot.lane.b32.xlu0 %v649, 104
      %v3665 = vpop.permute.xlu0 %3664
      %3666 = vrot.lane.b32.xlu0 %v654, 104
      %v3667 = vpop.permute.xlu0 %3666
      %v3668 = vsel %vm680, %v3661, 0
      %v3670 = vsel %vm680, %v3663, 0
      %v3672 = vsel %vm680, %v3665, 0
      %v3674 = vsel %vm680, %v3667, 0
      %3676 = vmatprep.subr.mxu0 0.0
      %3677 = vmatpush1.xpose.msra.mxu0 0.0
      %3678 = vmatprep.subr.mxu0 0.0
      %3679 = vmatpush1.xpose.msra.mxu0 0.0
      %3680 = vmatprep.subr.mxu0 0.0
      %3681 = vmatpush1.xpose.msra.mxu0 0.0
      %3682 = vmatprep.subr.mxu0 0.0
      %3683 = vmatpush1.xpose.msra.mxu0 0.0
      %3684 = vmatprep.subr.mxu0 0.0
      %3685 = vmatpush1.xpose.msra.mxu0 0.0
      %3686 = vmatprep.subr.mxu0 0.0
      %3687 = vmatpush1.xpose.msra.mxu0 0.0
      %3688 = vmatprep.subr.mxu0 0.0
      %3689 = vmatpush1.xpose.msra.mxu0 0.0
      %3690 = vmatprep.subr.mxu0 0.0
      %3691 = vmatpush1.xpose.msra.mxu0 0.0
      %3692 = vmatprep.subr.mxu0 0.0
      %3693 = vmatpush1.xpose.msra.mxu0 0.0
      %3694 = vmatprep.subr.mxu0 0.0
      %3695 = vmatpush1.xpose.msra.mxu0 0.0
      %3696 = vmatprep.subr.mxu0 0.0
      %3697 = vmatpush1.xpose.msra.mxu0 0.0
      %3698 = vmatprep.subr.mxu0 0.0
      %3699 = vmatpush1.xpose.msra.mxu0 0.0
      %3700 = vmatprep.subr.mxu0 0.0
      %3701 = vmatpush1.xpose.msra.mxu0 0.0
      %3702 = vmatprep.subr.mxu0 0.0
      %3703 = vmatpush1.xpose.msra.mxu0 0.0
      %3704 = vmatprep.subr.mxu0 0.0
      %3705 = vmatpush1.xpose.msra.mxu0 %v3674
      %3706 = vmatprep.subr.mxu0 0.0
      %3707 = vmatpush1.xpose.msra.mxu0 %v3672
      %3708 = vmatprep.subr.mxu0 0.0
      %3709 = vmatpush2.xpose.msra.mxu0 0.0
      %3710 = vmatprep.subr.mxu0 0.0
      %3711 = vmatpush2.xpose.msra.mxu0 0.0
      %3712 = vmatprep.subr.mxu0 0.0
      %3713 = vmatpush2.xpose.msra.mxu0 0.0
      %3714 = vmatprep.subr.mxu0 0.0
      %3715 = vmatpush2.xpose.msra.mxu0 0.0
      %3716 = vmatprep.subr.mxu0 0.0
      %3717 = vmatpush2.xpose.msra.mxu0 0.0
      %3718 = vmatprep.subr.mxu0 0.0
      %3719 = vmatpush2.xpose.msra.mxu0 0.0
      %3720 = vmatprep.subr.mxu0 0.0
      %3721 = vmatpush2.xpose.msra.mxu0 0.0
      %3722 = vmatprep.subr.mxu0 0.0
      %3723 = vmatpush2.xpose.msra.mxu0 0.0
      %3724 = vmatprep.subr.mxu0 0.0
      %3725 = vmatpush2.xpose.msra.mxu0 0.0
      %3726 = vmatprep.subr.mxu0 0.0
      %3727 = vmatpush2.xpose.msra.mxu0 0.0
      %3728 = vmatprep.subr.mxu0 0.0
      %3729 = vmatpush2.xpose.msra.mxu0 0.0
      %3730 = vmatprep.subr.mxu0 0.0
      %3731 = vmatpush2.xpose.msra.mxu0 0.0
      %3732 = vmatprep.subr.mxu0 0.0
      %3733 = vmatpush2.xpose.msra.mxu0 0.0
      %3734 = vmatprep.subr.mxu0 0.0
      %3735 = vmatpush2.xpose.msra.mxu0 0.0
      %3736 = vmatprep.subr.mxu0 0.0
      %3737 = vmatpush2.xpose.msra.mxu0 0.0
      %3738 = vmatprep.subr.mxu0 0.0
      %3739 = vmatpush2.xpose.msra.mxu0 0.0
      %3740 = vmatprep.mubr.f32.mxu0 0.0
      %3741 = vmatmul.mubr.f32.gmra.mxu0 %v3668
      %v3742 = vpop.f32.mrf.mxu0
      %v3743 = vadd.f32 %v3567, %v3742
      %v3744 = vpop.f32.mrf.mxu0
      %3745 = vmatprep.mubr.f32.mxu0 0.0
      %3746 = vmatmul.mubr.f32.gmra.mxu0 %v3670
      %v3747 = vpop.f32.mrf.mxu0
      %v3748 = vadd.f32 %v3568, %v3747
      %v3749 = vpop.f32.mrf.mxu0
      %3750 = vdwg.mxu0
      %3751 = vrot.lane.b32.xlu0 %v519, 104
      %v3752 = vpop.permute.xlu0 %3751
      %3753 = vrot.lane.b32.xlu0 %v524, 104
      %v3754 = vpop.permute.xlu0 %3753
      %3755 = vrot.lane.b32.xlu0 %v659, 104
      %v3756 = vpop.permute.xlu0 %3755
      %3757 = vrot.lane.b32.xlu0 %v664, 104
      %v3758 = vpop.permute.xlu0 %3757
      %v3759 = vsel %vm680, %v3752, 0
      %v3761 = vsel %vm680, %v3754, 0
      %v3763 = vsel %vm680, %v3756, 0
      %v3765 = vsel %vm680, %v3758, 0
      %3767 = vmatprep.subr.mxu0 0.0
      %3768 = vmatpush1.xpose.msra.mxu0 0.0
      %3769 = vmatprep.subr.mxu0 0.0
      %3770 = vmatpush1.xpose.msra.mxu0 0.0
      %3771 = vmatprep.subr.mxu0 0.0
      %3772 = vmatpush1.xpose.msra.mxu0 0.0
      %3773 = vmatprep.subr.mxu0 0.0
      %3774 = vmatpush1.xpose.msra.mxu0 0.0
      %3775 = vmatprep.subr.mxu0 0.0
      %3776 = vmatpush1.xpose.msra.mxu0 0.0
      %3777 = vmatprep.subr.mxu0 0.0
      %3778 = vmatpush1.xpose.msra.mxu0 0.0
      %3779 = vmatprep.subr.mxu0 0.0
      %3780 = vmatpush1.xpose.msra.mxu0 0.0
      %3781 = vmatprep.subr.mxu0 0.0
      %3782 = vmatpush1.xpose.msra.mxu0 0.0
      %3783 = vmatprep.subr.mxu0 0.0
      %3784 = vmatpush1.xpose.msra.mxu0 0.0
      %3785 = vmatprep.subr.mxu0 0.0
      %3786 = vmatpush1.xpose.msra.mxu0 0.0
      %3787 = vmatprep.subr.mxu0 0.0
      %3788 = vmatpush1.xpose.msra.mxu0 0.0
      %3789 = vmatprep.subr.mxu0 0.0
      %3790 = vmatpush1.xpose.msra.mxu0 0.0
      %3791 = vmatprep.subr.mxu0 0.0
      %3792 = vmatpush1.xpose.msra.mxu0 0.0
      %3793 = vmatprep.subr.mxu0 0.0
      %3794 = vmatpush1.xpose.msra.mxu0 0.0
      %3795 = vmatprep.subr.mxu0 0.0
      %3796 = vmatpush1.xpose.msra.mxu0 %v3765
      %3797 = vmatprep.subr.mxu0 0.0
      %3798 = vmatpush1.xpose.msra.mxu0 %v3763
      %3799 = vmatprep.subr.mxu0 0.0
      %3800 = vmatpush2.xpose.msra.mxu0 0.0
      %3801 = vmatprep.subr.mxu0 0.0
      %3802 = vmatpush2.xpose.msra.mxu0 0.0
      %3803 = vmatprep.subr.mxu0 0.0
      %3804 = vmatpush2.xpose.msra.mxu0 0.0
      %3805 = vmatprep.subr.mxu0 0.0
      %3806 = vmatpush2.xpose.msra.mxu0 0.0
      %3807 = vmatprep.subr.mxu0 0.0
      %3808 = vmatpush2.xpose.msra.mxu0 0.0
      %3809 = vmatprep.subr.mxu0 0.0
      %3810 = vmatpush2.xpose.msra.mxu0 0.0
      %3811 = vmatprep.subr.mxu0 0.0
      %3812 = vmatpush2.xpose.msra.mxu0 0.0
      %3813 = vmatprep.subr.mxu0 0.0
      %3814 = vmatpush2.xpose.msra.mxu0 0.0
      %3815 = vmatprep.subr.mxu0 0.0
      %3816 = vmatpush2.xpose.msra.mxu0 0.0
      %3817 = vmatprep.subr.mxu0 0.0
      %3818 = vmatpush2.xpose.msra.mxu0 0.0
      %3819 = vmatprep.subr.mxu0 0.0
      %3820 = vmatpush2.xpose.msra.mxu0 0.0
      %3821 = vmatprep.subr.mxu0 0.0
      %3822 = vmatpush2.xpose.msra.mxu0 0.0
      %3823 = vmatprep.subr.mxu0 0.0
      %3824 = vmatpush2.xpose.msra.mxu0 0.0
      %3825 = vmatprep.subr.mxu0 0.0
      %3826 = vmatpush2.xpose.msra.mxu0 0.0
      %3827 = vmatprep.subr.mxu0 0.0
      %3828 = vmatpush2.xpose.msra.mxu0 0.0
      %3829 = vmatprep.subr.mxu0 0.0
      %3830 = vmatpush2.xpose.msra.mxu0 0.0
      %3831 = vmatprep.mubr.f32.mxu0 0.0
      %3832 = vmatmul.mubr.f32.gmra.mxu0 %v3759
      %v3833 = vpop.f32.mrf.mxu0
      %v3834 = vadd.f32 %v3567, %v3833
      %v3835 = vpop.f32.mrf.mxu0
      %3836 = vmatprep.mubr.f32.mxu0 0.0
      %3837 = vmatmul.mubr.f32.gmra.mxu0 %v3761
      %v3838 = vpop.f32.mrf.mxu0
      %v3839 = vadd.f32 %v3568, %v3838
      %v3840 = vpop.f32.mrf.mxu0
      %3841 = vdwg.mxu0
      %3842 = vrot.lane.b32.xlu0 %v529, 104
      %v3843 = vpop.permute.xlu0 %3842
      %3844 = vrot.lane.b32.xlu0 %v534, 104
      %v3845 = vpop.permute.xlu0 %3844
      %3846 = vrot.lane.b32.xlu0 %v669, 104
      %v3847 = vpop.permute.xlu0 %3846
      %3848 = vrot.lane.b32.xlu0 %v674, 104
      %v3849 = vpop.permute.xlu0 %3848
      %v3850 = vsel %vm680, %v3843, 0
      %v3852 = vsel %vm680, %v3845, 0
      %v3854 = vsel %vm680, %v3847, 0
      %v3856 = vsel %vm680, %v3849, 0
      %3858 = vmatprep.subr.mxu0 0.0
      %3859 = vmatpush1.xpose.msra.mxu0 0.0
      %3860 = vmatprep.subr.mxu0 0.0
      %3861 = vmatpush1.xpose.msra.mxu0 0.0
      %3862 = vmatprep.subr.mxu0 0.0
      %3863 = vmatpush1.xpose.msra.mxu0 0.0
      %3864 = vmatprep.subr.mxu0 0.0
      %3865 = vmatpush1.xpose.msra.mxu0 0.0
      %3866 = vmatprep.subr.mxu0 0.0
      %3867 = vmatpush1.xpose.msra.mxu0 0.0
      %3868 = vmatprep.subr.mxu0 0.0
      %3869 = vmatpush1.xpose.msra.mxu0 0.0
      %3870 = vmatprep.subr.mxu0 0.0
      %3871 = vmatpush1.xpose.msra.mxu0 0.0
      %3872 = vmatprep.subr.mxu0 0.0
      %3873 = vmatpush1.xpose.msra.mxu0 0.0
      %3874 = vmatprep.subr.mxu0 0.0
      %3875 = vmatpush1.xpose.msra.mxu0 0.0
      %3876 = vmatprep.subr.mxu0 0.0
      %3877 = vmatpush1.xpose.msra.mxu0 0.0
      %3878 = vmatprep.subr.mxu0 0.0
      %3879 = vmatpush1.xpose.msra.mxu0 0.0
      %3880 = vmatprep.subr.mxu0 0.0
      %3881 = vmatpush1.xpose.msra.mxu0 0.0
      %3882 = vmatprep.subr.mxu0 0.0
      %3883 = vmatpush1.xpose.msra.mxu0 0.0
      %3884 = vmatprep.subr.mxu0 0.0
      %3885 = vmatpush1.xpose.msra.mxu0 0.0
      %3886 = vmatprep.subr.mxu0 0.0
      %3887 = vmatpush1.xpose.msra.mxu0 %v3856
      %3888 = vmatprep.subr.mxu0 0.0
      %3889 = vmatpush1.xpose.msra.mxu0 %v3854
      %3890 = vmatprep.subr.mxu0 0.0
      %3891 = vmatpush2.xpose.msra.mxu0 0.0
      %3892 = vmatprep.subr.mxu0 0.0
      %3893 = vmatpush2.xpose.msra.mxu0 0.0
      %3894 = vmatprep.subr.mxu0 0.0
      %3895 = vmatpush2.xpose.msra.mxu0 0.0
      %3896 = vmatprep.subr.mxu0 0.0
      %3897 = vmatpush2.xpose.msra.mxu0 0.0
      %3898 = vmatprep.subr.mxu0 0.0
      %3899 = vmatpush2.xpose.msra.mxu0 0.0
      %3900 = vmatprep.subr.mxu0 0.0
      %3901 = vmatpush2.xpose.msra.mxu0 0.0
      %3902 = vmatprep.subr.mxu0 0.0
      %3903 = vmatpush2.xpose.msra.mxu0 0.0
      %3904 = vmatprep.subr.mxu0 0.0
      %3905 = vmatpush2.xpose.msra.mxu0 0.0
      %3906 = vmatprep.subr.mxu0 0.0
      %3907 = vmatpush2.xpose.msra.mxu0 0.0
      %3908 = vmatprep.subr.mxu0 0.0
      %3909 = vmatpush2.xpose.msra.mxu0 0.0
      %3910 = vmatprep.subr.mxu0 0.0
      %3911 = vmatpush2.xpose.msra.mxu0 0.0
      %3912 = vmatprep.subr.mxu0 0.0
      %3913 = vmatpush2.xpose.msra.mxu0 0.0
      %3914 = vmatprep.subr.mxu0 0.0
      %3915 = vmatpush2.xpose.msra.mxu0 0.0
      %3916 = vmatprep.subr.mxu0 0.0
      %3917 = vmatpush2.xpose.msra.mxu0 0.0
      %3918 = vmatprep.subr.mxu0 0.0
      %3919 = vmatpush2.xpose.msra.mxu0 0.0
      %3920 = vmatprep.subr.mxu0 0.0
      %3921 = vmatpush2.xpose.msra.mxu0 0.0
      %3922 = vmatprep.mubr.f32.mxu0 0.0
      %3923 = vmatmul.mubr.f32.gmra.mxu0 %v3850
      %v3924 = vpop.f32.mrf.mxu0
      %v3925 = vadd.f32 %v3567, %v3924
      %v3926 = vpop.f32.mrf.mxu0
      %3927 = vmatprep.mubr.f32.mxu0 0.0
      %3928 = vmatmul.mubr.f32.gmra.mxu0 %v3852
      %v3929 = vpop.f32.mrf.mxu0
      %v3930 = vadd.f32 %v3568, %v3929
      %v3931 = vpop.f32.mrf.mxu0
      %3932 = vdwg.mxu0
      %s3933 = scalar_lea.vmem %s9, 96
      %v3934 = vld [vmem:[%s3933] sm:$0xf]
      %v3935 = vld [vmem:[%s3933 + $0x4] sm:$0xf]
      %v3936 = vld [vmem:[%s3933 + $0x8] sm:$0xf]
      %v3937 = vld [vmem:[%s3933 + $0xc] sm:$0xf]
      %v3938 = vld [vmem:[%s3933 + $0x10] sm:$0xf]
      %v3939 = vld [vmem:[%s3933 + $0x14] sm:$0xf]
      %v3940 = vld [vmem:[%s3933 + $0x18] sm:$0xf]
      %v3941 = vld [vmem:[%s3933 + $0x1c] sm:$0xf]
      %v3942 = vunpack.c.l.bf16 %v3934
      %v3943 = vunpack.c.l.bf16 %v3935
      %v3944 = vunpack.c.l.bf16 %v3936
      %v3945 = vunpack.c.l.bf16 %v3937
      %v3946 = vunpack.c.l.bf16 %v3938
      %v3947 = vunpack.c.l.bf16 %v3939
      %v3948 = vunpack.c.l.bf16 %v3940
      %v3949 = vunpack.c.l.bf16 %v3941
      %v3950 = vadd.f32 %v3652, %v3942
      %v3951 = vadd.f32 %v3657, %v3943
      %v3952 = vadd.f32 %v3743, %v3944
      %v3953 = vadd.f32 %v3748, %v3945
      %v3954 = vadd.f32 %v3834, %v3946
      %v3955 = vadd.f32 %v3839, %v3947
      %v3956 = vadd.f32 %v3925, %v3948
      %v3957 = vadd.f32 %v3930, %v3949
      %v3958 = vsel %vm1053, %v3950, -inf
      %3959 = vmax.xlane.f32.xlu0 %v3958
      %v3960 = vpop.xlane.xlu0 %3959
      %v3961 = vsel %vm1053, %v3951, -inf
      %3962 = vmax.xlane.f32.xlu0 %v3961
      %v3963 = vpop.xlane.xlu0 %3962
      %v3964 = vsel %vm1053, %v3952, -inf
      %3965 = vmax.xlane.f32.xlu0 %v3964
      %v3966 = vpop.xlane.xlu0 %3965
      %v3967 = vsel %vm1053, %v3953, -inf
      %3968 = vmax.xlane.f32.xlu0 %v3967
      %v3969 = vpop.xlane.xlu0 %3968
      %v3970 = vsel %vm1053, %v3954, -inf
      %3971 = vmax.xlane.f32.xlu0 %v3970
      %v3972 = vpop.xlane.xlu0 %3971
      %v3973 = vsel %vm1053, %v3955, -inf
      %3974 = vmax.xlane.f32.xlu0 %v3973
      %v3975 = vpop.xlane.xlu0 %3974
      %v3976 = vsel %vm1053, %v3956, -inf
      %3977 = vmax.xlane.f32.xlu0 %v3976
      %v3978 = vpop.xlane.xlu0 %3977
      %v3979 = vsel %vm1053, %v3957, -inf
      %3980 = vmax.xlane.f32.xlu0 %v3979
      %v3981 = vpop.xlane.xlu0 %3980
      %v3982 = vsub.f32 %v3950, %v3960
      %v3983 = vsub.f32 %v3951, %v3963
      %v3984 = vsub.f32 %v3952, %v3966
      %v3985 = vsub.f32 %v3953, %v3969
      %v3986 = vsub.f32 %v3954, %v3972
      %v3987 = vsub.f32 %v3955, %v3975
      %v3988 = vsub.f32 %v3956, %v3978
      %v3989 = vsub.f32 %v3957, %v3981
      %v3990 = vmul.f32 %v3982, 1.442695
      %v3991 = vpow.pop %v3990
      %v3992 = vmul.f32 %v3983, 1.442695
      %v3993 = vpow.pop %v3992
      %v3994 = vmul.f32 %v3984, 1.442695
      %v3995 = vpow.pop %v3994
      %v3996 = vmul.f32 %v3985, 1.442695
      %v3997 = vpow.pop %v3996
      %v3998 = vmul.f32 %v3986, 1.442695
      %v3999 = vpow.pop %v3998
      %v4000 = vmul.f32 %v3987, 1.442695
      %v4001 = vpow.pop %v4000
      %v4002 = vmul.f32 %v3988, 1.442695
      %v4003 = vpow.pop %v4002
      %v4004 = vmul.f32 %v3989, 1.442695
      %v4005 = vpow.pop %v4004
      %v4006 = vsel %vm1053, %v3991, 0.0
      %4007 = vadd.xlane.f32.xlu0 %v4006
      %v4008 = vpop.xlane.xlu0 %4007
      %v4009 = vsel %vm1053, %v3993, 0.0
      %4010 = vadd.xlane.f32.xlu0 %v4009
      %v4011 = vpop.xlane.xlu0 %4010
      %v4012 = vsel %vm1053, %v3995, 0.0
      %4013 = vadd.xlane.f32.xlu0 %v4012
      %v4014 = vpop.xlane.xlu0 %4013
      %v4015 = vsel %vm1053, %v3997, 0.0
      %4016 = vadd.xlane.f32.xlu0 %v4015
      %v4017 = vpop.xlane.xlu0 %4016
      %v4018 = vsel %vm1053, %v3999, 0.0
      %4019 = vadd.xlane.f32.xlu0 %v4018
      %v4020 = vpop.xlane.xlu0 %4019
      %v4021 = vsel %vm1053, %v4001, 0.0
      %4022 = vadd.xlane.f32.xlu0 %v4021
      %v4023 = vpop.xlane.xlu0 %4022
      %v4024 = vsel %vm1053, %v4003, 0.0
      %4025 = vadd.xlane.f32.xlu0 %v4024
      %v4026 = vpop.xlane.xlu0 %4025
      %v4027 = vsel %vm1053, %v4005, 0.0
      %4028 = vadd.xlane.f32.xlu0 %v4027
      %v4029 = vpop.xlane.xlu0 %4028
      %v4030 = vrcp.pop %v4008
      %v4031 = vrcp.pop %v4011
      %v4032 = vrcp.pop %v4014
      %v4033 = vrcp.pop %v4017
      %v4034 = vrcp.pop %v4020
      %v4035 = vrcp.pop %v4023
      %v4036 = vrcp.pop %v4026
      %v4037 = vrcp.pop %v4029
      %v4038 = vmul.f32 %v3991, %v4030
      %v4039 = vmul.f32 %v3993, %v4031
      %v4040 = vmul.f32 %v3995, %v4032
      %v4041 = vmul.f32 %v3997, %v4033
      %v4042 = vmul.f32 %v3999, %v4034
      %v4043 = vmul.f32 %v4001, %v4035
      %v4044 = vmul.f32 %v4003, %v4036
      %v4045 = vmul.f32 %v4005, %v4037
      %4046 = vrot.lane.b32.xlu0 %v639, 72
      %v4047 = vpop.permute.xlu0 %4046
      %4048 = vrot.lane.b32.xlu0 %v644, 72
      %v4049 = vpop.permute.xlu0 %4048
      %v4053 = vsel %vm1053, %v4038, 0
      %v4056 = vsel %vm1053, %v4039, 0
      %4058 = vmatprep.subr.mxu0 0.0
      %4059 = vmatpush1.msra.mxu0 0.0
      %4060 = vmatprep.subr.mxu0 0.0
      %4061 = vmatpush1.msra.mxu0 0.0
      %4062 = vmatprep.subr.mxu0 0.0
      %4063 = vmatpush1.msra.mxu0 0.0
      %4064 = vmatprep.subr.mxu0 0.0
      %4065 = vmatpush1.msra.mxu0 0.0
      %4066 = vmatprep.subr.mxu0 0.0
      %4067 = vmatpush1.msra.mxu0 0.0
      %4068 = vmatprep.subr.mxu0 0.0
      %4069 = vmatpush1.msra.mxu0 0.0
      %4070 = vmatprep.subr.mxu0 0.0
      %4071 = vmatpush1.msra.mxu0 0.0
      %4072 = vmatprep.subr.mxu0 0.0
      %4073 = vmatpush1.msra.mxu0 0.0
      %4074 = vmatprep.subr.mxu0 0.0
      %4075 = vmatpush1.msra.mxu0 0.0
      %4076 = vmatprep.subr.mxu0 0.0
      %4077 = vmatpush1.msra.mxu0 0.0
      %4078 = vmatprep.subr.mxu0 0.0
      %4079 = vmatpush1.msra.mxu0 0.0
      %4080 = vmatprep.subr.mxu0 0.0
      %4081 = vmatpush1.msra.mxu0 0.0
      %4082 = vmatprep.subr.mxu0 0.0
      %4083 = vmatpush1.msra.mxu0 0.0
      %4084 = vmatprep.subr.mxu0 0.0
      %4085 = vmatpush1.msra.mxu0 0.0
      %4086 = vmatprep.subr.mxu0 0.0
      %4087 = vmatpush1.msra.mxu0 %v4049
      %4088 = vmatprep.subr.mxu0 0.0
      %4089 = vmatpush1.msra.mxu0 %v4047
      %4090 = vmatprep.subr.mxu0 0.0
      %4091 = vmatpush2.msra.mxu0 0.0
      %4092 = vmatprep.subr.mxu0 0.0
      %4093 = vmatpush2.msra.mxu0 0.0
      %4094 = vmatprep.subr.mxu0 0.0
      %4095 = vmatpush2.msra.mxu0 0.0
      %4096 = vmatprep.subr.mxu0 0.0
      %4097 = vmatpush2.msra.mxu0 0.0
      %4098 = vmatprep.subr.mxu0 0.0
      %4099 = vmatpush2.msra.mxu0 0.0
      %4100 = vmatprep.subr.mxu0 0.0
      %4101 = vmatpush2.msra.mxu0 0.0
      %4102 = vmatprep.subr.mxu0 0.0
      %4103 = vmatpush2.msra.mxu0 0.0
      %4104 = vmatprep.subr.mxu0 0.0
      %4105 = vmatpush2.msra.mxu0 0.0
      %4106 = vmatprep.subr.mxu0 0.0
      %4107 = vmatpush2.msra.mxu0 0.0
      %4108 = vmatprep.subr.mxu0 0.0
      %4109 = vmatpush2.msra.mxu0 0.0
      %4110 = vmatprep.subr.mxu0 0.0
      %4111 = vmatpush2.msra.mxu0 0.0
      %4112 = vmatprep.subr.mxu0 0.0
      %4113 = vmatpush2.msra.mxu0 0.0
      %4114 = vmatprep.subr.mxu0 0.0
      %4115 = vmatpush2.msra.mxu0 0.0
      %4116 = vmatprep.subr.mxu0 0.0
      %4117 = vmatpush2.msra.mxu0 0.0
      %4118 = vmatprep.subr.mxu0 0.0
      %4119 = vmatpush2.msra.mxu0 0.0
      %4120 = vmatprep.subr.mxu0 0.0
      %4121 = vmatpush2.msra.mxu0 0.0
      %4122 = vmatprep.mubr.f32.mxu0 0.0
      %4123 = vmatmul.mubr.f32.gmra.mxu0 %v4053
      %v4124 = vpop.f32.mrf.mxu0
      %v4125 = vadd.f32 0.0, %v4124
      %v4126 = vpop.f32.mrf.mxu0
      %4127 = vmatprep.mubr.f32.mxu0 0.0
      %4128 = vmatmul.mubr.f32.gmra.mxu0 %v4056
      %v4129 = vpop.f32.mrf.mxu0
      %v4130 = vadd.f32 0.0, %v4129
      %v4131 = vpop.f32.mrf.mxu0
      %4132 = vdwg.mxu0
      %4133 = vrot.lane.b32.xlu0 %v649, 72
      %v4134 = vpop.permute.xlu0 %4133
      %4135 = vrot.lane.b32.xlu0 %v654, 72
      %v4136 = vpop.permute.xlu0 %4135
      %v4140 = vsel %vm1053, %v4040, 0
      %v4143 = vsel %vm1053, %v4041, 0
      %4145 = vmatprep.subr.mxu0 0.0
      %4146 = vmatpush1.msra.mxu0 0.0
      %4147 = vmatprep.subr.mxu0 0.0
      %4148 = vmatpush1.msra.mxu0 0.0
      %4149 = vmatprep.subr.mxu0 0.0
      %4150 = vmatpush1.msra.mxu0 0.0
      %4151 = vmatprep.subr.mxu0 0.0
      %4152 = vmatpush1.msra.mxu0 0.0
      %4153 = vmatprep.subr.mxu0 0.0
      %4154 = vmatpush1.msra.mxu0 0.0
      %4155 = vmatprep.subr.mxu0 0.0
      %4156 = vmatpush1.msra.mxu0 0.0
      %4157 = vmatprep.subr.mxu0 0.0
      %4158 = vmatpush1.msra.mxu0 0.0
      %4159 = vmatprep.subr.mxu0 0.0
      %4160 = vmatpush1.msra.mxu0 0.0
      %4161 = vmatprep.subr.mxu0 0.0
      %4162 = vmatpush1.msra.mxu0 0.0
      %4163 = vmatprep.subr.mxu0 0.0
      %4164 = vmatpush1.msra.mxu0 0.0
      %4165 = vmatprep.subr.mxu0 0.0
      %4166 = vmatpush1.msra.mxu0 0.0
      %4167 = vmatprep.subr.mxu0 0.0
      %4168 = vmatpush1.msra.mxu0 0.0
      %4169 = vmatprep.subr.mxu0 0.0
      %4170 = vmatpush1.msra.mxu0 0.0
      %4171 = vmatprep.subr.mxu0 0.0
      %4172 = vmatpush1.msra.mxu0 0.0
      %4173 = vmatprep.subr.mxu0 0.0
      %4174 = vmatpush1.msra.mxu0 %v4136
      %4175 = vmatprep.subr.mxu0 0.0
      %4176 = vmatpush1.msra.mxu0 %v4134
      %4177 = vmatprep.subr.mxu0 0.0
      %4178 = vmatpush2.msra.mxu0 0.0
      %4179 = vmatprep.subr.mxu0 0.0
      %4180 = vmatpush2.msra.mxu0 0.0
      %4181 = vmatprep.subr.mxu0 0.0
      %4182 = vmatpush2.msra.mxu0 0.0
      %4183 = vmatprep.subr.mxu0 0.0
      %4184 = vmatpush2.msra.mxu0 0.0
      %4185 = vmatprep.subr.mxu0 0.0
      %4186 = vmatpush2.msra.mxu0 0.0
      %4187 = vmatprep.subr.mxu0 0.0
      %4188 = vmatpush2.msra.mxu0 0.0
      %4189 = vmatprep.subr.mxu0 0.0
      %4190 = vmatpush2.msra.mxu0 0.0
      %4191 = vmatprep.subr.mxu0 0.0
      %4192 = vmatpush2.msra.mxu0 0.0
      %4193 = vmatprep.subr.mxu0 0.0
      %4194 = vmatpush2.msra.mxu0 0.0
      %4195 = vmatprep.subr.mxu0 0.0
      %4196 = vmatpush2.msra.mxu0 0.0
      %4197 = vmatprep.subr.mxu0 0.0
      %4198 = vmatpush2.msra.mxu0 0.0
      %4199 = vmatprep.subr.mxu0 0.0
      %4200 = vmatpush2.msra.mxu0 0.0
      %4201 = vmatprep.subr.mxu0 0.0
      %4202 = vmatpush2.msra.mxu0 0.0
      %4203 = vmatprep.subr.mxu0 0.0
      %4204 = vmatpush2.msra.mxu0 0.0
      %4205 = vmatprep.subr.mxu0 0.0
      %4206 = vmatpush2.msra.mxu0 0.0
      %4207 = vmatprep.subr.mxu0 0.0
      %4208 = vmatpush2.msra.mxu0 0.0
      %4209 = vmatprep.mubr.f32.mxu0 0.0
      %4210 = vmatmul.mubr.f32.gmra.mxu0 %v4140
      %v4211 = vpop.f32.mrf.mxu0
      %v4212 = vadd.f32 0.0, %v4211
      %v4213 = vpop.f32.mrf.mxu0
      %4214 = vmatprep.mubr.f32.mxu0 0.0
      %4215 = vmatmul.mubr.f32.gmra.mxu0 %v4143
      %v4216 = vpop.f32.mrf.mxu0
      %v4217 = vadd.f32 0.0, %v4216
      %v4218 = vpop.f32.mrf.mxu0
      %4219 = vdwg.mxu0
      %4220 = vrot.lane.b32.xlu0 %v659, 72
      %v4221 = vpop.permute.xlu0 %4220
      %4222 = vrot.lane.b32.xlu0 %v664, 72
      %v4223 = vpop.permute.xlu0 %4222
      %v4227 = vsel %vm1053, %v4042, 0
      %v4230 = vsel %vm1053, %v4043, 0
      %4232 = vmatprep.subr.mxu0 0.0
      %4233 = vmatpush1.msra.mxu0 0.0
      %4234 = vmatprep.subr.mxu0 0.0
      %4235 = vmatpush1.msra.mxu0 0.0
      %4236 = vmatprep.subr.mxu0 0.0
      %4237 = vmatpush1.msra.mxu0 0.0
      %4238 = vmatprep.subr.mxu0 0.0
      %4239 = vmatpush1.msra.mxu0 0.0
      %4240 = vmatprep.subr.mxu0 0.0
      %4241 = vmatpush1.msra.mxu0 0.0
      %4242 = vmatprep.subr.mxu0 0.0
      %4243 = vmatpush1.msra.mxu0 0.0
      %4244 = vmatprep.subr.mxu0 0.0
      %4245 = vmatpush1.msra.mxu0 0.0
      %4246 = vmatprep.subr.mxu0 0.0
      %4247 = vmatpush1.msra.mxu0 0.0
      %4248 = vmatprep.subr.mxu0 0.0
      %4249 = vmatpush1.msra.mxu0 0.0
      %4250 = vmatprep.subr.mxu0 0.0
      %4251 = vmatpush1.msra.mxu0 0.0
      %4252 = vmatprep.subr.mxu0 0.0
      %4253 = vmatpush1.msra.mxu0 0.0
      %4254 = vmatprep.subr.mxu0 0.0
      %4255 = vmatpush1.msra.mxu0 0.0
      %4256 = vmatprep.subr.mxu0 0.0
      %4257 = vmatpush1.msra.mxu0 0.0
      %4258 = vmatprep.subr.mxu0 0.0
      %4259 = vmatpush1.msra.mxu0 0.0
      %4260 = vmatprep.subr.mxu0 0.0
      %4261 = vmatpush1.msra.mxu0 %v4223
      %4262 = vmatprep.subr.mxu0 0.0
      %4263 = vmatpush1.msra.mxu0 %v4221
      %4264 = vmatprep.subr.mxu0 0.0
      %4265 = vmatpush2.msra.mxu0 0.0
      %4266 = vmatprep.subr.mxu0 0.0
      %4267 = vmatpush2.msra.mxu0 0.0
      %4268 = vmatprep.subr.mxu0 0.0
      %4269 = vmatpush2.msra.mxu0 0.0
      %4270 = vmatprep.subr.mxu0 0.0
      %4271 = vmatpush2.msra.mxu0 0.0
      %4272 = vmatprep.subr.mxu0 0.0
      %4273 = vmatpush2.msra.mxu0 0.0
      %4274 = vmatprep.subr.mxu0 0.0
      %4275 = vmatpush2.msra.mxu0 0.0
      %4276 = vmatprep.subr.mxu0 0.0
      %4277 = vmatpush2.msra.mxu0 0.0
      %4278 = vmatprep.subr.mxu0 0.0
      %4279 = vmatpush2.msra.mxu0 0.0
      %4280 = vmatprep.subr.mxu0 0.0
      %4281 = vmatpush2.msra.mxu0 0.0
      %4282 = vmatprep.subr.mxu0 0.0
      %4283 = vmatpush2.msra.mxu0 0.0
      %4284 = vmatprep.subr.mxu0 0.0
      %4285 = vmatpush2.msra.mxu0 0.0
      %4286 = vmatprep.subr.mxu0 0.0
      %4287 = vmatpush2.msra.mxu0 0.0
      %4288 = vmatprep.subr.mxu0 0.0
      %4289 = vmatpush2.msra.mxu0 0.0
      %4290 = vmatprep.subr.mxu0 0.0
      %4291 = vmatpush2.msra.mxu0 0.0
      %4292 = vmatprep.subr.mxu0 0.0
      %4293 = vmatpush2.msra.mxu0 0.0
      %4294 = vmatprep.subr.mxu0 0.0
      %4295 = vmatpush2.msra.mxu0 0.0
      %4296 = vmatprep.mubr.f32.mxu0 0.0
      %4297 = vmatmul.mubr.f32.gmra.mxu0 %v4227
      %v4298 = vpop.f32.mrf.mxu0
      %v4299 = vadd.f32 0.0, %v4298
      %v4300 = vpop.f32.mrf.mxu0
      %4301 = vmatprep.mubr.f32.mxu0 0.0
      %4302 = vmatmul.mubr.f32.gmra.mxu0 %v4230
      %v4303 = vpop.f32.mrf.mxu0
      %v4304 = vadd.f32 0.0, %v4303
      %v4305 = vpop.f32.mrf.mxu0
      %4306 = vdwg.mxu0
      %4307 = vrot.lane.b32.xlu0 %v669, 72
      %v4308 = vpop.permute.xlu0 %4307
      %4309 = vrot.lane.b32.xlu0 %v674, 72
      %v4310 = vpop.permute.xlu0 %4309
      %v4314 = vsel %vm1053, %v4044, 0
      %v4317 = vsel %vm1053, %v4045, 0
      %4319 = vmatprep.subr.mxu0 0.0
      %4320 = vmatpush1.msra.mxu0 0.0
      %4321 = vmatprep.subr.mxu0 0.0
      %4322 = vmatpush1.msra.mxu0 0.0
      %4323 = vmatprep.subr.mxu0 0.0
      %4324 = vmatpush1.msra.mxu0 0.0
      %4325 = vmatprep.subr.mxu0 0.0
      %4326 = vmatpush1.msra.mxu0 0.0
      %4327 = vmatprep.subr.mxu0 0.0
      %4328 = vmatpush1.msra.mxu0 0.0
      %4329 = vmatprep.subr.mxu0 0.0
      %4330 = vmatpush1.msra.mxu0 0.0
      %4331 = vmatprep.subr.mxu0 0.0
      %4332 = vmatpush1.msra.mxu0 0.0
      %4333 = vmatprep.subr.mxu0 0.0
      %4334 = vmatpush1.msra.mxu0 0.0
      %4335 = vmatprep.subr.mxu0 0.0
      %4336 = vmatpush1.msra.mxu0 0.0
      %4337 = vmatprep.subr.mxu0 0.0
      %4338 = vmatpush1.msra.mxu0 0.0
      %4339 = vmatprep.subr.mxu0 0.0
      %4340 = vmatpush1.msra.mxu0 0.0
      %4341 = vmatprep.subr.mxu0 0.0
      %4342 = vmatpush1.msra.mxu0 0.0
      %4343 = vmatprep.subr.mxu0 0.0
      %4344 = vmatpush1.msra.mxu0 0.0
      %4345 = vmatprep.subr.mxu0 0.0
      %4346 = vmatpush1.msra.mxu0 0.0
      %4347 = vmatprep.subr.mxu0 0.0
      %4348 = vmatpush1.msra.mxu0 %v4310
      %4349 = vmatprep.subr.mxu0 0.0
      %4350 = vmatpush1.msra.mxu0 %v4308
      %4351 = vmatprep.subr.mxu0 0.0
      %4352 = vmatpush2.msra.mxu0 0.0
      %4353 = vmatprep.subr.mxu0 0.0
      %4354 = vmatpush2.msra.mxu0 0.0
      %4355 = vmatprep.subr.mxu0 0.0
      %4356 = vmatpush2.msra.mxu0 0.0
      %4357 = vmatprep.subr.mxu0 0.0
      %4358 = vmatpush2.msra.mxu0 0.0
      %4359 = vmatprep.subr.mxu0 0.0
      %4360 = vmatpush2.msra.mxu0 0.0
      %4361 = vmatprep.subr.mxu0 0.0
      %4362 = vmatpush2.msra.mxu0 0.0
      %4363 = vmatprep.subr.mxu0 0.0
      %4364 = vmatpush2.msra.mxu0 0.0
      %4365 = vmatprep.subr.mxu0 0.0
      %4366 = vmatpush2.msra.mxu0 0.0
      %4367 = vmatprep.subr.mxu0 0.0
      %4368 = vmatpush2.msra.mxu0 0.0
      %4369 = vmatprep.subr.mxu0 0.0
      %4370 = vmatpush2.msra.mxu0 0.0
      %4371 = vmatprep.subr.mxu0 0.0
      %4372 = vmatpush2.msra.mxu0 0.0
      %4373 = vmatprep.subr.mxu0 0.0
      %4374 = vmatpush2.msra.mxu0 0.0
      %4375 = vmatprep.subr.mxu0 0.0
      %4376 = vmatpush2.msra.mxu0 0.0
      %4377 = vmatprep.subr.mxu0 0.0
      %4378 = vmatpush2.msra.mxu0 0.0
      %4379 = vmatprep.subr.mxu0 0.0
      %4380 = vmatpush2.msra.mxu0 0.0
      %4381 = vmatprep.subr.mxu0 0.0
      %4382 = vmatpush2.msra.mxu0 0.0
      %4383 = vmatprep.mubr.f32.mxu0 0.0
      %4384 = vmatmul.mubr.f32.gmra.mxu0 %v4314
      %v4385 = vpop.f32.mrf.mxu0
      %v4386 = vadd.f32 0.0, %v4385
      %v4387 = vpop.f32.mrf.mxu0
      %4388 = vmatprep.mubr.f32.mxu0 0.0
      %4389 = vmatmul.mubr.f32.gmra.mxu0 %v4317
      %v4390 = vpop.f32.mrf.mxu0
      %v4391 = vadd.f32 0.0, %v4390
      %v4392 = vpop.f32.mrf.mxu0
      %4393 = vdwg.mxu0
      %v4394 = vld [vmem:[%s6 + $0x18] sm:$0xff]
      %v4396 = vsel %vm680, %v4125, 0
      %v4399 = vsel %vm680, %v4130, 0
      %v4402 = vsel %vm680, %v4212, 0
      %v4405 = vsel %vm680, %v4217, 0
      %v4408 = vsel %vm680, %v4299, 0
      %v4411 = vsel %vm680, %v4304, 0
      %v4414 = vsel %vm680, %v4386, 0
      %v4417 = vsel %vm680, %v4391, 0
      %4419 = vmatprep.subr.mxu0 0.0
      %4420 = vmatpush1.msra.mxu0 0.0
      %4421 = vmatprep.subr.mxu0 0.0
      %4422 = vmatpush1.msra.mxu0 0.0
      %4423 = vmatprep.subr.mxu0 0.0
      %4424 = vmatpush1.msra.mxu0 0.0
      %4425 = vmatprep.subr.mxu0 0.0
      %4426 = vmatpush1.msra.mxu0 0.0
      %4427 = vmatprep.subr.mxu0 0.0
      %4428 = vmatpush1.msra.mxu0 0.0
      %4429 = vmatprep.subr.mxu0 0.0
      %4430 = vmatpush1.msra.mxu0 0.0
      %4431 = vmatprep.subr.mxu0 0.0
      %4432 = vmatpush1.msra.mxu0 0.0
      %4433 = vmatprep.subr.mxu0 0.0
      %4434 = vmatpush1.msra.mxu0 0.0
      %4435 = vmatprep.subr.mxu0 0.0
      %4436 = vmatpush1.msra.mxu0 0.0
      %4437 = vmatprep.subr.mxu0 0.0
      %4438 = vmatpush1.msra.mxu0 0.0
      %4439 = vmatprep.subr.mxu0 0.0
      %4440 = vmatpush1.msra.mxu0 0.0
      %4441 = vmatprep.subr.mxu0 0.0
      %4442 = vmatpush1.msra.mxu0 0.0
      %4443 = vmatprep.subr.mxu0 0.0
      %4444 = vmatpush1.msra.mxu0 0.0
      %4445 = vmatprep.subr.mxu0 0.0
      %4446 = vmatpush1.msra.mxu0 0.0
      %4447 = vmatprep.subr.mxu0 0.0
      %4448 = vmatpush1.msra.mxu0 0.0
      %4449 = vmatprep.subr.mxu0 0.0
      %4450 = vmatpush1.msra.mxu0 %v4394
      %4451 = vmatprep.subr.mxu0 0.0
      %4452 = vmatpush2.msra.mxu0 0.0
      %4453 = vmatprep.subr.mxu0 0.0
      %4454 = vmatpush2.msra.mxu0 0.0
      %4455 = vmatprep.subr.mxu0 0.0
      %4456 = vmatpush2.msra.mxu0 0.0
      %4457 = vmatprep.subr.mxu0 0.0
      %4458 = vmatpush2.msra.mxu0 0.0
      %4459 = vmatprep.subr.mxu0 0.0
      %4460 = vmatpush2.msra.mxu0 0.0
      %4461 = vmatprep.subr.mxu0 0.0
      %4462 = vmatpush2.msra.mxu0 0.0
      %4463 = vmatprep.subr.mxu0 0.0
      %4464 = vmatpush2.msra.mxu0 0.0
      %4465 = vmatprep.subr.mxu0 0.0
      %4466 = vmatpush2.msra.mxu0 0.0
      %4467 = vmatprep.subr.mxu0 0.0
      %4468 = vmatpush2.msra.mxu0 0.0
      %4469 = vmatprep.subr.mxu0 0.0
      %4470 = vmatpush2.msra.mxu0 0.0
      %4471 = vmatprep.subr.mxu0 0.0
      %4472 = vmatpush2.msra.mxu0 0.0
      %4473 = vmatprep.subr.mxu0 0.0
      %4474 = vmatpush2.msra.mxu0 0.0
      %4475 = vmatprep.subr.mxu0 0.0
      %4476 = vmatpush2.msra.mxu0 0.0
      %4477 = vmatprep.subr.mxu0 0.0
      %4478 = vmatpush2.msra.mxu0 0.0
      %4479 = vmatprep.subr.mxu0 0.0
      %4480 = vmatpush2.msra.mxu0 0.0
      %4481 = vmatprep.subr.mxu0 0.0
      %4482 = vmatpush2.msra.mxu0 0.0
      %4483 = vmatprep.mubr.f32.mxu0 0.0
      %4484 = vmatmul.mubr.f32.gmra.mxu0 %v4396
      %v4485 = vpop.f32.mrf.mxu0
      %v4486 = vadd.f32 0.0, %v4485
      %v4487 = vpop.f32.mrf.mxu0
      %4488 = vmatprep.mubr.f32.mxu0 0.0
      %4489 = vmatmul.mubr.f32.gmra.mxu0 %v4399
      %v4490 = vpop.f32.mrf.mxu0
      %v4491 = vadd.f32 0.0, %v4490
      %v4492 = vpop.f32.mrf.mxu0
      %4493 = vmatprep.mubr.f32.mxu0 0.0
      %4494 = vmatmul.mubr.f32.gmra.mxu0 %v4402
      %v4495 = vpop.f32.mrf.mxu0
      %v4496 = vadd.f32 0.0, %v4495
      %v4497 = vpop.f32.mrf.mxu0
      %4498 = vmatprep.mubr.f32.mxu0 0.0
      %4499 = vmatmul.mubr.f32.gmra.mxu0 %v4405
      %v4500 = vpop.f32.mrf.mxu0
      %v4501 = vadd.f32 0.0, %v4500
      %v4502 = vpop.f32.mrf.mxu0
      %4503 = vmatprep.mubr.f32.mxu0 0.0
      %4504 = vmatmul.mubr.f32.gmra.mxu0 %v4408
      %v4505 = vpop.f32.mrf.mxu0
      %v4506 = vadd.f32 0.0, %v4505
      %v4507 = vpop.f32.mrf.mxu0
      %4508 = vmatprep.mubr.f32.mxu0 0.0
      %4509 = vmatmul.mubr.f32.gmra.mxu0 %v4411
      %v4510 = vpop.f32.mrf.mxu0
      %v4511 = vadd.f32 0.0, %v4510
      %v4512 = vpop.f32.mrf.mxu0
      %4513 = vmatprep.mubr.f32.mxu0 0.0
      %4514 = vmatmul.mubr.f32.gmra.mxu0 %v4414
      %v4515 = vpop.f32.mrf.mxu0
      %v4516 = vadd.f32 0.0, %v4515
      %v4517 = vpop.f32.mrf.mxu0
      %4518 = vmatprep.mubr.f32.mxu0 0.0
      %4519 = vmatmul.mubr.f32.gmra.mxu0 %v4417
      %v4520 = vpop.f32.mrf.mxu0
      %v4521 = vadd.f32 0.0, %v4520
      %v4522 = vpop.f32.mrf.mxu0
      %4523 = vdwg.mxu0
      %v4524 = vadd.f32 %v3558, %v4486
      %v4525 = vadd.f32 %v3559, %v4491
      %v4526 = vadd.f32 %v3560, %v4496
      %v4527 = vadd.f32 %v3561, %v4501
      %v4528 = vadd.f32 %v3562, %v4506
      %v4529 = vadd.f32 %v3563, %v4511
      %v4530 = vadd.f32 %v3564, %v4516
      %v4531 = vadd.f32 %v3565, %v4521
      %4532 = vst.msk [vmem:[%s379] sm:$0xff] %vm407, %v4524
      %4533 = vst.msk [vmem:[%s379 + $0x8] sm:$0xff] %vm407, %v4525
      %4534 = vst.msk [vmem:[%s379 + $0x10] sm:$0xff] %vm407, %v4526
      %4535 = vst.msk [vmem:[%s379 + $0x18] sm:$0xff] %vm407, %v4527
      %4536 = vst.msk [vmem:[%s379 + $0x20] sm:$0xff] %vm407, %v4528
      %4537 = vst.msk [vmem:[%s379 + $0x28] sm:$0xff] %vm407, %v4529
      %4538 = vst.msk [vmem:[%s379 + $0x30] sm:$0xff] %vm407, %v4530
      %4539 = vst.msk [vmem:[%s379 + $0x38] sm:$0xff] %vm407, %v4531
      %p4540 = scmp.lt.s32.totalorder %s21, 1
      %s4541 = scalar_select %p4540, %s21, 1
      %s4542 = smul.addr %s4541, 8
      %s4543 = smul.addr %s4542, 8
      %s4544 = scalar_lea.vmem %s10, %s4543
      // Predicated region
      $region61: #{mha_forward.1} parent=59 // pred_check
        %p4545 = pneg %p259
      $region62: #{mha_forward.1} parent=59 // pred_check_branch
        %4547 = sbr.rel (%p4545) target = $region64
      $region63: #{mha_forward.1} parent=59 // pred_region
        _
      $region64: #{mha_forward.1} parent=59 // pred_fallthru
        _
    $region60: #{mha_forward.1} parent=5 // pred_fallthru
      _
    %p4548 = scmp.le.s32.totalorder 2, %s16
    // Predicated region
    $region65: #{mha_forward.1} parent=5 // pred_check
      %p4549 = pneg %p4548
    $region66: #{mha_forward.1} parent=5 // pred_check_branch
      %4551 = sbr.rel (%p4549) target = $region68
    $region67: #{mha_forward.1} parent=5 // pred_region
      %s4552 = ssub.s32 %s16, 2
      // Predicated region
      $region69: #{mha_forward.1} parent=67 // pred_check
        %p4553 = pneg %p265
      $region70: #{mha_forward.1} parent=67 // pred_check_branch
        %4555 = sbr.rel (%p4553) target = $region72
      $region71: #{mha_forward.1} parent=67 // pred_region
        %p4556 = scmp.lt.s32.totalorder %s22, 1
        %s4557 = scalar_select %p4556, %s22, 1
        %s4558 = smul.addr %s4557, 8
        %s4559 = smul.addr %s4558, 8
        %s4560 = scalar_lea.vmem %s10, %s4559
      $region72: #{mha_forward.1} parent=67 // pred_fallthru
        _
    $region68: #{mha_forward.1} parent=5 // pred_fallthru
      _
  $region6: #{mha_forward.1} parent=0 // loop_footer
    %s20 = sadd.s32 1, %s16
  $region7: #{mha_forward.1} parent=0 // loop_footer_branch
    %15 = sbr.rel target = $region3
  $region8: #{mha_forward.1} parent=0 // loop_exit
    _

</llo_original>
